<compile_context>
chip_gen: v6e
topology: v6e:2x2x1
jax: 0.10.0
libtpu: 0.0.40
codegen_flags: <defaults>
</compile_context>

<pallas_src>
import jax
import jax.numpy as jnp
from jax.experimental import pallas as pl
from jax.experimental.pallas import tpu as pltpu

LANE = 128


# ---------------------------------------------------------------------------
# Kernels
# ---------------------------------------------------------------------------
def conv_pool_kernel(p_ref, w_ref, b_ref, o_ref):
    """Fused 3x3-conv (im2col matmul) + bias + relu + 2x2 maxpool.

    p_ref : (4*tm, K) bf16  -- the 4 pool-position patch blocks, stacked
    w_ref : (K, 128)  bf16  -- weights, Cout zero-padded to 128 lanes
    b_ref : (1, 128)  f32
    o_ref : (tm, 128) bf16  -- pooled + relu'd rows (lane-dense store)

    relu(max_i(x_i @ W) + b) == maxpool(relu(conv(x) + b)) since the bias is
    shared across the 4 window positions and relu is monotone.
    """
    tm = o_ref.shape[0]
    z = jnp.dot(p_ref[...], w_ref[...],
                preferred_element_type=jnp.float32)            # (4*tm, 128) f32
    z = jnp.maximum(jnp.maximum(z[:tm], z[tm:2 * tm]),
                    jnp.maximum(z[2 * tm:3 * tm], z[3 * tm:]))  # max over 4 pos
    z = jnp.maximum(z + b_ref[...], 0.0)
    o_ref[...] = z.astype(o_ref.dtype)


def fc_fused_kernel(x_ref, w1_ref, b1_ref, w2_ref, b2_ref, o_ref):
    """Fused relu(x@W1+b1) @ W2 + b2; the hidden activation never leaves VMEM."""
    h = jnp.dot(x_ref[...], w1_ref[...], preferred_element_type=jnp.float32)
    h = jnp.maximum(h + b1_ref[...], 0.0)
    # dropout(0.3): identity in eval mode
    z = jnp.dot(h.astype(w2_ref.dtype), w2_ref[...],
                preferred_element_type=jnp.float32)
    o_ref[...] = (z + b2_ref[...]).astype(o_ref.dtype)


# ---------------------------------------------------------------------------
# JAX glue: im2col / pool-position stacking / padding / layout plumbing
# ---------------------------------------------------------------------------
def _pool_patches(x):
    """x: (B, H, W, Cin) NHWC -> (4, M4, K) im2col patch matrices, one per 2x2
    pool-window position. K ordering is (ky, kx, cin), matching PyTorch
    weight[co, ci, ky, kx] after transpose((2, 3, 1, 0))."""
    B, H, W, Cin = x.shape
    K = 9 * Cin
    xp = jnp.pad(x, ((0, 0), (1, 1), (1, 1), (0, 0)))
    cols = [xp[:, dy:dy + H, dx:dx + W, :] for dy in range(3) for dx in range(3)]
    patches = jnp.concatenate(cols, axis=-1)                   # (B, H, W, K)
    p = patches.reshape(B, H // 2, 2, W // 2, 2, K)
    p = p.transpose(2, 4, 0, 1, 3, 5)                          # (2,2,B,H/2,W/2,K)
    return p.reshape(4, B * (H // 2) * (W // 2), K)


def _pick_tm(m4, cap=512):
    """Largest row tile <= cap dividing m4, keeping >=2 grid steps when possible
    (so a 2nd TensorCore on v7x has work)."""
    tm = min(m4, cap)
    while tm > 8 and (m4 % tm or m4 // tm < 2):
        tm -= 8
    if m4 % tm or (tm % 8 and tm != m4):
        tm = m4   # single full-extent block fallback (always a legal block)
    return tm


def conv_relu_pool(x_nhwc, w, b):
    """One PyTorch stage: maxpool2x2(relu(conv2d(x, w, b, padding=1))).

    x_nhwc : (B, H, W, Cin)  (any float dtype; cast to bf16 for the MXU path)
    w      : (Cout, Cin, 3, 3) PyTorch layout, f32
    b      : (Cout,) f32
    returns: (B, H//2, W//2, Cout) NHWC bf16
    """
    B, H, W, Cin = x_nhwc.shape
    Cout = w.shape[0]
    K = 9 * Cin
    M4 = B * (H // 2) * (W // 2)

    tm = _pick_tm(M4)
    nt = M4 // tm

    # (4, M4, K) bf16 patches -> tile-major interleave so each grid block holds
    # the 4 positions of the same tm pool windows contiguously: (nt*4*tm, K).
    p = _pool_patches(x_nhwc.astype(jnp.bfloat16))
    p = p.reshape(4, nt, tm, K).transpose(1, 0, 2, 3).reshape(nt * 4 * tm, K)

    # PyTorch weight -> (K, Cout), zero-pad Cout to 128 lanes (unmasked stores,
    # fuller MXU N dimension); padded channels compute relu(0+0)=0, sliced off.
    wt = jnp.transpose(w, (2, 3, 1, 0)).reshape(K, Cout)
    wt = jnp.pad(wt, ((0, 0), (0, LANE - Cout))).astype(jnp.bfloat16)
    b2 = jnp.pad(b.reshape(1, Cout), ((0, 0), (0, LANE - Cout))).astype(jnp.float32)

    out = pl.pallas_call(
        conv_pool_kernel,
        out_shape=jax.ShapeDtypeStruct((M4, LANE), jnp.bfloat16),
        grid_spec=pltpu.PrefetchScalarGridSpec(
            num_scalar_prefetch=0,
            grid=(nt,),
            in_specs=[pl.BlockSpec((4 * tm, K), lambda i: (i, 0)),
                      pl.BlockSpec((K, LANE), lambda i: (0, 0)),
                      pl.BlockSpec((1, LANE), lambda i: (0, 0))],
            out_specs=pl.BlockSpec((tm, LANE), lambda i: (i, 0)),
        ),
        compiler_params=pltpu.CompilerParams(
            dimension_semantics=("parallel",)),
    )(p, wt, b2)
    return out.reshape(B, H // 2, W // 2, LANE)[..., :Cout]


def fc_fused(x, w1, b1, w2, b2):
    """relu(x @ w1.T + b1) @ w2.T + b2 in ONE pallas_call.

    fc1 Out padded 500->512 (aligned MXU contraction for fc2), fc2 Out padded
    to 128 lanes (unmasked store); padding is zero so results are exact.
    """
    B, In = x.shape
    H1 = w1.shape[0]                     # 500
    O2 = w2.shape[0]                     # 10
    H1p = pl.cdiv(H1, LANE) * LANE       # 512
    O2p = LANE                           # 128

    w1p = jnp.pad(jnp.transpose(w1), ((0, 0), (0, H1p - H1))).astype(jnp.bfloat16)
    b1p = jnp.pad(b1.reshape(1, H1), ((0, 0), (0, H1p - H1))).astype(jnp.float32)
    w2p = jnp.pad(jnp.transpose(w2), ((0, H1p - H1), (0, O2p - O2))).astype(jnp.bfloat16)
    b2p = jnp.pad(b2.reshape(1, O2), ((0, 0), (0, O2p - O2))).astype(jnp.float32)

    out = pl.pallas_call(
        fc_fused_kernel,
        out_shape=jax.ShapeDtypeStruct((B, O2p), jnp.float32),
        grid_spec=pltpu.PrefetchScalarGridSpec(
            num_scalar_prefetch=0,
            grid=(1,),
            in_specs=[pl.BlockSpec((B, In), lambda i: (0, 0)),
                      pl.BlockSpec((In, H1p), lambda i: (0, 0)),
                      pl.BlockSpec((1, H1p), lambda i: (0, 0)),
                      pl.BlockSpec((H1p, O2p), lambda i: (0, 0)),
                      pl.BlockSpec((1, O2p), lambda i: (0, 0))],
            out_specs=pl.BlockSpec((B, O2p), lambda i: (0, 0)),
        ),
        compiler_params=pltpu.CompilerParams(
            dimension_semantics=("arbitrary",)),
    )(x.astype(jnp.bfloat16), w1p, b1p, w2p, b2p)
    return out[:, :O2]


# ---------------------------------------------------------------------------
# Full forward pass (matches PyTorch Net.forward, eval mode)
# ---------------------------------------------------------------------------
def net_forward(x_nchw, params):
    # NCHW -> NHWC for the conv path (channels on the lane axis)
    x = jnp.transpose(x_nchw, (0, 2, 3, 1))
    x = conv_relu_pool(x, params["conv1_w"], params["conv1_b"])   # (B,16,16,16)
    x = conv_relu_pool(x, params["conv2_w"], params["conv2_b"])   # (B, 8, 8,32)
    x = conv_relu_pool(x, params["conv3_w"], params["conv3_b"])   # (B, 4, 4,64)
    B = x.shape[0]
    # PyTorch flattens NCHW, i.e. (C, H, W) order -> transpose back first.
    x = jnp.transpose(x, (0, 3, 1, 2)).reshape(B, 64 * 4 * 4)
    # dropout(0.3): identity in eval mode
    return fc_fused(x, params["fc1_w"], params["fc1_b"],
                    params["fc2_w"], params["fc2_b"])             # (B, 10)


def init_params(key):
    ks = jax.random.split(key, 10)
    s = 0.05
    return {
        "conv1_w": s * jax.random.normal(ks[0], (16, 3, 3, 3), jnp.float32),
        "conv1_b": s * jax.random.normal(ks[1], (16,), jnp.float32),
        "conv2_w": s * jax.random.normal(ks[2], (32, 16, 3, 3), jnp.float32),
        "conv2_b": s * jax.random.normal(ks[3], (32,), jnp.float32),
        "conv3_w": s * jax.random.normal(ks[4], (64, 32, 3, 3), jnp.float32),
        "conv3_b": s * jax.random.normal(ks[5], (64,), jnp.float32),
        "fc1_w": s * jax.random.normal(ks[6], (500, 64 * 4 * 4), jnp.float32),
        "fc1_b": s * jax.random.normal(ks[7], (500,), jnp.float32),
        "fc2_w": s * jax.random.normal(ks[8], (10, 500), jnp.float32),
        "fc2_b": s * jax.random.normal(ks[9], (10,), jnp.float32),
    }


if __name__ == "__main__":
    key = jax.random.PRNGKey(0)
    k_params, k_x = jax.random.split(key)
    params = init_params(k_params)
    # CIFAR-10 sized input: fc1 = Linear(64*4*4, 500) pins H=W=32 after 3 pools.
    x = jax.random.normal(k_x, (2, 3, 32, 32), jnp.float32)   # NCHW like PyTorch

    fwd = jax.jit(net_forward)
    out = fwd(x, params)
    out = jax.block_until_ready(out)
    assert out.shape == (2, 10) and out.dtype == jnp.float32
    print("KERNEL_OK")
</pallas_src>

<mosaic_0001>
module attributes {stable_mosaic.version = 11 : i64} {
  func.func @conv_pool_kernel(%arg0: i32, %arg1: memref<1024x27xbf16, #tpu.memory_space<vmem>>, %arg2: memref<27x128xbf16, #tpu.memory_space<vmem>>, %arg3: memref<1x128xf32, #tpu.memory_space<vmem>>, %arg4: memref<256x128xbf16, #tpu.memory_space<vmem>>) attributes {dimension_semantics = [#tpu.dimension_semantics<parallel>], iteration_bounds = array<i64: 2>, scalar_prefetch = 0 : i64, scratch_operands = 0 : i64, tpu.core_type = #tpu.core_type<tc>, window_params = [{transform_indices = @transform_0, window_bounds = array<i64: 1024, 27>}, {pipeline_mode = #tpu.pipeline_mode<synchronous>, transform_indices = @transform_1, window_bounds = array<i64: 27, 128>}, {pipeline_mode = #tpu.pipeline_mode<synchronous>, transform_indices = @transform_2, window_bounds = array<i64: 1, 128>}, {transform_indices = @transform_3, window_bounds = array<i64: 256, 128>}]} {
    %c0 = arith.constant 0 : index
    %c0_0 = arith.constant 0 : index
    %0 = vector.load %arg1[%c0, %c0_0] : memref<1024x27xbf16, #tpu.memory_space<vmem>>, vector<1024x27xbf16>
    %c0_1 = arith.constant 0 : index
    %c0_2 = arith.constant 0 : index
    %1 = vector.load %arg2[%c0_1, %c0_2] : memref<27x128xbf16, #tpu.memory_space<vmem>>, vector<27x128xbf16>
    %cst = arith.constant dense<0.000000e+00> : vector<1024x128xf32>
    %2 = tpu.matmul %0, %1, %cst {dimension_numbers = #tpu.dot_dimension_numbers<[1], [0], [0], [1], [0, 0, 1, 1], [], []>} : vector<1024x27xbf16>, vector<27x128xbf16>, vector<1024x128xf32> -> vector<1024x128xf32>
    %3 = vector.extract_strided_slice %2 {offsets = [0, 0], sizes = [256, 128], strides = [1, 1]} : vector<1024x128xf32> to vector<256x128xf32>
    %4 = vector.extract_strided_slice %2 {offsets = [256, 0], sizes = [256, 128], strides = [1, 1]} : vector<1024x128xf32> to vector<256x128xf32>
    %5 = arith.maximumf %3, %4 : vector<256x128xf32>
    %6 = vector.extract_strided_slice %2 {offsets = [512, 0], sizes = [256, 128], strides = [1, 1]} : vector<1024x128xf32> to vector<256x128xf32>
    %7 = vector.extract_strided_slice %2 {offsets = [768, 0], sizes = [256, 128], strides = [1, 1]} : vector<1024x128xf32> to vector<256x128xf32>
    %8 = arith.maximumf %6, %7 : vector<256x128xf32>
    %9 = arith.maximumf %5, %8 : vector<256x128xf32>
    %c0_3 = arith.constant 0 : index
    %c0_4 = arith.constant 0 : index
    %10 = vector.load %arg3[%c0_3, %c0_4] : memref<1x128xf32, #tpu.memory_space<vmem>>, vector<1x128xf32>
    %11 = vector.broadcast %10 : vector<1x128xf32> to vector<256x128xf32>
    %12 = arith.addf %9, %11 : vector<256x128xf32>
    %cst_5 = arith.constant 0.000000e+00 : f32
    %13 = vector.broadcast %cst_5 : f32 to vector<256x128xf32>
    %14 = arith.maximumf %12, %13 : vector<256x128xf32>
    %15 = arith.truncf %14 : vector<256x128xf32> to vector<256x128xbf16>
    %c0_6 = arith.constant 0 : index
    %c0_7 = arith.constant 0 : index
    %16 = vector.load %arg4[%c0_6, %c0_7] : memref<256x128xbf16, #tpu.memory_space<vmem>>, vector<256x128xbf16>
    tpu.vector_store %arg4[%c0_6, %c0_7], %15 {strides = array<i32>} : memref<256x128xbf16, #tpu.memory_space<vmem>>, vector<256x128xbf16>,
    return
  }
  func.func @transform_0(%arg0: i32) -> (i32, i32) {
    %c0_i32 = arith.constant 0 : i32
    %c0_i32_0 = arith.constant 0 : i32
    return %arg0, %c0_i32 : i32, i32
  }
  func.func @transform_1(%arg0: i32) -> (i32, i32) {
    %c0_i32 = arith.constant 0 : i32
    %c0_i32_0 = arith.constant 0 : i32
    %c0_i32_1 = arith.constant 0 : i32
    return %c0_i32, %c0_i32_0 : i32, i32
  }
  func.func @transform_2(%arg0: i32) -> (i32, i32) {
    %c0_i32 = arith.constant 0 : i32
    %c0_i32_0 = arith.constant 0 : i32
    %c0_i32_1 = arith.constant 0 : i32
    return %c0_i32, %c0_i32_0 : i32, i32
  }
  func.func @transform_3(%arg0: i32) -> (i32, i32) {
    %c0_i32 = arith.constant 0 : i32
    %c0_i32_0 = arith.constant 0 : i32
    return %arg0, %c0_i32 : i32, i32
  }
}

module attributes {stable_mosaic.version = 11 : i64} {
  func.func @conv_pool_kernel(%arg0: i32, %arg1: memref<256x144xbf16, #tpu.memory_space<vmem>>, %arg2: memref<144x128xbf16, #tpu.memory_space<vmem>>, %arg3: memref<1x128xf32, #tpu.memory_space<vmem>>, %arg4: memref<64x128xbf16, #tpu.memory_space<vmem>>) attributes {dimension_semantics = [#tpu.dimension_semantics<parallel>], iteration_bounds = array<i64: 2>, scalar_prefetch = 0 : i64, scratch_operands = 0 : i64, tpu.core_type = #tpu.core_type<tc>, window_params = [{transform_indices = @transform_0, window_bounds = array<i64: 256, 144>}, {pipeline_mode = #tpu.pipeline_mode<synchronous>, transform_indices = @transform_1, window_bounds = array<i64: 144, 128>}, {pipeline_mode = #tpu.pipeline_mode<synchronous>, transform_indices = @transform_2, window_bounds = array<i64: 1, 128>}, {transform_indices = @transform_3, window_bounds = array<i64: 64, 128>}]} {
    %c0 = arith.constant 0 : index
    %c0_0 = arith.constant 0 : index
    %0 = vector.load %arg1[%c0, %c0_0] : memref<256x144xbf16, #tpu.memory_space<vmem>>, vector<256x144xbf16>
    %c0_1 = arith.constant 0 : index
    %c0_2 = arith.constant 0 : index
    %1 = vector.load %arg2[%c0_1, %c0_2] : memref<144x128xbf16, #tpu.memory_space<vmem>>, vector<144x128xbf16>
    %cst = arith.constant dense<0.000000e+00> : vector<256x128xf32>
    %2 = tpu.matmul %0, %1, %cst {dimension_numbers = #tpu.dot_dimension_numbers<[1], [0], [0], [1], [0, 0, 1, 1], [], []>} : vector<256x144xbf16>, vector<144x128xbf16>, vector<256x128xf32> -> vector<256x128xf32>
    %3 = vector.extract_strided_slice %2 {offsets = [0, 0], sizes = [64, 128], strides = [1, 1]} : vector<256x128xf32> to vector<64x128xf32>
    %4 = vector.extract_strided_slice %2 {offsets = [64, 0], sizes = [64, 128], strides = [1, 1]} : vector<256x128xf32> to vector<64x128xf32>
    %5 = arith.maximumf %3, %4 : vector<64x128xf32>
    %6 = vector.extract_strided_slice %2 {offsets = [128, 0], sizes = [64, 128], strides = [1, 1]} : vector<256x128xf32> to vector<64x128xf32>
    %7 = vector.extract_strided_slice %2 {offsets = [192, 0], sizes = [64, 128], strides = [1, 1]} : vector<256x128xf32> to vector<64x128xf32>
    %8 = arith.maximumf %6, %7 : vector<64x128xf32>
    %9 = arith.maximumf %5, %8 : vector<64x128xf32>
    %c0_3 = arith.constant 0 : index
    %c0_4 = arith.constant 0 : index
    %10 = vector.load %arg3[%c0_3, %c0_4] : memref<1x128xf32, #tpu.memory_space<vmem>>, vector<1x128xf32>
    %11 = vector.broadcast %10 : vector<1x128xf32> to vector<64x128xf32>
    %12 = arith.addf %9, %11 : vector<64x128xf32>
    %cst_5 = arith.constant 0.000000e+00 : f32
    %13 = vector.broadcast %cst_5 : f32 to vector<64x128xf32>
    %14 = arith.maximumf %12, %13 : vector<64x128xf32>
    %15 = arith.truncf %14 : vector<64x128xf32> to vector<64x128xbf16>
    %c0_6 = arith.constant 0 : index
    %c0_7 = arith.constant 0 : index
    %16 = vector.load %arg4[%c0_6, %c0_7] : memref<64x128xbf16, #tpu.memory_space<vmem>>, vector<64x128xbf16>
    tpu.vector_store %arg4[%c0_6, %c0_7], %15 {strides = array<i32>} : memref<64x128xbf16, #tpu.memory_space<vmem>>, vector<64x128xbf16>,
    return
  }
  func.func @transform_0(%arg0: i32) -> (i32, i32) {
    %c0_i32 = arith.constant 0 : i32
    %c0_i32_0 = arith.constant 0 : i32
    return %arg0, %c0_i32 : i32, i32
  }
  func.func @transform_1(%arg0: i32) -> (i32, i32) {
    %c0_i32 = arith.constant 0 : i32
    %c0_i32_0 = arith.constant 0 : i32
    %c0_i32_1 = arith.constant 0 : i32
    return %c0_i32, %c0_i32_0 : i32, i32
  }
  func.func @transform_2(%arg0: i32) -> (i32, i32) {
    %c0_i32 = arith.constant 0 : i32
    %c0_i32_0 = arith.constant 0 : i32
    %c0_i32_1 = arith.constant 0 : i32
    return %c0_i32, %c0_i32_0 : i32, i32
  }
  func.func @transform_3(%arg0: i32) -> (i32, i32) {
    %c0_i32 = arith.constant 0 : i32
    %c0_i32_0 = arith.constant 0 : i32
    return %arg0, %c0_i32 : i32, i32
  }
}

module attributes {stable_mosaic.version = 11 : i64} {
  func.func @conv_pool_kernel(%arg0: i32, %arg1: memref<64x288xbf16, #tpu.memory_space<vmem>>, %arg2: memref<288x128xbf16, #tpu.memory_space<vmem>>, %arg3: memref<1x128xf32, #tpu.memory_space<vmem>>, %arg4: memref<16x128xbf16, #tpu.memory_space<vmem>>) attributes {dimension_semantics = [#tpu.dimension_semantics<parallel>], iteration_bounds = array<i64: 2>, scalar_prefetch = 0 : i64, scratch_operands = 0 : i64, tpu.core_type = #tpu.core_type<tc>, window_params = [{transform_indices = @transform_0, window_bounds = array<i64: 64, 288>}, {pipeline_mode = #tpu.pipeline_mode<synchronous>, transform_indices = @transform_1, window_bounds = array<i64: 288, 128>}, {pipeline_mode = #tpu.pipeline_mode<synchronous>, transform_indices = @transform_2, window_bounds = array<i64: 1, 128>}, {transform_indices = @transform_3, window_bounds = array<i64: 16, 128>}]} {
    %c0 = arith.constant 0 : index
    %c0_0 = arith.constant 0 : index
    %0 = vector.load %arg1[%c0, %c0_0] : memref<64x288xbf16, #tpu.memory_space<vmem>>, vector<64x288xbf16>
    %c0_1 = arith.constant 0 : index
    %c0_2 = arith.constant 0 : index
    %1 = vector.load %arg2[%c0_1, %c0_2] : memref<288x128xbf16, #tpu.memory_space<vmem>>, vector<288x128xbf16>
    %cst = arith.constant dense<0.000000e+00> : vector<64x128xf32>
    %2 = tpu.matmul %0, %1, %cst {dimension_numbers = #tpu.dot_dimension_numbers<[1], [0], [0], [1], [0, 0, 1, 1], [], []>} : vector<64x288xbf16>, vector<288x128xbf16>, vector<64x128xf32> -> vector<64x128xf32>
    %3 = vector.extract_strided_slice %2 {offsets = [0, 0], sizes = [16, 128], strides = [1, 1]} : vector<64x128xf32> to vector<16x128xf32>
    %4 = vector.extract_strided_slice %2 {offsets = [16, 0], sizes = [16, 128], strides = [1, 1]} : vector<64x128xf32> to vector<16x128xf32>
    %5 = arith.maximumf %3, %4 : vector<16x128xf32>
    %6 = vector.extract_strided_slice %2 {offsets = [32, 0], sizes = [16, 128], strides = [1, 1]} : vector<64x128xf32> to vector<16x128xf32>
    %7 = vector.extract_strided_slice %2 {offsets = [48, 0], sizes = [16, 128], strides = [1, 1]} : vector<64x128xf32> to vector<16x128xf32>
    %8 = arith.maximumf %6, %7 : vector<16x128xf32>
    %9 = arith.maximumf %5, %8 : vector<16x128xf32>
    %c0_3 = arith.constant 0 : index
    %c0_4 = arith.constant 0 : index
    %10 = vector.load %arg3[%c0_3, %c0_4] : memref<1x128xf32, #tpu.memory_space<vmem>>, vector<1x128xf32>
    %11 = vector.broadcast %10 : vector<1x128xf32> to vector<16x128xf32>
    %12 = arith.addf %9, %11 : vector<16x128xf32>
    %cst_5 = arith.constant 0.000000e+00 : f32
    %13 = vector.broadcast %cst_5 : f32 to vector<16x128xf32>
    %14 = arith.maximumf %12, %13 : vector<16x128xf32>
    %15 = arith.truncf %14 : vector<16x128xf32> to vector<16x128xbf16>
    %c0_6 = arith.constant 0 : index
    %c0_7 = arith.constant 0 : index
    %16 = vector.load %arg4[%c0_6, %c0_7] : memref<16x128xbf16, #tpu.memory_space<vmem>>, vector<16x128xbf16>
    tpu.vector_store %arg4[%c0_6, %c0_7], %15 {strides = array<i32>} : memref<16x128xbf16, #tpu.memory_space<vmem>>, vector<16x128xbf16>,
    return
  }
  func.func @transform_0(%arg0: i32) -> (i32, i32) {
    %c0_i32 = arith.constant 0 : i32
    %c0_i32_0 = arith.constant 0 : i32
    return %arg0, %c0_i32 : i32, i32
  }
  func.func @transform_1(%arg0: i32) -> (i32, i32) {
    %c0_i32 = arith.constant 0 : i32
    %c0_i32_0 = arith.constant 0 : i32
    %c0_i32_1 = arith.constant 0 : i32
    return %c0_i32, %c0_i32_0 : i32, i32
  }
  func.func @transform_2(%arg0: i32) -> (i32, i32) {
    %c0_i32 = arith.constant 0 : i32
    %c0_i32_0 = arith.constant 0 : i32
    %c0_i32_1 = arith.constant 0 : i32
    return %c0_i32, %c0_i32_0 : i32, i32
  }
  func.func @transform_3(%arg0: i32) -> (i32, i32) {
    %c0_i32 = arith.constant 0 : i32
    %c0_i32_0 = arith.constant 0 : i32
    return %arg0, %c0_i32 : i32, i32
  }
}

module attributes {stable_mosaic.version = 11 : i64} {
  func.func @fc_fused_kernel(%arg0: i32, %arg1: memref<2x1024xbf16, #tpu.memory_space<vmem>>, %arg2: memref<1024x512xbf16, #tpu.memory_space<vmem>>, %arg3: memref<1x512xf32, #tpu.memory_space<vmem>>, %arg4: memref<512x128xbf16, #tpu.memory_space<vmem>>, %arg5: memref<1x128xf32, #tpu.memory_space<vmem>>, %arg6: memref<2x128xf32, #tpu.memory_space<vmem>>) attributes {dimension_semantics = [#tpu.dimension_semantics<arbitrary>], iteration_bounds = array<i64: 1>, scalar_prefetch = 0 : i64, scratch_operands = 0 : i64, tpu.core_type = #tpu.core_type<tc>, window_params = [{pipeline_mode = #tpu.pipeline_mode<synchronous>, transform_indices = @transform_0, window_bounds = array<i64: 2, 1024>}, {pipeline_mode = #tpu.pipeline_mode<synchronous>, transform_indices = @transform_1, window_bounds = array<i64: 1024, 512>}, {pipeline_mode = #tpu.pipeline_mode<synchronous>, transform_indices = @transform_2, window_bounds = array<i64: 1, 512>}, {pipeline_mode = #tpu.pipeline_mode<synchronous>, transform_indices = @transform_3, window_bounds = array<i64: 512, 128>}, {pipeline_mode = #tpu.pipeline_mode<synchronous>, transform_indices = @transform_4, window_bounds = array<i64: 1, 128>}, {pipeline_mode = #tpu.pipeline_mode<synchronous>, transform_indices = @transform_5, window_bounds = array<i64: 2, 128>}]} {
    %c0 = arith.constant 0 : index
    %c0_0 = arith.constant 0 : index
    %0 = vector.load %arg1[%c0, %c0_0] : memref<2x1024xbf16, #tpu.memory_space<vmem>>, vector<2x1024xbf16>
    %c0_1 = arith.constant 0 : index
    %c0_2 = arith.constant 0 : index
    %1 = vector.load %arg2[%c0_1, %c0_2] : memref<1024x512xbf16, #tpu.memory_space<vmem>>, vector<1024x512xbf16>
    %cst = arith.constant dense<0.000000e+00> : vector<2x512xf32>
    %2 = tpu.matmul %0, %1, %cst {dimension_numbers = #tpu.dot_dimension_numbers<[1], [0], [0], [1], [0, 0, 1, 1], [], []>} : vector<2x1024xbf16>, vector<1024x512xbf16>, vector<2x512xf32> -> vector<2x512xf32>
    %c0_3 = arith.constant 0 : index
    %c0_4 = arith.constant 0 : index
    %3 = vector.load %arg3[%c0_3, %c0_4] : memref<1x512xf32, #tpu.memory_space<vmem>>, vector<1x512xf32>
    %4 = vector.broadcast %3 : vector<1x512xf32> to vector<2x512xf32>
    %5 = arith.addf %2, %4 : vector<2x512xf32>
    %cst_5 = arith.constant 0.000000e+00 : f32
    %6 = vector.broadcast %cst_5 : f32 to vector<2x512xf32>
    %7 = arith.maximumf %5, %6 : vector<2x512xf32>
    %8 = arith.truncf %7 : vector<2x512xf32> to vector<2x512xbf16>
    %c0_6 = arith.constant 0 : index
    %c0_7 = arith.constant 0 : index
    %9 = vector.load %arg4[%c0_6, %c0_7] : memref<512x128xbf16, #tpu.memory_space<vmem>>, vector<512x128xbf16>
    %cst_8 = arith.constant dense<0.000000e+00> : vector<2x128xf32>
    %10 = tpu.matmul %8, %9, %cst_8 {dimension_numbers = #tpu.dot_dimension_numbers<[1], [0], [0], [1], [0, 0, 1, 1], [], []>} : vector<2x512xbf16>, vector<512x128xbf16>, vector<2x128xf32> -> vector<2x128xf32>
    %c0_9 = arith.constant 0 : index
    %c0_10 = arith.constant 0 : index
    %11 = vector.load %arg5[%c0_9, %c0_10] : memref<1x128xf32, #tpu.memory_space<vmem>>, vector<1x128xf32>
    %12 = vector.broadcast %11 : vector<1x128xf32> to vector<2x128xf32>
    %13 = arith.addf %10, %12 : vector<2x128xf32>
    %c0_11 = arith.constant 0 : index
    %c0_12 = arith.constant 0 : index
    %14 = vector.load %arg6[%c0_11, %c0_12] : memref<2x128xf32, #tpu.memory_space<vmem>>, vector<2x128xf32>
    tpu.vector_store %arg6[%c0_11, %c0_12], %13 {strides = array<i32>} : memref<2x128xf32, #tpu.memory_space<vmem>>, vector<2x128xf32>,
    return
  }
  func.func @transform_0(%arg0: i32) -> (i32, i32) {
    %c0_i32 = arith.constant 0 : i32
    %c0_i32_0 = arith.constant 0 : i32
    %c0_i32_1 = arith.constant 0 : i32
    return %c0_i32, %c0_i32_0 : i32, i32
  }
  func.func @transform_1(%arg0: i32) -> (i32, i32) {
    %c0_i32 = arith.constant 0 : i32
    %c0_i32_0 = arith.constant 0 : i32
    %c0_i32_1 = arith.constant 0 : i32
    return %c0_i32, %c0_i32_0 : i32, i32
  }
  func.func @transform_2(%arg0: i32) -> (i32, i32) {
    %c0_i32 = arith.constant 0 : i32
    %c0_i32_0 = arith.constant 0 : i32
    %c0_i32_1 = arith.constant 0 : i32
    return %c0_i32, %c0_i32_0 : i32, i32
  }
  func.func @transform_3(%arg0: i32) -> (i32, i32) {
    %c0_i32 = arith.constant 0 : i32
    %c0_i32_0 = arith.constant 0 : i32
    %c0_i32_1 = arith.constant 0 : i32
    return %c0_i32, %c0_i32_0 : i32, i32
  }
  func.func @transform_4(%arg0: i32) -> (i32, i32) {
    %c0_i32 = arith.constant 0 : i32
    %c0_i32_0 = arith.constant 0 : i32
    %c0_i32_1 = arith.constant 0 : i32
    return %c0_i32, %c0_i32_0 : i32, i32
  }
  func.func @transform_5(%arg0: i32) -> (i32, i32) {
    %c0_i32 = arith.constant 0 : i32
    %c0_i32_0 = arith.constant 0 : i32
    %c0_i32_1 = arith.constant 0 : i32
    return %c0_i32, %c0_i32_0 : i32, i32
  }
}

</mosaic_0001>

<llo_original>
// kernel: net_forward.4
$region0: #{net_forward.4}
  #allocation0 [shape = 'u32[]', space=smem, size = 0x4, offset = 0x4, fixed_abs, tag = 'smem constant byte address 0x4 - core index']
  #allocation1 [shape = 'u32[144,128]{1,0:T(1,128)}', space=vmem, size = 0x12000, scoped, tag = 'internal scratch']
  %s0 = inlined_call_operand.vmem [shape: bf16[2048,27], index: 0, kind: input, shape index: {}]
  %s1 = inlined_call_operand.vmem [shape: bf16[27,128], index: 1, kind: input, shape index: {}]
  %s2 = inlined_call_operand.vmem [shape: f32[1,128], index: 2, kind: input, shape index: {}]
  %s3 = inlined_call_operand.vmem [shape: bf16[512,128], index: 3, kind: output, shape index: {}]
  %s4 = sld [smem:[#allocation0]]
  $region45: #{net_forward.4} parent=0
    _
  %s6 = ssub.s32 1, %s4
  %s7 = scalar_select 0, %s6, %s4
  loop: start=0, step=1, limit=4
  $region2: #{net_forward.4} parent=0 // loop_pre_header
    _
  $region3: #{net_forward.4} parent=0 // loop_header
    %s9 = sphi 0, %s13
    %p10 = scmp.ge.s32.totalorder %s9, 4
    %s19 = sphi 0, %s21
    %s22 = sphi 0, %s19
    %s23 = sphi 0, %s22
    %s39 = sphi 0, %s23
    %s43 = sphi 0, %s43
    %s45 = sphi 0, %s43
    %s46 = sphi 0, %s45
    %s60 = sphi 0, %s46
    %s64 = sphi 0, %s64
    %s66 = sphi 0, %s64
    %s67 = sphi 0, %s66
    %s81 = sphi 0, %s67
    %s87 = sphi 0, %s89
    %s90 = sphi 0, %s87
    %s91 = sphi 0, %s90
    %s107 = sphi 0, %s91
  $region4: #{net_forward.4} parent=0 // loop_header_branch
    %12 = sbr.rel (%p10) target = $region8
  $region5: #{net_forward.4} parent=0 // loop_body
    %s14 = ssub.s32 %s9, 1
    %s15 = ssub.s32 %s9, 2
    %s16 = sadd.s32 %s9, 1
    %s17 = ssub.s32 %s9, %s16
    %p18 = scmp.eq.s32.totalorder %s17, 0
    %s20 = sadd.s32 %s19, 1
    %s21 = scalar_select %p18, %s19, %s20
    %p24 = pneg %p18
    %p25 = scmp.eq.s32.totalorder %s9, 1
    %p26 = por %p24, %p25
    %p27 = scmp.ne.s32.totalorder %s19, %s22
    %p28 = scmp.eq.s32.totalorder %s9, 0
    %p29 = por %p27, %p28
    %p30 = scmp.ne.s32.totalorder %s19, %s22
    %p31 = scmp.eq.s32.totalorder %s14, 1
    %p32 = por %p30, %p31
    %p33 = scmp.ne.s32.totalorder %s22, %s23
    %p34 = scmp.eq.s32.totalorder %s14, 0
    %p35 = por %p33, %p34
    %p36 = scmp.ne.s32.totalorder %s22, %s23
    %p37 = scmp.eq.s32.totalorder %s15, 1
    %p38 = por %p36, %p37
    %p40 = scmp.ne.s32.totalorder %s23, %s39
    %p41 = scmp.eq.s32.totalorder %s15, 0
    %p42 = por %p40, %p41
    %s44 = sadd.s32 %s43, 1
    %p47 = scmp.eq.s32.totalorder %s9, 1
    %p48 = scmp.ne.s32.totalorder %s43, %s45
    %p49 = scmp.eq.s32.totalorder %s9, 0
    %p50 = por %p48, %p49
    %p51 = scmp.ne.s32.totalorder %s43, %s45
    %p52 = scmp.eq.s32.totalorder %s14, 1
    %p53 = por %p51, %p52
    %p54 = scmp.ne.s32.totalorder %s45, %s46
    %p55 = scmp.eq.s32.totalorder %s14, 0
    %p56 = por %p54, %p55
    %p57 = scmp.ne.s32.totalorder %s45, %s46
    %p58 = scmp.eq.s32.totalorder %s15, 1
    %p59 = por %p57, %p58
    %p61 = scmp.ne.s32.totalorder %s46, %s60
    %p62 = scmp.eq.s32.totalorder %s15, 0
    %p63 = por %p61, %p62
    %s65 = sadd.s32 %s64, 1
    %p68 = scmp.eq.s32.totalorder %s9, 1
    %p69 = scmp.ne.s32.totalorder %s64, %s66
    %p70 = scmp.eq.s32.totalorder %s9, 0
    %p71 = por %p69, %p70
    %p72 = scmp.ne.s32.totalorder %s64, %s66
    %p73 = scmp.eq.s32.totalorder %s14, 1
    %p74 = por %p72, %p73
    %p75 = scmp.ne.s32.totalorder %s66, %s67
    %p76 = scmp.eq.s32.totalorder %s14, 0
    %p77 = por %p75, %p76
    %p78 = scmp.ne.s32.totalorder %s66, %s67
    %p79 = scmp.eq.s32.totalorder %s15, 1
    %p80 = por %p78, %p79
    %p82 = scmp.ne.s32.totalorder %s67, %s81
    %p83 = scmp.eq.s32.totalorder %s15, 0
    %p84 = por %p82, %p83
    %s85 = ssub.s32 %s9, %s16
    %p86 = scmp.eq.s32.totalorder %s85, 0
    %s88 = sadd.s32 %s87, 1
    %s89 = scalar_select %p86, %s87, %s88
    %p92 = pneg %p86
    %p93 = scmp.eq.s32.totalorder %s9, 1
    %p94 = por %p92, %p93
    %p95 = scmp.ne.s32.totalorder %s87, %s90
    %p96 = scmp.eq.s32.totalorder %s9, 0
    %p97 = por %p95, %p96
    %p98 = scmp.ne.s32.totalorder %s87, %s90
    %p99 = scmp.eq.s32.totalorder %s14, 1
    %p100 = por %p98, %p99
    %p101 = scmp.ne.s32.totalorder %s90, %s91
    %p102 = scmp.eq.s32.totalorder %s14, 0
    %p103 = por %p101, %p102
    %p104 = scmp.ne.s32.totalorder %s90, %s91
    %p105 = scmp.eq.s32.totalorder %s15, 1
    %p106 = por %p104, %p105
    %p108 = scmp.ne.s32.totalorder %s91, %s107
    %p109 = scmp.eq.s32.totalorder %s15, 0
    %p110 = por %p108, %p109
    %p111 = scmp.le.s32.totalorder 1, %s9
    %p112 = scmp.lt.s32.totalorder %s9, 3
    %p113 = pnand %p111, %p112
    %p114 = pneg %p113
    // Predicated region
    $region9: #{net_forward.4} parent=5 // pred_check
      _
    $region10: #{net_forward.4} parent=5 // pred_check_branch
      %116 = sbr.rel (%p113) target = $region12
    $region11: #{net_forward.4} parent=5 // pred_region
      %s117 = ssub.s32 %s9, 1
      // Predicated region
      $region13: #{net_forward.4} parent=11 // pred_check
        %p118 = pneg %p56
      $region14: #{net_forward.4} parent=11 // pred_check_branch
        %120 = sbr.rel (%p118) target = $region16
      $region15: #{net_forward.4} parent=11 // pred_region
        _
      $region16: #{net_forward.4} parent=11 // pred_fallthru
        _
      // Predicated region
      $region17: #{net_forward.4} parent=11 // pred_check
        %p121 = pneg %p77
      $region18: #{net_forward.4} parent=11 // pred_check_branch
        %123 = sbr.rel (%p121) target = $region20
      $region19: #{net_forward.4} parent=11 // pred_region
        _
      $region20: #{net_forward.4} parent=11 // pred_fallthru
        _
    $region12: #{net_forward.4} parent=5 // pred_fallthru
      _
    %p124 = scmp.lt.s32.totalorder %s9, 2
    // Predicated region
    $region21: #{net_forward.4} parent=5 // pred_check
      %p125 = pneg %p124
    $region22: #{net_forward.4} parent=5 // pred_check_branch
      %127 = sbr.rel (%p125) target = $region24
    $region23: #{net_forward.4} parent=5 // pred_region
      // Predicated region
      $region25: #{net_forward.4} parent=23 // pred_check
        %p128 = pneg %p29
      $region26: #{net_forward.4} parent=23 // pred_check_branch
        %130 = sbr.rel (%p128) target = $region28
      $region27: #{net_forward.4} parent=23 // pred_region
        %s131 = smul.u32 128, %s9
        %p132 = scmp.lt.s32.totalorder %s131, 255
        %s133 = scalar_select %p132, %s131, 255
        %s134 = smul.addr %s133, 4
        %s135 = scalar_lea.vmem %s0, %s134
        %s136 = smul.u32 128, %s9
      $region28: #{net_forward.4} parent=23 // pred_fallthru
        _
    $region24: #{net_forward.4} parent=5 // pred_fallthru
      _
    %p137 = scmp.le.s32.totalorder 1, %s9
    %p138 = scmp.lt.s32.totalorder %s9, 3
    %p139 = pnand %p137, %p138
    %p140 = pneg %p139
    // Predicated region
    $region29: #{net_forward.4} parent=5 // pred_check
      _
    $region30: #{net_forward.4} parent=5 // pred_check_branch
      %142 = sbr.rel (%p139) target = $region32
    $region31: #{net_forward.4} parent=5 // pred_region
      %s143 = ssub.s32 %s9, 1
      %s144 = smul.u32 128, %s14
      %p145 = scmp.lt.s32.totalorder %s144, 255
      %s146 = scalar_select %p145, %s144, 255
      %s147 = smul.addr %s146, 4
      %s148 = scalar_lea.vmem %s0, %s147
      %p149 = pneg %p35
      %p150 = pneg %p32
      %p151 = pneg %p56
      %p152 = pneg %p53
      %p153 = pneg %p77
      %p154 = pneg %p74
      %p155 = pneg %p103
      %p156 = pneg %p100
      %s157 = smul.u32 32, %s14
      %p158 = scmp.lt.s32.totalorder %s157, 63
      %s159 = scalar_select %p158, %s157, 63
      %s160 = smul.addr %s159, 4
      %s161 = scalar_lea.vmem %s3, %s160
      %s162 = smul.u32 128, %s14
      %p163 = scmp.lt.s32.totalorder %s162, 255
      %s164 = scalar_select %p163, %s162, 255
      %s165 = smul.addr %s164, 4
      %s166 = scalar_lea.vmem %s0, %s165
      %s167 = smul.u32 128, %s14
      %s168 = smul.u32 32, %s14
      %p169 = scmp.lt.s32.totalorder %s168, 63
      %s170 = scalar_select %p169, %s168, 63
      %s171 = smul.addr %s170, 4
      %s172 = scalar_lea.vmem %s3, %s171
      %s173 = smul.u32 32, %s14
      %v175 = vld [vmem:[%s166] sm:$0xf]
      %v176 = vld [vmem:[%s166 + $0x4] sm:$0xf]
      %v177 = vld [vmem:[%s166 + $0x8] sm:$0xf]
      %v178 = vld [vmem:[%s166 + $0xc] sm:$0xf]
      %v179 = vld [vmem:[%s166 + $0x10] sm:$0xf]
      %v180 = vld [vmem:[%s166 + $0x14] sm:$0xf]
      %v181 = vld [vmem:[%s166 + $0x18] sm:$0xf]
      %v182 = vld [vmem:[%s166 + $0x1c] sm:$0xf]
      %v183 = vld [vmem:[%s166 + $0x20] sm:$0xf]
      %v184 = vld [vmem:[%s166 + $0x24] sm:$0xf]
      %v185 = vld [vmem:[%s166 + $0x28] sm:$0xf]
      %v186 = vld [vmem:[%s166 + $0x2c] sm:$0xf]
      %v187 = vld [vmem:[%s166 + $0x30] sm:$0xf]
      %v188 = vld [vmem:[%s166 + $0x34] sm:$0xf]
      %v189 = vld [vmem:[%s166 + $0x38] sm:$0xf]
      %v190 = vld [vmem:[%s166 + $0x3c] sm:$0xf]
      %v191 = vld [vmem:[%s166 + $0x40] sm:$0xf]
      %v192 = vld [vmem:[%s166 + $0x44] sm:$0xf]
      %v193 = vld [vmem:[%s166 + $0x48] sm:$0xf]
      %v194 = vld [vmem:[%s166 + $0x4c] sm:$0xf]
      %v195 = vld [vmem:[%s166 + $0x50] sm:$0xf]
      %v196 = vld [vmem:[%s166 + $0x54] sm:$0xf]
      %v197 = vld [vmem:[%s166 + $0x58] sm:$0xf]
      %v198 = vld [vmem:[%s166 + $0x5c] sm:$0xf]
      %v199 = vld [vmem:[%s166 + $0x60] sm:$0xf]
      %v200 = vld [vmem:[%s166 + $0x64] sm:$0xf]
      %v201 = vld [vmem:[%s166 + $0x68] sm:$0xf]
      %v202 = vld [vmem:[%s166 + $0x6c] sm:$0xf]
      %v203 = vld [vmem:[%s166 + $0x70] sm:$0xf]
      %v204 = vld [vmem:[%s166 + $0x74] sm:$0xf]
      %v205 = vld [vmem:[%s166 + $0x78] sm:$0xf]
      %v206 = vld [vmem:[%s166 + $0x7c] sm:$0xf]
      %v207 = vld [vmem:[%s166 + $0x80] sm:$0xf]
      %v208 = vld [vmem:[%s166 + $0x84] sm:$0xf]
      %v209 = vld [vmem:[%s166 + $0x88] sm:$0xf]
      %v210 = vld [vmem:[%s166 + $0x8c] sm:$0xf]
      %v211 = vld [vmem:[%s166 + $0x90] sm:$0xf]
      %v212 = vld [vmem:[%s166 + $0x94] sm:$0xf]
      %v213 = vld [vmem:[%s166 + $0x98] sm:$0xf]
      %v214 = vld [vmem:[%s166 + $0x9c] sm:$0xf]
      %v215 = vld [vmem:[%s166 + $0xa0] sm:$0xf]
      %v216 = vld [vmem:[%s166 + $0xa4] sm:$0xf]
      %v217 = vld [vmem:[%s166 + $0xa8] sm:$0xf]
      %v218 = vld [vmem:[%s166 + $0xac] sm:$0xf]
      %v219 = vld [vmem:[%s166 + $0xb0] sm:$0xf]
      %v220 = vld [vmem:[%s166 + $0xb4] sm:$0xf]
      %v221 = vld [vmem:[%s166 + $0xb8] sm:$0xf]
      %v222 = vld [vmem:[%s166 + $0xbc] sm:$0xf]
      %v223 = vld [vmem:[%s166 + $0xc0] sm:$0xf]
      %v224 = vld [vmem:[%s166 + $0xc4] sm:$0xf]
      %v225 = vld [vmem:[%s166 + $0xc8] sm:$0xf]
      %v226 = vld [vmem:[%s166 + $0xcc] sm:$0xf]
      %v227 = vld [vmem:[%s166 + $0xd0] sm:$0xf]
      %v228 = vld [vmem:[%s166 + $0xd4] sm:$0xf]
      %v229 = vld [vmem:[%s166 + $0xd8] sm:$0xf]
      %v230 = vld [vmem:[%s166 + $0xdc] sm:$0xf]
      %v231 = vld [vmem:[%s166 + $0xe0] sm:$0xf]
      %v232 = vld [vmem:[%s166 + $0xe4] sm:$0xf]
      %v233 = vld [vmem:[%s166 + $0xe8] sm:$0xf]
      %v234 = vld [vmem:[%s166 + $0xec] sm:$0xf]
      %v235 = vld [vmem:[%s166 + $0xf0] sm:$0xf]
      %v236 = vld [vmem:[%s166 + $0xf4] sm:$0xf]
      %v237 = vld [vmem:[%s166 + $0xf8] sm:$0xf]
      %v238 = vld [vmem:[%s166 + $0xfc] sm:$0xf]
      %v239 = vld [vmem:[%s166 + $0x100] sm:$0xf]
      %v240 = vld [vmem:[%s166 + $0x104] sm:$0xf]
      %v241 = vld [vmem:[%s166 + $0x108] sm:$0xf]
      %v242 = vld [vmem:[%s166 + $0x10c] sm:$0xf]
      %v243 = vld [vmem:[%s166 + $0x110] sm:$0xf]
      %v244 = vld [vmem:[%s166 + $0x114] sm:$0xf]
      %v245 = vld [vmem:[%s166 + $0x118] sm:$0xf]
      %v246 = vld [vmem:[%s166 + $0x11c] sm:$0xf]
      %v247 = vld [vmem:[%s166 + $0x120] sm:$0xf]
      %v248 = vld [vmem:[%s166 + $0x124] sm:$0xf]
      %v249 = vld [vmem:[%s166 + $0x128] sm:$0xf]
      %v250 = vld [vmem:[%s166 + $0x12c] sm:$0xf]
      %v251 = vld [vmem:[%s166 + $0x130] sm:$0xf]
      %v252 = vld [vmem:[%s166 + $0x134] sm:$0xf]
      %v253 = vld [vmem:[%s166 + $0x138] sm:$0xf]
      %v254 = vld [vmem:[%s166 + $0x13c] sm:$0xf]
      %v255 = vld [vmem:[%s166 + $0x140] sm:$0xf]
      %v256 = vld [vmem:[%s166 + $0x144] sm:$0xf]
      %v257 = vld [vmem:[%s166 + $0x148] sm:$0xf]
      %v258 = vld [vmem:[%s166 + $0x14c] sm:$0xf]
      %v259 = vld [vmem:[%s166 + $0x150] sm:$0xf]
      %v260 = vld [vmem:[%s166 + $0x154] sm:$0xf]
      %v261 = vld [vmem:[%s166 + $0x158] sm:$0xf]
      %v262 = vld [vmem:[%s166 + $0x15c] sm:$0xf]
      %v263 = vld [vmem:[%s166 + $0x160] sm:$0xf]
      %v264 = vld [vmem:[%s166 + $0x164] sm:$0xf]
      %v265 = vld [vmem:[%s166 + $0x168] sm:$0xf]
      %v266 = vld [vmem:[%s166 + $0x16c] sm:$0xf]
      %v267 = vld [vmem:[%s166 + $0x170] sm:$0xf]
      %v268 = vld [vmem:[%s166 + $0x174] sm:$0xf]
      %v269 = vld [vmem:[%s166 + $0x178] sm:$0xf]
      %v270 = vld [vmem:[%s166 + $0x17c] sm:$0xf]
      %v271 = vld [vmem:[%s166 + $0x180] sm:$0xf]
      %v272 = vld [vmem:[%s166 + $0x184] sm:$0xf]
      %v273 = vld [vmem:[%s166 + $0x188] sm:$0xf]
      %v274 = vld [vmem:[%s166 + $0x18c] sm:$0xf]
      %v275 = vld [vmem:[%s166 + $0x190] sm:$0xf]
      %v276 = vld [vmem:[%s166 + $0x194] sm:$0xf]
      %v277 = vld [vmem:[%s166 + $0x198] sm:$0xf]
      %v278 = vld [vmem:[%s166 + $0x19c] sm:$0xf]
      %v279 = vld [vmem:[%s166 + $0x1a0] sm:$0xf]
      %v280 = vld [vmem:[%s166 + $0x1a4] sm:$0xf]
      %v281 = vld [vmem:[%s166 + $0x1a8] sm:$0xf]
      %v282 = vld [vmem:[%s166 + $0x1ac] sm:$0xf]
      %v283 = vld [vmem:[%s166 + $0x1b0] sm:$0xf]
      %v284 = vld [vmem:[%s166 + $0x1b4] sm:$0xf]
      %v285 = vld [vmem:[%s166 + $0x1b8] sm:$0xf]
      %v286 = vld [vmem:[%s166 + $0x1bc] sm:$0xf]
      %v287 = vld [vmem:[%s166 + $0x1c0] sm:$0xf]
      %v288 = vld [vmem:[%s166 + $0x1c4] sm:$0xf]
      %v289 = vld [vmem:[%s166 + $0x1c8] sm:$0xf]
      %v290 = vld [vmem:[%s166 + $0x1cc] sm:$0xf]
      %v291 = vld [vmem:[%s166 + $0x1d0] sm:$0xf]
      %v292 = vld [vmem:[%s166 + $0x1d4] sm:$0xf]
      %v293 = vld [vmem:[%s166 + $0x1d8] sm:$0xf]
      %v294 = vld [vmem:[%s166 + $0x1dc] sm:$0xf]
      %v295 = vld [vmem:[%s166 + $0x1e0] sm:$0xf]
      %v296 = vld [vmem:[%s166 + $0x1e4] sm:$0xf]
      %v297 = vld [vmem:[%s166 + $0x1e8] sm:$0xf]
      %v298 = vld [vmem:[%s166 + $0x1ec] sm:$0xf]
      %v299 = vld [vmem:[%s166 + $0x1f0] sm:$0xf]
      %v300 = vld [vmem:[%s166 + $0x1f4] sm:$0xf]
      %v301 = vld [vmem:[%s166 + $0x1f8] sm:$0xf]
      %v302 = vld [vmem:[%s166 + $0x1fc] sm:$0xf]
      %v303 = vld [vmem:[%s1] sm:$0xf]
      %v304 = vld [vmem:[%s1 + $0x4] sm:$0xf]
      %v305 = vld [vmem:[%s1 + $0x8] sm:$0xf]
      %v306 = vld [vmem:[%s1 + $0xc] sm:$0x3]
      %v435 = vunpack.c.l.b16 %v175
      %v436 = vunpack.c.l.b16 %v176
      %v437 = vunpack.c.l.b16 %v177
      %v438 = vunpack.c.l.b16 %v178
      %v439 = vunpack.c.l.b16 %v179
      %v440 = vunpack.c.l.b16 %v180
      %v441 = vunpack.c.l.b16 %v181
      %v442 = vunpack.c.l.b16 %v182
      %v443 = vunpack.c.l.b16 %v183
      %v444 = vunpack.c.l.b16 %v184
      %v445 = vunpack.c.l.b16 %v185
      %v446 = vunpack.c.l.b16 %v186
      %v447 = vunpack.c.l.b16 %v187
      %v448 = vunpack.c.l.b16 %v188
      %v449 = vunpack.c.l.b16 %v189
      %v450 = vunpack.c.l.b16 %v190
      %v451 = vunpack.c.l.b16 %v191
      %v452 = vunpack.c.l.b16 %v192
      %v453 = vunpack.c.l.b16 %v193
      %v454 = vunpack.c.l.b16 %v194
      %v455 = vunpack.c.l.b16 %v195
      %v456 = vunpack.c.l.b16 %v196
      %v457 = vunpack.c.l.b16 %v197
      %v458 = vunpack.c.l.b16 %v198
      %v459 = vunpack.c.l.b16 %v199
      %v460 = vunpack.c.l.b16 %v200
      %v461 = vunpack.c.l.b16 %v201
      %v462 = vunpack.c.l.b16 %v202
      %v463 = vunpack.c.l.b16 %v203
      %v464 = vunpack.c.l.b16 %v204
      %v465 = vunpack.c.l.b16 %v205
      %v466 = vunpack.c.l.b16 %v206
      %v467 = vunpack.c.l.b16 %v207
      %v468 = vunpack.c.l.b16 %v208
      %v469 = vunpack.c.l.b16 %v209
      %v470 = vunpack.c.l.b16 %v210
      %v471 = vunpack.c.l.b16 %v211
      %v472 = vunpack.c.l.b16 %v212
      %v473 = vunpack.c.l.b16 %v213
      %v474 = vunpack.c.l.b16 %v214
      %v475 = vunpack.c.l.b16 %v215
      %v476 = vunpack.c.l.b16 %v216
      %v477 = vunpack.c.l.b16 %v217
      %v478 = vunpack.c.l.b16 %v218
      %v479 = vunpack.c.l.b16 %v219
      %v480 = vunpack.c.l.b16 %v220
      %v481 = vunpack.c.l.b16 %v221
      %v482 = vunpack.c.l.b16 %v222
      %v483 = vunpack.c.l.b16 %v223
      %v484 = vunpack.c.l.b16 %v224
      %v485 = vunpack.c.l.b16 %v225
      %v486 = vunpack.c.l.b16 %v226
      %v487 = vunpack.c.l.b16 %v227
      %v488 = vunpack.c.l.b16 %v228
      %v489 = vunpack.c.l.b16 %v229
      %v490 = vunpack.c.l.b16 %v230
      %v491 = vunpack.c.l.b16 %v231
      %v492 = vunpack.c.l.b16 %v232
      %v493 = vunpack.c.l.b16 %v233
      %v494 = vunpack.c.l.b16 %v234
      %v495 = vunpack.c.l.b16 %v235
      %v496 = vunpack.c.l.b16 %v236
      %v497 = vunpack.c.l.b16 %v237
      %v498 = vunpack.c.l.b16 %v238
      %v499 = vunpack.c.l.b16 %v239
      %v500 = vunpack.c.l.b16 %v240
      %v501 = vunpack.c.l.b16 %v241
      %v502 = vunpack.c.l.b16 %v242
      %v503 = vunpack.c.l.b16 %v243
      %v504 = vunpack.c.l.b16 %v244
      %v505 = vunpack.c.l.b16 %v245
      %v506 = vunpack.c.l.b16 %v246
      %v507 = vunpack.c.l.b16 %v247
      %v508 = vunpack.c.l.b16 %v248
      %v509 = vunpack.c.l.b16 %v249
      %v510 = vunpack.c.l.b16 %v250
      %v511 = vunpack.c.l.b16 %v251
      %v512 = vunpack.c.l.b16 %v252
      %v513 = vunpack.c.l.b16 %v253
      %v514 = vunpack.c.l.b16 %v254
      %v515 = vunpack.c.l.b16 %v255
      %v516 = vunpack.c.l.b16 %v256
      %v517 = vunpack.c.l.b16 %v257
      %v518 = vunpack.c.l.b16 %v258
      %v519 = vunpack.c.l.b16 %v259
      %v520 = vunpack.c.l.b16 %v260
      %v521 = vunpack.c.l.b16 %v261
      %v522 = vunpack.c.l.b16 %v262
      %v523 = vunpack.c.l.b16 %v263
      %v524 = vunpack.c.l.b16 %v264
      %v525 = vunpack.c.l.b16 %v265
      %v526 = vunpack.c.l.b16 %v266
      %v527 = vunpack.c.l.b16 %v267
      %v528 = vunpack.c.l.b16 %v268
      %v529 = vunpack.c.l.b16 %v269
      %v530 = vunpack.c.l.b16 %v270
      %v531 = vunpack.c.l.b16 %v271
      %v532 = vunpack.c.l.b16 %v272
      %v533 = vunpack.c.l.b16 %v273
      %v534 = vunpack.c.l.b16 %v274
      %v535 = vunpack.c.l.b16 %v275
      %v536 = vunpack.c.l.b16 %v276
      %v537 = vunpack.c.l.b16 %v277
      %v538 = vunpack.c.l.b16 %v278
      %v539 = vunpack.c.l.b16 %v279
      %v540 = vunpack.c.l.b16 %v280
      %v541 = vunpack.c.l.b16 %v281
      %v542 = vunpack.c.l.b16 %v282
      %v543 = vunpack.c.l.b16 %v283
      %v544 = vunpack.c.l.b16 %v284
      %v545 = vunpack.c.l.b16 %v285
      %v546 = vunpack.c.l.b16 %v286
      %v547 = vunpack.c.l.b16 %v287
      %v548 = vunpack.c.l.b16 %v288
      %v549 = vunpack.c.l.b16 %v289
      %v550 = vunpack.c.l.b16 %v290
      %v551 = vunpack.c.l.b16 %v291
      %v552 = vunpack.c.l.b16 %v292
      %v553 = vunpack.c.l.b16 %v293
      %v554 = vunpack.c.l.b16 %v294
      %v555 = vunpack.c.l.b16 %v295
      %v556 = vunpack.c.l.b16 %v296
      %v557 = vunpack.c.l.b16 %v297
      %v558 = vunpack.c.l.b16 %v298
      %v559 = vunpack.c.l.b16 %v299
      %v560 = vunpack.c.l.b16 %v300
      %v561 = vunpack.c.l.b16 %v301
      %v562 = vunpack.c.l.b16 %v302
      %v563 = vpack.c.b16 %v436, %v435
      %v564 = vpack.c.b16 %v438, %v437
      %v565 = vpack.c.b16 %v440, %v439
      %v566 = vpack.c.b16 %v442, %v441
      %v567 = vpack.c.b16 %v444, %v443
      %v568 = vpack.c.b16 %v446, %v445
      %v569 = vpack.c.b16 %v448, %v447
      %v570 = vpack.c.b16 %v450, %v449
      %v571 = vpack.c.b16 %v452, %v451
      %v572 = vpack.c.b16 %v454, %v453
      %v573 = vpack.c.b16 %v456, %v455
      %v574 = vpack.c.b16 %v458, %v457
      %v575 = vpack.c.b16 %v460, %v459
      %v576 = vpack.c.b16 %v462, %v461
      %v577 = vpack.c.b16 %v464, %v463
      %v578 = vpack.c.b16 %v466, %v465
      %v579 = vpack.c.b16 %v468, %v467
      %v580 = vpack.c.b16 %v470, %v469
      %v581 = vpack.c.b16 %v472, %v471
      %v582 = vpack.c.b16 %v474, %v473
      %v583 = vpack.c.b16 %v476, %v475
      %v584 = vpack.c.b16 %v478, %v477
      %v585 = vpack.c.b16 %v480, %v479
      %v586 = vpack.c.b16 %v482, %v481
      %v587 = vpack.c.b16 %v484, %v483
      %v588 = vpack.c.b16 %v486, %v485
      %v589 = vpack.c.b16 %v488, %v487
      %v590 = vpack.c.b16 %v490, %v489
      %v591 = vpack.c.b16 %v492, %v491
      %v592 = vpack.c.b16 %v494, %v493
      %v593 = vpack.c.b16 %v496, %v495
      %v594 = vpack.c.b16 %v498, %v497
      %v595 = vpack.c.b16 %v500, %v499
      %v596 = vpack.c.b16 %v502, %v501
      %v597 = vpack.c.b16 %v504, %v503
      %v598 = vpack.c.b16 %v506, %v505
      %v599 = vpack.c.b16 %v508, %v507
      %v600 = vpack.c.b16 %v510, %v509
      %v601 = vpack.c.b16 %v512, %v511
      %v602 = vpack.c.b16 %v514, %v513
      %v603 = vpack.c.b16 %v516, %v515
      %v604 = vpack.c.b16 %v518, %v517
      %v605 = vpack.c.b16 %v520, %v519
      %v606 = vpack.c.b16 %v522, %v521
      %v607 = vpack.c.b16 %v524, %v523
      %v608 = vpack.c.b16 %v526, %v525
      %v609 = vpack.c.b16 %v528, %v527
      %v610 = vpack.c.b16 %v530, %v529
      %v611 = vpack.c.b16 %v532, %v531
      %v612 = vpack.c.b16 %v534, %v533
      %v613 = vpack.c.b16 %v536, %v535
      %v614 = vpack.c.b16 %v538, %v537
      %v615 = vpack.c.b16 %v540, %v539
      %v616 = vpack.c.b16 %v542, %v541
      %v617 = vpack.c.b16 %v544, %v543
      %v618 = vpack.c.b16 %v546, %v545
      %v619 = vpack.c.b16 %v548, %v547
      %v620 = vpack.c.b16 %v550, %v549
      %v621 = vpack.c.b16 %v552, %v551
      %v622 = vpack.c.b16 %v554, %v553
      %v623 = vpack.c.b16 %v556, %v555
      %v624 = vpack.c.b16 %v558, %v557
      %v625 = vpack.c.b16 %v560, %v559
      %v626 = vpack.c.b16 %v562, %v561
      %v631 = vunpack.c.l.b16 %v303
      %v632 = vunpack.c.l.b16 %v304
      %v633 = vunpack.c.l.b16 %v305
      %v634 = vunpack.c.l.b16 %v306
      %v635 = vpack.c.b16 %v632, %v631
      %v636 = vpack.c.b16 %v634, %v633
      %vm638 = vcmask 220160
      %v640 = vsel %vm638, %v563, 0
      %v643 = vsel %vm638, %v564, 0
      %v646 = vsel %vm638, %v565, 0
      %v649 = vsel %vm638, %v566, 0
      %v652 = vsel %vm638, %v567, 0
      %v655 = vsel %vm638, %v568, 0
      %v658 = vsel %vm638, %v569, 0
      %v661 = vsel %vm638, %v570, 0
      %v664 = vsel %vm638, %v571, 0
      %v667 = vsel %vm638, %v572, 0
      %v670 = vsel %vm638, %v573, 0
      %v673 = vsel %vm638, %v574, 0
      %v676 = vsel %vm638, %v575, 0
      %v679 = vsel %vm638, %v576, 0
      %v682 = vsel %vm638, %v577, 0
      %v685 = vsel %vm638, %v578, 0
      %v688 = vsel %vm638, %v579, 0
      %v691 = vsel %vm638, %v580, 0
      %v694 = vsel %vm638, %v581, 0
      %v697 = vsel %vm638, %v582, 0
      %v700 = vsel %vm638, %v583, 0
      %v703 = vsel %vm638, %v584, 0
      %v706 = vsel %vm638, %v585, 0
      %v709 = vsel %vm638, %v586, 0
      %v712 = vsel %vm638, %v587, 0
      %v715 = vsel %vm638, %v588, 0
      %v718 = vsel %vm638, %v589, 0
      %v721 = vsel %vm638, %v590, 0
      %v724 = vsel %vm638, %v591, 0
      %v727 = vsel %vm638, %v592, 0
      %v730 = vsel %vm638, %v593, 0
      %v733 = vsel %vm638, %v594, 0
      %v736 = vsel %vm638, %v595, 0
      %v739 = vsel %vm638, %v596, 0
      %v742 = vsel %vm638, %v597, 0
      %v745 = vsel %vm638, %v598, 0
      %v748 = vsel %vm638, %v599, 0
      %v751 = vsel %vm638, %v600, 0
      %v754 = vsel %vm638, %v601, 0
      %v757 = vsel %vm638, %v602, 0
      %v760 = vsel %vm638, %v603, 0
      %v763 = vsel %vm638, %v604, 0
      %v766 = vsel %vm638, %v605, 0
      %v769 = vsel %vm638, %v606, 0
      %v772 = vsel %vm638, %v607, 0
      %v775 = vsel %vm638, %v608, 0
      %v778 = vsel %vm638, %v609, 0
      %v781 = vsel %vm638, %v610, 0
      %v784 = vsel %vm638, %v611, 0
      %v787 = vsel %vm638, %v612, 0
      %v790 = vsel %vm638, %v613, 0
      %v793 = vsel %vm638, %v614, 0
      %v796 = vsel %vm638, %v615, 0
      %v799 = vsel %vm638, %v616, 0
      %v802 = vsel %vm638, %v617, 0
      %v805 = vsel %vm638, %v618, 0
      %v808 = vsel %vm638, %v619, 0
      %v811 = vsel %vm638, %v620, 0
      %v814 = vsel %vm638, %v621, 0
      %v817 = vsel %vm638, %v622, 0
      %v820 = vsel %vm638, %v623, 0
      %v823 = vsel %vm638, %v624, 0
      %v826 = vsel %vm638, %v625, 0
      %v829 = vsel %vm638, %v626, 0
      %vm831 = vcmask 1044480
      %vm832 = vcmask 1045504
      %v833 = vsel %vm831, 4294967295, 65535
      %v834 = vsel %vm832, %v833, 0
      %v836 = vand.u32 %v636, %v834
      %838 = vmatprep.subr.bf16.mxu0 0
      %839 = vmatpush1.bf16.msra.mxu0 0
      %840 = vmatprep.subr.bf16.mxu0 0
      %841 = vmatpush1.bf16.msra.mxu0 0
      %842 = vmatprep.subr.bf16.mxu0 0
      %843 = vmatpush1.bf16.msra.mxu0 0
      %844 = vmatprep.subr.bf16.mxu0 0
      %845 = vmatpush1.bf16.msra.mxu0 0
      %846 = vmatprep.subr.bf16.mxu0 0
      %847 = vmatpush1.bf16.msra.mxu0 0
      %848 = vmatprep.subr.bf16.mxu0 0
      %849 = vmatpush1.bf16.msra.mxu0 0
      %850 = vmatprep.subr.bf16.mxu0 0
      %851 = vmatpush1.bf16.msra.mxu0 %v836
      %852 = vmatprep.subr.bf16.mxu0 0
      %853 = vmatpush1.bf16.msra.mxu0 %v635
      %854 = vmatprep.subr.bf16.mxu0 0
      %855 = vmatpush2.bf16.msra.mxu0 0
      %856 = vmatprep.subr.bf16.mxu0 0
      %857 = vmatpush2.bf16.msra.mxu0 0
      %858 = vmatprep.subr.bf16.mxu0 0
      %859 = vmatpush2.bf16.msra.mxu0 0
      %860 = vmatprep.subr.bf16.mxu0 0
      %861 = vmatpush2.bf16.msra.mxu0 0
      %862 = vmatprep.subr.bf16.mxu0 0
      %863 = vmatpush2.bf16.msra.mxu0 0
      %864 = vmatprep.subr.bf16.mxu0 0
      %865 = vmatpush2.bf16.msra.mxu0 0
      %866 = vmatprep.subr.bf16.mxu0 0
      %867 = vmatpush2.bf16.msra.mxu0 0
      %868 = vmatprep.subr.bf16.mxu0 0
      %869 = vmatpush2.bf16.msra.mxu0 0
      %870 = vmatprep.mubr.bf16.mxu0 0
      %871 = vmatmul.mubr.bf16.gmra.mxu0 %v640
      %v872 = vpop.f32.mrf.mxu0
      %v873 = vadd.f32 0.0, %v872
      %v874 = vpop.f32.mrf.mxu0
      %v875 = vpop.f32.mrf.mxu0
      %v876 = vadd.f32 0.0, %v875
      %v877 = vpop.f32.mrf.mxu0
      %878 = vmatprep.mubr.bf16.mxu0 0
      %879 = vmatmul.mubr.bf16.gmra.mxu0 %v643
      %v880 = vpop.f32.mrf.mxu0
      %v881 = vadd.f32 0.0, %v880
      %v882 = vpop.f32.mrf.mxu0
      %v883 = vpop.f32.mrf.mxu0
      %v884 = vadd.f32 0.0, %v883
      %v885 = vpop.f32.mrf.mxu0
      %886 = vmatprep.mubr.bf16.mxu0 0
      %887 = vmatmul.mubr.bf16.gmra.mxu0 %v646
      %v888 = vpop.f32.mrf.mxu0
      %v889 = vadd.f32 0.0, %v888
      %v890 = vpop.f32.mrf.mxu0
      %v891 = vpop.f32.mrf.mxu0
      %v892 = vadd.f32 0.0, %v891
      %v893 = vpop.f32.mrf.mxu0
      %894 = vmatprep.mubr.bf16.mxu0 0
      %895 = vmatmul.mubr.bf16.gmra.mxu0 %v649
      %v896 = vpop.f32.mrf.mxu0
      %v897 = vadd.f32 0.0, %v896
      %v898 = vpop.f32.mrf.mxu0
      %v899 = vpop.f32.mrf.mxu0
      %v900 = vadd.f32 0.0, %v899
      %v901 = vpop.f32.mrf.mxu0
      %902 = vmatprep.mubr.bf16.mxu0 0
      %903 = vmatmul.mubr.bf16.gmra.mxu0 %v652
      %v904 = vpop.f32.mrf.mxu0
      %v905 = vadd.f32 0.0, %v904
      %v906 = vpop.f32.mrf.mxu0
      %v907 = vpop.f32.mrf.mxu0
      %v908 = vadd.f32 0.0, %v907
      %v909 = vpop.f32.mrf.mxu0
      %910 = vmatprep.mubr.bf16.mxu0 0
      %911 = vmatmul.mubr.bf16.gmra.mxu0 %v655
      %v912 = vpop.f32.mrf.mxu0
      %v913 = vadd.f32 0.0, %v912
      %v914 = vpop.f32.mrf.mxu0
      %v915 = vpop.f32.mrf.mxu0
      %v916 = vadd.f32 0.0, %v915
      %v917 = vpop.f32.mrf.mxu0
      %918 = vmatprep.mubr.bf16.mxu0 0
      %919 = vmatmul.mubr.bf16.gmra.mxu0 %v658
      %v920 = vpop.f32.mrf.mxu0
      %v921 = vadd.f32 0.0, %v920
      %v922 = vpop.f32.mrf.mxu0
      %v923 = vpop.f32.mrf.mxu0
      %v924 = vadd.f32 0.0, %v923
      %v925 = vpop.f32.mrf.mxu0
      %926 = vmatprep.mubr.bf16.mxu0 0
      %927 = vmatmul.mubr.bf16.gmra.mxu0 %v661
      %v928 = vpop.f32.mrf.mxu0
      %v929 = vadd.f32 0.0, %v928
      %v930 = vpop.f32.mrf.mxu0
      %v931 = vpop.f32.mrf.mxu0
      %v932 = vadd.f32 0.0, %v931
      %v933 = vpop.f32.mrf.mxu0
      %934 = vmatprep.mubr.bf16.mxu0 0
      %935 = vmatmul.mubr.bf16.gmra.mxu0 %v664
      %v936 = vpop.f32.mrf.mxu0
      %v937 = vadd.f32 0.0, %v936
      %v938 = vpop.f32.mrf.mxu0
      %v939 = vpop.f32.mrf.mxu0
      %v940 = vadd.f32 0.0, %v939
      %v941 = vpop.f32.mrf.mxu0
      %942 = vmatprep.mubr.bf16.mxu0 0
      %943 = vmatmul.mubr.bf16.gmra.mxu0 %v667
      %v944 = vpop.f32.mrf.mxu0
      %v945 = vadd.f32 0.0, %v944
      %v946 = vpop.f32.mrf.mxu0
      %v947 = vpop.f32.mrf.mxu0
      %v948 = vadd.f32 0.0, %v947
      %v949 = vpop.f32.mrf.mxu0
      %950 = vmatprep.mubr.bf16.mxu0 0
      %951 = vmatmul.mubr.bf16.gmra.mxu0 %v670
      %v952 = vpop.f32.mrf.mxu0
      %v953 = vadd.f32 0.0, %v952
      %v954 = vpop.f32.mrf.mxu0
      %v955 = vpop.f32.mrf.mxu0
      %v956 = vadd.f32 0.0, %v955
      %v957 = vpop.f32.mrf.mxu0
      %958 = vmatprep.mubr.bf16.mxu0 0
      %959 = vmatmul.mubr.bf16.gmra.mxu0 %v673
      %v960 = vpop.f32.mrf.mxu0
      %v961 = vadd.f32 0.0, %v960
      %v962 = vpop.f32.mrf.mxu0
      %v963 = vpop.f32.mrf.mxu0
      %v964 = vadd.f32 0.0, %v963
      %v965 = vpop.f32.mrf.mxu0
      %966 = vmatprep.mubr.bf16.mxu0 0
      %967 = vmatmul.mubr.bf16.gmra.mxu0 %v676
      %v968 = vpop.f32.mrf.mxu0
      %v969 = vadd.f32 0.0, %v968
      %v970 = vpop.f32.mrf.mxu0
      %v971 = vpop.f32.mrf.mxu0
      %v972 = vadd.f32 0.0, %v971
      %v973 = vpop.f32.mrf.mxu0
      %974 = vmatprep.mubr.bf16.mxu0 0
      %975 = vmatmul.mubr.bf16.gmra.mxu0 %v679
      %v976 = vpop.f32.mrf.mxu0
      %v977 = vadd.f32 0.0, %v976
      %v978 = vpop.f32.mrf.mxu0
      %v979 = vpop.f32.mrf.mxu0
      %v980 = vadd.f32 0.0, %v979
      %v981 = vpop.f32.mrf.mxu0
      %982 = vmatprep.mubr.bf16.mxu0 0
      %983 = vmatmul.mubr.bf16.gmra.mxu0 %v682
      %v984 = vpop.f32.mrf.mxu0
      %v985 = vadd.f32 0.0, %v984
      %v986 = vpop.f32.mrf.mxu0
      %v987 = vpop.f32.mrf.mxu0
      %v988 = vadd.f32 0.0, %v987
      %v989 = vpop.f32.mrf.mxu0
      %990 = vmatprep.mubr.bf16.mxu0 0
      %991 = vmatmul.mubr.bf16.gmra.mxu0 %v685
      %v992 = vpop.f32.mrf.mxu0
      %v993 = vadd.f32 0.0, %v992
      %v994 = vpop.f32.mrf.mxu0
      %v995 = vpop.f32.mrf.mxu0
      %v996 = vadd.f32 0.0, %v995
      %v997 = vpop.f32.mrf.mxu0
      %998 = vmatprep.mubr.bf16.mxu0 0
      %999 = vmatmul.mubr.bf16.gmra.mxu0 %v688
      %v1000 = vpop.f32.mrf.mxu0
      %v1001 = vadd.f32 0.0, %v1000
      %v1002 = vpop.f32.mrf.mxu0
      %v1003 = vpop.f32.mrf.mxu0
      %v1004 = vadd.f32 0.0, %v1003
      %v1005 = vpop.f32.mrf.mxu0
      %1006 = vmatprep.mubr.bf16.mxu0 0
      %1007 = vmatmul.mubr.bf16.gmra.mxu0 %v691
      %v1008 = vpop.f32.mrf.mxu0
      %v1009 = vadd.f32 0.0, %v1008
      %v1010 = vpop.f32.mrf.mxu0
      %v1011 = vpop.f32.mrf.mxu0
      %v1012 = vadd.f32 0.0, %v1011
      %v1013 = vpop.f32.mrf.mxu0
      %1014 = vmatprep.mubr.bf16.mxu0 0
      %1015 = vmatmul.mubr.bf16.gmra.mxu0 %v694
      %v1016 = vpop.f32.mrf.mxu0
      %v1017 = vadd.f32 0.0, %v1016
      %v1018 = vpop.f32.mrf.mxu0
      %v1019 = vpop.f32.mrf.mxu0
      %v1020 = vadd.f32 0.0, %v1019
      %v1021 = vpop.f32.mrf.mxu0
      %1022 = vmatprep.mubr.bf16.mxu0 0
      %1023 = vmatmul.mubr.bf16.gmra.mxu0 %v697
      %v1024 = vpop.f32.mrf.mxu0
      %v1025 = vadd.f32 0.0, %v1024
      %v1026 = vpop.f32.mrf.mxu0
      %v1027 = vpop.f32.mrf.mxu0
      %v1028 = vadd.f32 0.0, %v1027
      %v1029 = vpop.f32.mrf.mxu0
      %1030 = vmatprep.mubr.bf16.mxu0 0
      %1031 = vmatmul.mubr.bf16.gmra.mxu0 %v700
      %v1032 = vpop.f32.mrf.mxu0
      %v1033 = vadd.f32 0.0, %v1032
      %v1034 = vpop.f32.mrf.mxu0
      %v1035 = vpop.f32.mrf.mxu0
      %v1036 = vadd.f32 0.0, %v1035
      %v1037 = vpop.f32.mrf.mxu0
      %1038 = vmatprep.mubr.bf16.mxu0 0
      %1039 = vmatmul.mubr.bf16.gmra.mxu0 %v703
      %v1040 = vpop.f32.mrf.mxu0
      %v1041 = vadd.f32 0.0, %v1040
      %v1042 = vpop.f32.mrf.mxu0
      %v1043 = vpop.f32.mrf.mxu0
      %v1044 = vadd.f32 0.0, %v1043
      %v1045 = vpop.f32.mrf.mxu0
      %1046 = vmatprep.mubr.bf16.mxu0 0
      %1047 = vmatmul.mubr.bf16.gmra.mxu0 %v706
      %v1048 = vpop.f32.mrf.mxu0
      %v1049 = vadd.f32 0.0, %v1048
      %v1050 = vpop.f32.mrf.mxu0
      %v1051 = vpop.f32.mrf.mxu0
      %v1052 = vadd.f32 0.0, %v1051
      %v1053 = vpop.f32.mrf.mxu0
      %1054 = vmatprep.mubr.bf16.mxu0 0
      %1055 = vmatmul.mubr.bf16.gmra.mxu0 %v709
      %v1056 = vpop.f32.mrf.mxu0
      %v1057 = vadd.f32 0.0, %v1056
      %v1058 = vpop.f32.mrf.mxu0
      %v1059 = vpop.f32.mrf.mxu0
      %v1060 = vadd.f32 0.0, %v1059
      %v1061 = vpop.f32.mrf.mxu0
      %1062 = vmatprep.mubr.bf16.mxu0 0
      %1063 = vmatmul.mubr.bf16.gmra.mxu0 %v712
      %v1064 = vpop.f32.mrf.mxu0
      %v1065 = vadd.f32 0.0, %v1064
      %v1066 = vpop.f32.mrf.mxu0
      %v1067 = vpop.f32.mrf.mxu0
      %v1068 = vadd.f32 0.0, %v1067
      %v1069 = vpop.f32.mrf.mxu0
      %1070 = vmatprep.mubr.bf16.mxu0 0
      %1071 = vmatmul.mubr.bf16.gmra.mxu0 %v715
      %v1072 = vpop.f32.mrf.mxu0
      %v1073 = vadd.f32 0.0, %v1072
      %v1074 = vpop.f32.mrf.mxu0
      %v1075 = vpop.f32.mrf.mxu0
      %v1076 = vadd.f32 0.0, %v1075
      %v1077 = vpop.f32.mrf.mxu0
      %1078 = vmatprep.mubr.bf16.mxu0 0
      %1079 = vmatmul.mubr.bf16.gmra.mxu0 %v718
      %v1080 = vpop.f32.mrf.mxu0
      %v1081 = vadd.f32 0.0, %v1080
      %v1082 = vpop.f32.mrf.mxu0
      %v1083 = vpop.f32.mrf.mxu0
      %v1084 = vadd.f32 0.0, %v1083
      %v1085 = vpop.f32.mrf.mxu0
      %1086 = vmatprep.mubr.bf16.mxu0 0
      %1087 = vmatmul.mubr.bf16.gmra.mxu0 %v721
      %v1088 = vpop.f32.mrf.mxu0
      %v1089 = vadd.f32 0.0, %v1088
      %v1090 = vpop.f32.mrf.mxu0
      %v1091 = vpop.f32.mrf.mxu0
      %v1092 = vadd.f32 0.0, %v1091
      %v1093 = vpop.f32.mrf.mxu0
      %1094 = vmatprep.mubr.bf16.mxu0 0
      %1095 = vmatmul.mubr.bf16.gmra.mxu0 %v724
      %v1096 = vpop.f32.mrf.mxu0
      %v1097 = vadd.f32 0.0, %v1096
      %v1098 = vpop.f32.mrf.mxu0
      %v1099 = vpop.f32.mrf.mxu0
      %v1100 = vadd.f32 0.0, %v1099
      %v1101 = vpop.f32.mrf.mxu0
      %1102 = vmatprep.mubr.bf16.mxu0 0
      %1103 = vmatmul.mubr.bf16.gmra.mxu0 %v727
      %v1104 = vpop.f32.mrf.mxu0
      %v1105 = vadd.f32 0.0, %v1104
      %v1106 = vpop.f32.mrf.mxu0
      %v1107 = vpop.f32.mrf.mxu0
      %v1108 = vadd.f32 0.0, %v1107
      %v1109 = vpop.f32.mrf.mxu0
      %1110 = vmatprep.mubr.bf16.mxu0 0
      %1111 = vmatmul.mubr.bf16.gmra.mxu0 %v730
      %v1112 = vpop.f32.mrf.mxu0
      %v1113 = vadd.f32 0.0, %v1112
      %v1114 = vpop.f32.mrf.mxu0
      %v1115 = vpop.f32.mrf.mxu0
      %v1116 = vadd.f32 0.0, %v1115
      %v1117 = vpop.f32.mrf.mxu0
      %1118 = vmatprep.mubr.bf16.mxu0 0
      %1119 = vmatmul.mubr.bf16.gmra.mxu0 %v733
      %v1120 = vpop.f32.mrf.mxu0
      %v1121 = vadd.f32 0.0, %v1120
      %v1122 = vpop.f32.mrf.mxu0
      %v1123 = vpop.f32.mrf.mxu0
      %v1124 = vadd.f32 0.0, %v1123
      %v1125 = vpop.f32.mrf.mxu0
      %1126 = vmatprep.mubr.bf16.mxu0 0
      %1127 = vmatmul.mubr.bf16.gmra.mxu0 %v736
      %v1128 = vpop.f32.mrf.mxu0
      %v1129 = vadd.f32 0.0, %v1128
      %v1130 = vpop.f32.mrf.mxu0
      %v1131 = vpop.f32.mrf.mxu0
      %v1132 = vadd.f32 0.0, %v1131
      %v1133 = vpop.f32.mrf.mxu0
      %1134 = vmatprep.mubr.bf16.mxu0 0
      %1135 = vmatmul.mubr.bf16.gmra.mxu0 %v739
      %v1136 = vpop.f32.mrf.mxu0
      %v1137 = vadd.f32 0.0, %v1136
      %v1138 = vpop.f32.mrf.mxu0
      %v1139 = vpop.f32.mrf.mxu0
      %v1140 = vadd.f32 0.0, %v1139
      %v1141 = vpop.f32.mrf.mxu0
      %1142 = vmatprep.mubr.bf16.mxu0 0
      %1143 = vmatmul.mubr.bf16.gmra.mxu0 %v742
      %v1144 = vpop.f32.mrf.mxu0
      %v1145 = vadd.f32 0.0, %v1144
      %v1146 = vpop.f32.mrf.mxu0
      %v1147 = vpop.f32.mrf.mxu0
      %v1148 = vadd.f32 0.0, %v1147
      %v1149 = vpop.f32.mrf.mxu0
      %1150 = vmatprep.mubr.bf16.mxu0 0
      %1151 = vmatmul.mubr.bf16.gmra.mxu0 %v745
      %v1152 = vpop.f32.mrf.mxu0
      %v1153 = vadd.f32 0.0, %v1152
      %v1154 = vpop.f32.mrf.mxu0
      %v1155 = vpop.f32.mrf.mxu0
      %v1156 = vadd.f32 0.0, %v1155
      %v1157 = vpop.f32.mrf.mxu0
      %1158 = vmatprep.mubr.bf16.mxu0 0
      %1159 = vmatmul.mubr.bf16.gmra.mxu0 %v748
      %v1160 = vpop.f32.mrf.mxu0
      %v1161 = vadd.f32 0.0, %v1160
      %v1162 = vpop.f32.mrf.mxu0
      %v1163 = vpop.f32.mrf.mxu0
      %v1164 = vadd.f32 0.0, %v1163
      %v1165 = vpop.f32.mrf.mxu0
      %1166 = vmatprep.mubr.bf16.mxu0 0
      %1167 = vmatmul.mubr.bf16.gmra.mxu0 %v751
      %v1168 = vpop.f32.mrf.mxu0
      %v1169 = vadd.f32 0.0, %v1168
      %v1170 = vpop.f32.mrf.mxu0
      %v1171 = vpop.f32.mrf.mxu0
      %v1172 = vadd.f32 0.0, %v1171
      %v1173 = vpop.f32.mrf.mxu0
      %1174 = vmatprep.mubr.bf16.mxu0 0
      %1175 = vmatmul.mubr.bf16.gmra.mxu0 %v754
      %v1176 = vpop.f32.mrf.mxu0
      %v1177 = vadd.f32 0.0, %v1176
      %v1178 = vpop.f32.mrf.mxu0
      %v1179 = vpop.f32.mrf.mxu0
      %v1180 = vadd.f32 0.0, %v1179
      %v1181 = vpop.f32.mrf.mxu0
      %1182 = vmatprep.mubr.bf16.mxu0 0
      %1183 = vmatmul.mubr.bf16.gmra.mxu0 %v757
      %v1184 = vpop.f32.mrf.mxu0
      %v1185 = vadd.f32 0.0, %v1184
      %v1186 = vpop.f32.mrf.mxu0
      %v1187 = vpop.f32.mrf.mxu0
      %v1188 = vadd.f32 0.0, %v1187
      %v1189 = vpop.f32.mrf.mxu0
      %1190 = vmatprep.mubr.bf16.mxu0 0
      %1191 = vmatmul.mubr.bf16.gmra.mxu0 %v760
      %v1192 = vpop.f32.mrf.mxu0
      %v1193 = vadd.f32 0.0, %v1192
      %v1194 = vpop.f32.mrf.mxu0
      %v1195 = vpop.f32.mrf.mxu0
      %v1196 = vadd.f32 0.0, %v1195
      %v1197 = vpop.f32.mrf.mxu0
      %1198 = vmatprep.mubr.bf16.mxu0 0
      %1199 = vmatmul.mubr.bf16.gmra.mxu0 %v763
      %v1200 = vpop.f32.mrf.mxu0
      %v1201 = vadd.f32 0.0, %v1200
      %v1202 = vpop.f32.mrf.mxu0
      %v1203 = vpop.f32.mrf.mxu0
      %v1204 = vadd.f32 0.0, %v1203
      %v1205 = vpop.f32.mrf.mxu0
      %1206 = vmatprep.mubr.bf16.mxu0 0
      %1207 = vmatmul.mubr.bf16.gmra.mxu0 %v766
      %v1208 = vpop.f32.mrf.mxu0
      %v1209 = vadd.f32 0.0, %v1208
      %v1210 = vpop.f32.mrf.mxu0
      %v1211 = vpop.f32.mrf.mxu0
      %v1212 = vadd.f32 0.0, %v1211
      %v1213 = vpop.f32.mrf.mxu0
      %1214 = vmatprep.mubr.bf16.mxu0 0
      %1215 = vmatmul.mubr.bf16.gmra.mxu0 %v769
      %v1216 = vpop.f32.mrf.mxu0
      %v1217 = vadd.f32 0.0, %v1216
      %v1218 = vpop.f32.mrf.mxu0
      %v1219 = vpop.f32.mrf.mxu0
      %v1220 = vadd.f32 0.0, %v1219
      %v1221 = vpop.f32.mrf.mxu0
      %1222 = vmatprep.mubr.bf16.mxu0 0
      %1223 = vmatmul.mubr.bf16.gmra.mxu0 %v772
      %v1224 = vpop.f32.mrf.mxu0
      %v1225 = vadd.f32 0.0, %v1224
      %v1226 = vpop.f32.mrf.mxu0
      %v1227 = vpop.f32.mrf.mxu0
      %v1228 = vadd.f32 0.0, %v1227
      %v1229 = vpop.f32.mrf.mxu0
      %1230 = vmatprep.mubr.bf16.mxu0 0
      %1231 = vmatmul.mubr.bf16.gmra.mxu0 %v775
      %v1232 = vpop.f32.mrf.mxu0
      %v1233 = vadd.f32 0.0, %v1232
      %v1234 = vpop.f32.mrf.mxu0
      %v1235 = vpop.f32.mrf.mxu0
      %v1236 = vadd.f32 0.0, %v1235
      %v1237 = vpop.f32.mrf.mxu0
      %1238 = vmatprep.mubr.bf16.mxu0 0
      %1239 = vmatmul.mubr.bf16.gmra.mxu0 %v778
      %v1240 = vpop.f32.mrf.mxu0
      %v1241 = vadd.f32 0.0, %v1240
      %v1242 = vpop.f32.mrf.mxu0
      %v1243 = vpop.f32.mrf.mxu0
      %v1244 = vadd.f32 0.0, %v1243
      %v1245 = vpop.f32.mrf.mxu0
      %1246 = vmatprep.mubr.bf16.mxu0 0
      %1247 = vmatmul.mubr.bf16.gmra.mxu0 %v781
      %v1248 = vpop.f32.mrf.mxu0
      %v1249 = vadd.f32 0.0, %v1248
      %v1250 = vpop.f32.mrf.mxu0
      %v1251 = vpop.f32.mrf.mxu0
      %v1252 = vadd.f32 0.0, %v1251
      %v1253 = vpop.f32.mrf.mxu0
      %1254 = vmatprep.mubr.bf16.mxu0 0
      %1255 = vmatmul.mubr.bf16.gmra.mxu0 %v784
      %v1256 = vpop.f32.mrf.mxu0
      %v1257 = vadd.f32 0.0, %v1256
      %v1258 = vpop.f32.mrf.mxu0
      %v1259 = vpop.f32.mrf.mxu0
      %v1260 = vadd.f32 0.0, %v1259
      %v1261 = vpop.f32.mrf.mxu0
      %1262 = vmatprep.mubr.bf16.mxu0 0
      %1263 = vmatmul.mubr.bf16.gmra.mxu0 %v787
      %v1264 = vpop.f32.mrf.mxu0
      %v1265 = vadd.f32 0.0, %v1264
      %v1266 = vpop.f32.mrf.mxu0
      %v1267 = vpop.f32.mrf.mxu0
      %v1268 = vadd.f32 0.0, %v1267
      %v1269 = vpop.f32.mrf.mxu0
      %1270 = vmatprep.mubr.bf16.mxu0 0
      %1271 = vmatmul.mubr.bf16.gmra.mxu0 %v790
      %v1272 = vpop.f32.mrf.mxu0
      %v1273 = vadd.f32 0.0, %v1272
      %v1274 = vpop.f32.mrf.mxu0
      %v1275 = vpop.f32.mrf.mxu0
      %v1276 = vadd.f32 0.0, %v1275
      %v1277 = vpop.f32.mrf.mxu0
      %1278 = vmatprep.mubr.bf16.mxu0 0
      %1279 = vmatmul.mubr.bf16.gmra.mxu0 %v793
      %v1280 = vpop.f32.mrf.mxu0
      %v1281 = vadd.f32 0.0, %v1280
      %v1282 = vpop.f32.mrf.mxu0
      %v1283 = vpop.f32.mrf.mxu0
      %v1284 = vadd.f32 0.0, %v1283
      %v1285 = vpop.f32.mrf.mxu0
      %1286 = vmatprep.mubr.bf16.mxu0 0
      %1287 = vmatmul.mubr.bf16.gmra.mxu0 %v796
      %v1288 = vpop.f32.mrf.mxu0
      %v1289 = vadd.f32 0.0, %v1288
      %v1290 = vpop.f32.mrf.mxu0
      %v1291 = vpop.f32.mrf.mxu0
      %v1292 = vadd.f32 0.0, %v1291
      %v1293 = vpop.f32.mrf.mxu0
      %1294 = vmatprep.mubr.bf16.mxu0 0
      %1295 = vmatmul.mubr.bf16.gmra.mxu0 %v799
      %v1296 = vpop.f32.mrf.mxu0
      %v1297 = vadd.f32 0.0, %v1296
      %v1298 = vpop.f32.mrf.mxu0
      %v1299 = vpop.f32.mrf.mxu0
      %v1300 = vadd.f32 0.0, %v1299
      %v1301 = vpop.f32.mrf.mxu0
      %1302 = vmatprep.mubr.bf16.mxu0 0
      %1303 = vmatmul.mubr.bf16.gmra.mxu0 %v802
      %v1304 = vpop.f32.mrf.mxu0
      %v1305 = vadd.f32 0.0, %v1304
      %v1306 = vpop.f32.mrf.mxu0
      %v1307 = vpop.f32.mrf.mxu0
      %v1308 = vadd.f32 0.0, %v1307
      %v1309 = vpop.f32.mrf.mxu0
      %1310 = vmatprep.mubr.bf16.mxu0 0
      %1311 = vmatmul.mubr.bf16.gmra.mxu0 %v805
      %v1312 = vpop.f32.mrf.mxu0
      %v1313 = vadd.f32 0.0, %v1312
      %v1314 = vpop.f32.mrf.mxu0
      %v1315 = vpop.f32.mrf.mxu0
      %v1316 = vadd.f32 0.0, %v1315
      %v1317 = vpop.f32.mrf.mxu0
      %1318 = vmatprep.mubr.bf16.mxu0 0
      %1319 = vmatmul.mubr.bf16.gmra.mxu0 %v808
      %v1320 = vpop.f32.mrf.mxu0
      %v1321 = vadd.f32 0.0, %v1320
      %v1322 = vpop.f32.mrf.mxu0
      %v1323 = vpop.f32.mrf.mxu0
      %v1324 = vadd.f32 0.0, %v1323
      %v1325 = vpop.f32.mrf.mxu0
      %1326 = vmatprep.mubr.bf16.mxu0 0
      %1327 = vmatmul.mubr.bf16.gmra.mxu0 %v811
      %v1328 = vpop.f32.mrf.mxu0
      %v1329 = vadd.f32 0.0, %v1328
      %v1330 = vpop.f32.mrf.mxu0
      %v1331 = vpop.f32.mrf.mxu0
      %v1332 = vadd.f32 0.0, %v1331
      %v1333 = vpop.f32.mrf.mxu0
      %1334 = vmatprep.mubr.bf16.mxu0 0
      %1335 = vmatmul.mubr.bf16.gmra.mxu0 %v814
      %v1336 = vpop.f32.mrf.mxu0
      %v1337 = vadd.f32 0.0, %v1336
      %v1338 = vpop.f32.mrf.mxu0
      %v1339 = vpop.f32.mrf.mxu0
      %v1340 = vadd.f32 0.0, %v1339
      %v1341 = vpop.f32.mrf.mxu0
      %1342 = vmatprep.mubr.bf16.mxu0 0
      %1343 = vmatmul.mubr.bf16.gmra.mxu0 %v817
      %v1344 = vpop.f32.mrf.mxu0
      %v1345 = vadd.f32 0.0, %v1344
      %v1346 = vpop.f32.mrf.mxu0
      %v1347 = vpop.f32.mrf.mxu0
      %v1348 = vadd.f32 0.0, %v1347
      %v1349 = vpop.f32.mrf.mxu0
      %1350 = vmatprep.mubr.bf16.mxu0 0
      %1351 = vmatmul.mubr.bf16.gmra.mxu0 %v820
      %v1352 = vpop.f32.mrf.mxu0
      %v1353 = vadd.f32 0.0, %v1352
      %v1354 = vpop.f32.mrf.mxu0
      %v1355 = vpop.f32.mrf.mxu0
      %v1356 = vadd.f32 0.0, %v1355
      %v1357 = vpop.f32.mrf.mxu0
      %1358 = vmatprep.mubr.bf16.mxu0 0
      %1359 = vmatmul.mubr.bf16.gmra.mxu0 %v823
      %v1360 = vpop.f32.mrf.mxu0
      %v1361 = vadd.f32 0.0, %v1360
      %v1362 = vpop.f32.mrf.mxu0
      %v1363 = vpop.f32.mrf.mxu0
      %v1364 = vadd.f32 0.0, %v1363
      %v1365 = vpop.f32.mrf.mxu0
      %1366 = vmatprep.mubr.bf16.mxu0 0
      %1367 = vmatmul.mubr.bf16.gmra.mxu0 %v826
      %v1368 = vpop.f32.mrf.mxu0
      %v1369 = vadd.f32 0.0, %v1368
      %v1370 = vpop.f32.mrf.mxu0
      %v1371 = vpop.f32.mrf.mxu0
      %v1372 = vadd.f32 0.0, %v1371
      %v1373 = vpop.f32.mrf.mxu0
      %1374 = vmatprep.mubr.bf16.mxu0 0
      %1375 = vmatmul.mubr.bf16.gmra.mxu0 %v829
      %v1376 = vpop.f32.mrf.mxu0
      %v1377 = vadd.f32 0.0, %v1376
      %v1378 = vpop.f32.mrf.mxu0
      %v1379 = vpop.f32.mrf.mxu0
      %v1380 = vadd.f32 0.0, %v1379
      %v1381 = vpop.f32.mrf.mxu0
      %1382 = vdwg.mxu0
      %v1383 = vmax.f32 %v873, %v1001
      %v1384 = vmax.f32 %v876, %v1004
      %v1385 = vmax.f32 %v881, %v1009
      %v1386 = vmax.f32 %v884, %v1012
      %v1387 = vmax.f32 %v889, %v1017
      %v1388 = vmax.f32 %v892, %v1020
      %v1389 = vmax.f32 %v897, %v1025
      %v1390 = vmax.f32 %v900, %v1028
      %v1391 = vmax.f32 %v905, %v1033
      %v1392 = vmax.f32 %v908, %v1036
      %v1393 = vmax.f32 %v913, %v1041
      %v1394 = vmax.f32 %v916, %v1044
      %v1395 = vmax.f32 %v921, %v1049
      %v1396 = vmax.f32 %v924, %v1052
      %v1397 = vmax.f32 %v929, %v1057
      %v1398 = vmax.f32 %v932, %v1060
      %v1399 = vmax.f32 %v937, %v1065
      %v1400 = vmax.f32 %v940, %v1068
      %v1401 = vmax.f32 %v945, %v1073
      %v1402 = vmax.f32 %v948, %v1076
      %v1403 = vmax.f32 %v953, %v1081
      %v1404 = vmax.f32 %v956, %v1084
      %v1405 = vmax.f32 %v961, %v1089
      %v1406 = vmax.f32 %v964, %v1092
      %v1407 = vmax.f32 %v969, %v1097
      %v1408 = vmax.f32 %v972, %v1100
      %v1409 = vmax.f32 %v977, %v1105
      %v1410 = vmax.f32 %v980, %v1108
      %v1411 = vmax.f32 %v985, %v1113
      %v1412 = vmax.f32 %v988, %v1116
      %v1413 = vmax.f32 %v993, %v1121
      %v1414 = vmax.f32 %v996, %v1124
      %v1415 = vmax.f32 %v1129, %v1257
      %v1416 = vmax.f32 %v1132, %v1260
      %v1417 = vmax.f32 %v1137, %v1265
      %v1418 = vmax.f32 %v1140, %v1268
      %v1419 = vmax.f32 %v1145, %v1273
      %v1420 = vmax.f32 %v1148, %v1276
      %v1421 = vmax.f32 %v1153, %v1281
      %v1422 = vmax.f32 %v1156, %v1284
      %v1423 = vmax.f32 %v1161, %v1289
      %v1424 = vmax.f32 %v1164, %v1292
      %v1425 = vmax.f32 %v1169, %v1297
      %v1426 = vmax.f32 %v1172, %v1300
      %v1427 = vmax.f32 %v1177, %v1305
      %v1428 = vmax.f32 %v1180, %v1308
      %v1429 = vmax.f32 %v1185, %v1313
      %v1430 = vmax.f32 %v1188, %v1316
      %v1431 = vmax.f32 %v1193, %v1321
      %v1432 = vmax.f32 %v1196, %v1324
      %v1433 = vmax.f32 %v1201, %v1329
      %v1434 = vmax.f32 %v1204, %v1332
      %v1435 = vmax.f32 %v1209, %v1337
      %v1436 = vmax.f32 %v1212, %v1340
      %v1437 = vmax.f32 %v1217, %v1345
      %v1438 = vmax.f32 %v1220, %v1348
      %v1439 = vmax.f32 %v1225, %v1353
      %v1440 = vmax.f32 %v1228, %v1356
      %v1441 = vmax.f32 %v1233, %v1361
      %v1442 = vmax.f32 %v1236, %v1364
      %v1443 = vmax.f32 %v1241, %v1369
      %v1444 = vmax.f32 %v1244, %v1372
      %v1445 = vmax.f32 %v1249, %v1377
      %v1446 = vmax.f32 %v1252, %v1380
      %v1447 = vmax.f32 %v1383, %v1415
      %v1448 = vmax.f32 %v1384, %v1416
      %v1449 = vmax.f32 %v1385, %v1417
      %v1450 = vmax.f32 %v1386, %v1418
      %v1451 = vmax.f32 %v1387, %v1419
      %v1452 = vmax.f32 %v1388, %v1420
      %v1453 = vmax.f32 %v1389, %v1421
      %v1454 = vmax.f32 %v1390, %v1422
      %v1455 = vmax.f32 %v1391, %v1423
      %v1456 = vmax.f32 %v1392, %v1424
      %v1457 = vmax.f32 %v1393, %v1425
      %v1458 = vmax.f32 %v1394, %v1426
      %v1459 = vmax.f32 %v1395, %v1427
      %v1460 = vmax.f32 %v1396, %v1428
      %v1461 = vmax.f32 %v1397, %v1429
      %v1462 = vmax.f32 %v1398, %v1430
      %v1463 = vmax.f32 %v1399, %v1431
      %v1464 = vmax.f32 %v1400, %v1432
      %v1465 = vmax.f32 %v1401, %v1433
      %v1466 = vmax.f32 %v1402, %v1434
      %v1467 = vmax.f32 %v1403, %v1435
      %v1468 = vmax.f32 %v1404, %v1436
      %v1469 = vmax.f32 %v1405, %v1437
      %v1470 = vmax.f32 %v1406, %v1438
      %v1471 = vmax.f32 %v1407, %v1439
      %v1472 = vmax.f32 %v1408, %v1440
      %v1473 = vmax.f32 %v1409, %v1441
      %v1474 = vmax.f32 %v1410, %v1442
      %v1475 = vmax.f32 %v1411, %v1443
      %v1476 = vmax.f32 %v1412, %v1444
      %v1477 = vmax.f32 %v1413, %v1445
      %v1478 = vmax.f32 %v1414, %v1446
      %v1479 = vld [vmem:[%s2] sm:$0x1]
      %v1481 = vlaneseq
      %v1482 = vshrl.u32 %v1481, 7
      %v1483 = vsub.s32 0, %v1482
      %v1484 = vrot.slane %v1479, %v1483
      %v1486 = vadd.f32 %v1447, %v1484
      %v1487 = vadd.f32 %v1448, %v1484
      %v1488 = vadd.f32 %v1449, %v1484
      %v1489 = vadd.f32 %v1450, %v1484
      %v1490 = vadd.f32 %v1451, %v1484
      %v1491 = vadd.f32 %v1452, %v1484
      %v1492 = vadd.f32 %v1453, %v1484
      %v1493 = vadd.f32 %v1454, %v1484
      %v1494 = vadd.f32 %v1455, %v1484
      %v1495 = vadd.f32 %v1456, %v1484
      %v1496 = vadd.f32 %v1457, %v1484
      %v1497 = vadd.f32 %v1458, %v1484
      %v1498 = vadd.f32 %v1459, %v1484
      %v1499 = vadd.f32 %v1460, %v1484
      %v1500 = vadd.f32 %v1461, %v1484
      %v1501 = vadd.f32 %v1462, %v1484
      %v1502 = vadd.f32 %v1463, %v1484
      %v1503 = vadd.f32 %v1464, %v1484
      %v1504 = vadd.f32 %v1465, %v1484
      %v1505 = vadd.f32 %v1466, %v1484
      %v1506 = vadd.f32 %v1467, %v1484
      %v1507 = vadd.f32 %v1468, %v1484
      %v1508 = vadd.f32 %v1469, %v1484
      %v1509 = vadd.f32 %v1470, %v1484
      %v1510 = vadd.f32 %v1471, %v1484
      %v1511 = vadd.f32 %v1472, %v1484
      %v1512 = vadd.f32 %v1473, %v1484
      %v1513 = vadd.f32 %v1474, %v1484
      %v1514 = vadd.f32 %v1475, %v1484
      %v1515 = vadd.f32 %v1476, %v1484
      %v1516 = vadd.f32 %v1477, %v1484
      %v1517 = vadd.f32 %v1478, %v1484
      %v1518 = vmax.f32 %v1486, 0.0
      %v1519 = vmax.f32 %v1487, 0.0
      %v1520 = vmax.f32 %v1488, 0.0
      %v1521 = vmax.f32 %v1489, 0.0
      %v1522 = vmax.f32 %v1490, 0.0
      %v1523 = vmax.f32 %v1491, 0.0
      %v1524 = vmax.f32 %v1492, 0.0
      %v1525 = vmax.f32 %v1493, 0.0
      %v1526 = vmax.f32 %v1494, 0.0
      %v1527 = vmax.f32 %v1495, 0.0
      %v1528 = vmax.f32 %v1496, 0.0
      %v1529 = vmax.f32 %v1497, 0.0
      %v1530 = vmax.f32 %v1498, 0.0
      %v1531 = vmax.f32 %v1499, 0.0
      %v1532 = vmax.f32 %v1500, 0.0
      %v1533 = vmax.f32 %v1501, 0.0
      %v1534 = vmax.f32 %v1502, 0.0
      %v1535 = vmax.f32 %v1503, 0.0
      %v1536 = vmax.f32 %v1504, 0.0
      %v1537 = vmax.f32 %v1505, 0.0
      %v1538 = vmax.f32 %v1506, 0.0
      %v1539 = vmax.f32 %v1507, 0.0
      %v1540 = vmax.f32 %v1508, 0.0
      %v1541 = vmax.f32 %v1509, 0.0
      %v1542 = vmax.f32 %v1510, 0.0
      %v1543 = vmax.f32 %v1511, 0.0
      %v1544 = vmax.f32 %v1512, 0.0
      %v1545 = vmax.f32 %v1513, 0.0
      %v1546 = vmax.f32 %v1514, 0.0
      %v1547 = vmax.f32 %v1515, 0.0
      %v1548 = vmax.f32 %v1516, 0.0
      %v1549 = vmax.f32 %v1517, 0.0
      %v1550 = vpack.c.bf16 %v1519, %v1518
      %v1551 = vpack.c.bf16 %v1521, %v1520
      %v1552 = vpack.c.bf16 %v1523, %v1522
      %v1553 = vpack.c.bf16 %v1525, %v1524
      %v1554 = vpack.c.bf16 %v1527, %v1526
      %v1555 = vpack.c.bf16 %v1529, %v1528
      %v1556 = vpack.c.bf16 %v1531, %v1530
      %v1557 = vpack.c.bf16 %v1533, %v1532
      %v1558 = vpack.c.bf16 %v1535, %v1534
      %v1559 = vpack.c.bf16 %v1537, %v1536
      %v1560 = vpack.c.bf16 %v1539, %v1538
      %v1561 = vpack.c.bf16 %v1541, %v1540
      %v1562 = vpack.c.bf16 %v1543, %v1542
      %v1563 = vpack.c.bf16 %v1545, %v1544
      %v1564 = vpack.c.bf16 %v1547, %v1546
      %v1565 = vpack.c.bf16 %v1549, %v1548
      %v1582 = vunpack.c.l.b16 %v1550
      %v1583 = vunpack.c.h.b16 %v1550
      %v1584 = vunpack.c.l.b16 %v1551
      %v1585 = vunpack.c.h.b16 %v1551
      %v1586 = vunpack.c.l.b16 %v1552
      %v1587 = vunpack.c.h.b16 %v1552
      %v1588 = vunpack.c.l.b16 %v1553
      %v1589 = vunpack.c.h.b16 %v1553
      %v1590 = vunpack.c.l.b16 %v1554
      %v1591 = vunpack.c.h.b16 %v1554
      %v1592 = vunpack.c.l.b16 %v1555
      %v1593 = vunpack.c.h.b16 %v1555
      %v1594 = vunpack.c.l.b16 %v1556
      %v1595 = vunpack.c.h.b16 %v1556
      %v1596 = vunpack.c.l.b16 %v1557
      %v1597 = vunpack.c.h.b16 %v1557
      %v1598 = vunpack.c.l.b16 %v1558
      %v1599 = vunpack.c.h.b16 %v1558
      %v1600 = vunpack.c.l.b16 %v1559
      %v1601 = vunpack.c.h.b16 %v1559
      %v1602 = vunpack.c.l.b16 %v1560
      %v1603 = vunpack.c.h.b16 %v1560
      %v1604 = vunpack.c.l.b16 %v1561
      %v1605 = vunpack.c.h.b16 %v1561
      %v1606 = vunpack.c.l.b16 %v1562
      %v1607 = vunpack.c.h.b16 %v1562
      %v1608 = vunpack.c.l.b16 %v1563
      %v1609 = vunpack.c.h.b16 %v1563
      %v1610 = vunpack.c.l.b16 %v1564
      %v1611 = vunpack.c.h.b16 %v1564
      %v1612 = vunpack.c.l.b16 %v1565
      %v1613 = vunpack.c.h.b16 %v1565
      %v1614 = vpack.c.b16 %v1582, %v1582
      %v1615 = vpack.c.b16 %v1583, %v1583
      %v1616 = vpack.c.b16 %v1584, %v1584
      %v1617 = vpack.c.b16 %v1585, %v1585
      %v1618 = vpack.c.b16 %v1586, %v1586
      %v1619 = vpack.c.b16 %v1587, %v1587
      %v1620 = vpack.c.b16 %v1588, %v1588
      %v1621 = vpack.c.b16 %v1589, %v1589
      %v1622 = vpack.c.b16 %v1590, %v1590
      %v1623 = vpack.c.b16 %v1591, %v1591
      %v1624 = vpack.c.b16 %v1592, %v1592
      %v1625 = vpack.c.b16 %v1593, %v1593
      %v1626 = vpack.c.b16 %v1594, %v1594
      %v1627 = vpack.c.b16 %v1595, %v1595
      %v1628 = vpack.c.b16 %v1596, %v1596
      %v1629 = vpack.c.b16 %v1597, %v1597
      %v1630 = vpack.c.b16 %v1598, %v1598
      %v1631 = vpack.c.b16 %v1599, %v1599
      %v1632 = vpack.c.b16 %v1600, %v1600
      %v1633 = vpack.c.b16 %v1601, %v1601
      %v1634 = vpack.c.b16 %v1602, %v1602
      %v1635 = vpack.c.b16 %v1603, %v1603
      %v1636 = vpack.c.b16 %v1604, %v1604
      %v1637 = vpack.c.b16 %v1605, %v1605
      %v1638 = vpack.c.b16 %v1606, %v1606
      %v1639 = vpack.c.b16 %v1607, %v1607
      %v1640 = vpack.c.b16 %v1608, %v1608
      %v1641 = vpack.c.b16 %v1609, %v1609
      %v1642 = vpack.c.b16 %v1610, %v1610
      %v1643 = vpack.c.b16 %v1611, %v1611
      %v1644 = vpack.c.b16 %v1612, %v1612
      %v1645 = vpack.c.b16 %v1613, %v1613
      %1678 = vst [vmem:[%s172] sm:$0xf] %v1614
      %1679 = vst [vmem:[%s172 + $0x4] sm:$0xf] %v1615
      %1680 = vst [vmem:[%s172 + $0x8] sm:$0xf] %v1616
      %1681 = vst [vmem:[%s172 + $0xc] sm:$0xf] %v1617
      %1682 = vst [vmem:[%s172 + $0x10] sm:$0xf] %v1618
      %1683 = vst [vmem:[%s172 + $0x14] sm:$0xf] %v1619
      %1684 = vst [vmem:[%s172 + $0x18] sm:$0xf] %v1620
      %1685 = vst [vmem:[%s172 + $0x1c] sm:$0xf] %v1621
      %1686 = vst [vmem:[%s172 + $0x20] sm:$0xf] %v1622
      %1687 = vst [vmem:[%s172 + $0x24] sm:$0xf] %v1623
      %1688 = vst [vmem:[%s172 + $0x28] sm:$0xf] %v1624
      %1689 = vst [vmem:[%s172 + $0x2c] sm:$0xf] %v1625
      %1690 = vst [vmem:[%s172 + $0x30] sm:$0xf] %v1626
      %1691 = vst [vmem:[%s172 + $0x34] sm:$0xf] %v1627
      %1692 = vst [vmem:[%s172 + $0x38] sm:$0xf] %v1628
      %1693 = vst [vmem:[%s172 + $0x3c] sm:$0xf] %v1629
      %1694 = vst [vmem:[%s172 + $0x40] sm:$0xf] %v1630
      %1695 = vst [vmem:[%s172 + $0x44] sm:$0xf] %v1631
      %1696 = vst [vmem:[%s172 + $0x48] sm:$0xf] %v1632
      %1697 = vst [vmem:[%s172 + $0x4c] sm:$0xf] %v1633
      %1698 = vst [vmem:[%s172 + $0x50] sm:$0xf] %v1634
      %1699 = vst [vmem:[%s172 + $0x54] sm:$0xf] %v1635
      %1700 = vst [vmem:[%s172 + $0x58] sm:$0xf] %v1636
      %1701 = vst [vmem:[%s172 + $0x5c] sm:$0xf] %v1637
      %1702 = vst [vmem:[%s172 + $0x60] sm:$0xf] %v1638
      %1703 = vst [vmem:[%s172 + $0x64] sm:$0xf] %v1639
      %1704 = vst [vmem:[%s172 + $0x68] sm:$0xf] %v1640
      %1705 = vst [vmem:[%s172 + $0x6c] sm:$0xf] %v1641
      %1706 = vst [vmem:[%s172 + $0x70] sm:$0xf] %v1642
      %1707 = vst [vmem:[%s172 + $0x74] sm:$0xf] %v1643
      %1708 = vst [vmem:[%s172 + $0x78] sm:$0xf] %v1644
      %1709 = vst [vmem:[%s172 + $0x7c] sm:$0xf] %v1645
      %s1710 = smul.u32 32, %s14
      %p1711 = scmp.lt.s32.totalorder %s1710, 63
      %s1712 = scalar_select %p1711, %s1710, 63
      %s1713 = smul.addr %s1712, 4
      %s1714 = scalar_lea.vmem %s3, %s1713
      // Predicated region
      $region33: #{net_forward.4} parent=31 // pred_check
        %p1715 = pneg %p100
      $region34: #{net_forward.4} parent=31 // pred_check_branch
        %1717 = sbr.rel (%p1715) target = $region36
      $region35: #{net_forward.4} parent=31 // pred_region
        %s1718 = smul.u32 32, %s14
      $region36: #{net_forward.4} parent=31 // pred_fallthru
        _
    $region32: #{net_forward.4} parent=5 // pred_fallthru
      _
    %p1719 = scmp.le.s32.totalorder 2, %s9
    // Predicated region
    $region37: #{net_forward.4} parent=5 // pred_check
      %p1720 = pneg %p1719
    $region38: #{net_forward.4} parent=5 // pred_check_branch
      %1722 = sbr.rel (%p1720) target = $region40
    $region39: #{net_forward.4} parent=5 // pred_region
      %s1723 = ssub.s32 %s9, 2
      // Predicated region
      $region41: #{net_forward.4} parent=39 // pred_check
        %p1724 = pneg %p106
      $region42: #{net_forward.4} parent=39 // pred_check_branch
        %1726 = sbr.rel (%p1724) target = $region44
      $region43: #{net_forward.4} parent=39 // pred_region
        %s1727 = smul.u32 32, %s15
        %p1728 = scmp.lt.s32.totalorder %s1727, 63
        %s1729 = scalar_select %p1728, %s1727, 63
        %s1730 = smul.addr %s1729, 4
        %s1731 = scalar_lea.vmem %s3, %s1730
      $region44: #{net_forward.4} parent=39 // pred_fallthru
        _
    $region40: #{net_forward.4} parent=5 // pred_fallthru
      _
  $region6: #{net_forward.4} parent=0 // loop_footer
    %s13 = sadd.s32 1, %s9
  $region7: #{net_forward.4} parent=0 // loop_footer_branch
    %8 = sbr.rel target = $region3
  $region8: #{net_forward.4} parent=0 // loop_exit
    _

// kernel: net_forward.5
$region0: #{net_forward.5}
  #allocation0 [shape = 'u32[]', space=smem, size = 0x4, offset = 0x4, fixed_abs, tag = 'smem constant byte address 0x4 - core index']
  #allocation1 [shape = 'u32[144,128]{1,0:T(1,128)}', space=vmem, size = 0x12000, scoped, tag = 'internal scratch']
  %s0 = inlined_call_operand.vmem [shape: bf16[512,144], index: 0, kind: input, shape index: {}]
  %s1 = inlined_call_operand.vmem [shape: bf16[144,128], index: 1, kind: input, shape index: {}]
  %s2 = inlined_call_operand.vmem [shape: f32[1,128], index: 2, kind: input, shape index: {}]
  %s3 = inlined_call_operand.vmem [shape: bf16[128,128], index: 3, kind: output, shape index: {}]
  %s4 = sld [smem:[#allocation0]]
  $region45: #{net_forward.5} parent=0
    _
  %s6 = ssub.s32 1, %s4
  %s7 = scalar_select 0, %s6, %s4
  loop: start=0, step=1, limit=4
  $region2: #{net_forward.5} parent=0 // loop_pre_header
    _
  $region3: #{net_forward.5} parent=0 // loop_header
    %s9 = sphi 0, %s13
    %p10 = scmp.ge.s32.totalorder %s9, 4
    %s19 = sphi 0, %s21
    %s22 = sphi 0, %s19
    %s23 = sphi 0, %s22
    %s39 = sphi 0, %s23
    %s43 = sphi 0, %s43
    %s45 = sphi 0, %s43
    %s46 = sphi 0, %s45
    %s60 = sphi 0, %s46
    %s64 = sphi 0, %s64
    %s66 = sphi 0, %s64
    %s67 = sphi 0, %s66
    %s81 = sphi 0, %s67
    %s87 = sphi 0, %s89
    %s90 = sphi 0, %s87
    %s91 = sphi 0, %s90
    %s107 = sphi 0, %s91
  $region4: #{net_forward.5} parent=0 // loop_header_branch
    %12 = sbr.rel (%p10) target = $region8
  $region5: #{net_forward.5} parent=0 // loop_body
    %s14 = ssub.s32 %s9, 1
    %s15 = ssub.s32 %s9, 2
    %s16 = sadd.s32 %s9, 1
    %s17 = ssub.s32 %s9, %s16
    %p18 = scmp.eq.s32.totalorder %s17, 0
    %s20 = sadd.s32 %s19, 1
    %s21 = scalar_select %p18, %s19, %s20
    %p24 = pneg %p18
    %p25 = scmp.eq.s32.totalorder %s9, 1
    %p26 = por %p24, %p25
    %p27 = scmp.ne.s32.totalorder %s19, %s22
    %p28 = scmp.eq.s32.totalorder %s9, 0
    %p29 = por %p27, %p28
    %p30 = scmp.ne.s32.totalorder %s19, %s22
    %p31 = scmp.eq.s32.totalorder %s14, 1
    %p32 = por %p30, %p31
    %p33 = scmp.ne.s32.totalorder %s22, %s23
    %p34 = scmp.eq.s32.totalorder %s14, 0
    %p35 = por %p33, %p34
    %p36 = scmp.ne.s32.totalorder %s22, %s23
    %p37 = scmp.eq.s32.totalorder %s15, 1
    %p38 = por %p36, %p37
    %p40 = scmp.ne.s32.totalorder %s23, %s39
    %p41 = scmp.eq.s32.totalorder %s15, 0
    %p42 = por %p40, %p41
    %s44 = sadd.s32 %s43, 1
    %p47 = scmp.eq.s32.totalorder %s9, 1
    %p48 = scmp.ne.s32.totalorder %s43, %s45
    %p49 = scmp.eq.s32.totalorder %s9, 0
    %p50 = por %p48, %p49
    %p51 = scmp.ne.s32.totalorder %s43, %s45
    %p52 = scmp.eq.s32.totalorder %s14, 1
    %p53 = por %p51, %p52
    %p54 = scmp.ne.s32.totalorder %s45, %s46
    %p55 = scmp.eq.s32.totalorder %s14, 0
    %p56 = por %p54, %p55
    %p57 = scmp.ne.s32.totalorder %s45, %s46
    %p58 = scmp.eq.s32.totalorder %s15, 1
    %p59 = por %p57, %p58
    %p61 = scmp.ne.s32.totalorder %s46, %s60
    %p62 = scmp.eq.s32.totalorder %s15, 0
    %p63 = por %p61, %p62
    %s65 = sadd.s32 %s64, 1
    %p68 = scmp.eq.s32.totalorder %s9, 1
    %p69 = scmp.ne.s32.totalorder %s64, %s66
    %p70 = scmp.eq.s32.totalorder %s9, 0
    %p71 = por %p69, %p70
    %p72 = scmp.ne.s32.totalorder %s64, %s66
    %p73 = scmp.eq.s32.totalorder %s14, 1
    %p74 = por %p72, %p73
    %p75 = scmp.ne.s32.totalorder %s66, %s67
    %p76 = scmp.eq.s32.totalorder %s14, 0
    %p77 = por %p75, %p76
    %p78 = scmp.ne.s32.totalorder %s66, %s67
    %p79 = scmp.eq.s32.totalorder %s15, 1
    %p80 = por %p78, %p79
    %p82 = scmp.ne.s32.totalorder %s67, %s81
    %p83 = scmp.eq.s32.totalorder %s15, 0
    %p84 = por %p82, %p83
    %s85 = ssub.s32 %s9, %s16
    %p86 = scmp.eq.s32.totalorder %s85, 0
    %s88 = sadd.s32 %s87, 1
    %s89 = scalar_select %p86, %s87, %s88
    %p92 = pneg %p86
    %p93 = scmp.eq.s32.totalorder %s9, 1
    %p94 = por %p92, %p93
    %p95 = scmp.ne.s32.totalorder %s87, %s90
    %p96 = scmp.eq.s32.totalorder %s9, 0
    %p97 = por %p95, %p96
    %p98 = scmp.ne.s32.totalorder %s87, %s90
    %p99 = scmp.eq.s32.totalorder %s14, 1
    %p100 = por %p98, %p99
    %p101 = scmp.ne.s32.totalorder %s90, %s91
    %p102 = scmp.eq.s32.totalorder %s14, 0
    %p103 = por %p101, %p102
    %p104 = scmp.ne.s32.totalorder %s90, %s91
    %p105 = scmp.eq.s32.totalorder %s15, 1
    %p106 = por %p104, %p105
    %p108 = scmp.ne.s32.totalorder %s91, %s107
    %p109 = scmp.eq.s32.totalorder %s15, 0
    %p110 = por %p108, %p109
    %p111 = scmp.le.s32.totalorder 1, %s9
    %p112 = scmp.lt.s32.totalorder %s9, 3
    %p113 = pnand %p111, %p112
    %p114 = pneg %p113
    // Predicated region
    $region9: #{net_forward.5} parent=5 // pred_check
      _
    $region10: #{net_forward.5} parent=5 // pred_check_branch
      %116 = sbr.rel (%p113) target = $region12
    $region11: #{net_forward.5} parent=5 // pred_region
      %s117 = ssub.s32 %s9, 1
      // Predicated region
      $region13: #{net_forward.5} parent=11 // pred_check
        %p118 = pneg %p56
      $region14: #{net_forward.5} parent=11 // pred_check_branch
        %120 = sbr.rel (%p118) target = $region16
      $region15: #{net_forward.5} parent=11 // pred_region
        _
      $region16: #{net_forward.5} parent=11 // pred_fallthru
        _
      // Predicated region
      $region17: #{net_forward.5} parent=11 // pred_check
        %p121 = pneg %p77
      $region18: #{net_forward.5} parent=11 // pred_check_branch
        %123 = sbr.rel (%p121) target = $region20
      $region19: #{net_forward.5} parent=11 // pred_region
        _
      $region20: #{net_forward.5} parent=11 // pred_fallthru
        _
    $region12: #{net_forward.5} parent=5 // pred_fallthru
      _
    %p124 = scmp.lt.s32.totalorder %s9, 2
    // Predicated region
    $region21: #{net_forward.5} parent=5 // pred_check
      %p125 = pneg %p124
    $region22: #{net_forward.5} parent=5 // pred_check_branch
      %127 = sbr.rel (%p125) target = $region24
    $region23: #{net_forward.5} parent=5 // pred_region
      // Predicated region
      $region25: #{net_forward.5} parent=23 // pred_check
        %p128 = pneg %p29
      $region26: #{net_forward.5} parent=23 // pred_check_branch
        %130 = sbr.rel (%p128) target = $region28
      $region27: #{net_forward.5} parent=23 // pred_region
        %s131 = smul.u32 32, %s9
        %p132 = scmp.lt.s32.totalorder %s131, 63
        %s133 = scalar_select %p132, %s131, 63
        %s134 = smul.addr %s133, 2
        %s135 = smul.addr %s134, 4
        %s136 = scalar_lea.vmem %s0, %s135
        %s137 = smul.u32 32, %s9
      $region28: #{net_forward.5} parent=23 // pred_fallthru
        _
    $region24: #{net_forward.5} parent=5 // pred_fallthru
      _
    %p138 = scmp.le.s32.totalorder 1, %s9
    %p139 = scmp.lt.s32.totalorder %s9, 3
    %p140 = pnand %p138, %p139
    %p141 = pneg %p140
    // Predicated region
    $region29: #{net_forward.5} parent=5 // pred_check
      _
    $region30: #{net_forward.5} parent=5 // pred_check_branch
      %143 = sbr.rel (%p140) target = $region32
    $region31: #{net_forward.5} parent=5 // pred_region
      %s144 = ssub.s32 %s9, 1
      %s145 = smul.u32 32, %s14
      %p146 = scmp.lt.s32.totalorder %s145, 63
      %s147 = scalar_select %p146, %s145, 63
      %s148 = smul.addr %s147, 2
      %s149 = smul.addr %s148, 4
      %s150 = scalar_lea.vmem %s0, %s149
      %p151 = pneg %p35
      %p152 = pneg %p32
      %p153 = pneg %p56
      %p154 = pneg %p53
      %p155 = pneg %p77
      %p156 = pneg %p74
      %p157 = pneg %p103
      %p158 = pneg %p100
      %s159 = smul.u32 8, %s14
      %p160 = scmp.lt.s32.totalorder %s159, 15
      %s161 = scalar_select %p160, %s159, 15
      %s162 = smul.addr %s161, 4
      %s163 = scalar_lea.vmem %s3, %s162
      %s164 = smul.u32 32, %s14
      %p165 = scmp.lt.s32.totalorder %s164, 63
      %s166 = scalar_select %p165, %s164, 63
      %s167 = smul.addr %s166, 2
      %s168 = smul.addr %s167, 4
      %s169 = scalar_lea.vmem %s0, %s168
      %s170 = smul.u32 32, %s14
      %s171 = smul.u32 8, %s14
      %p172 = scmp.lt.s32.totalorder %s171, 15
      %s173 = scalar_select %p172, %s171, 15
      %s174 = smul.addr %s173, 4
      %s175 = scalar_lea.vmem %s3, %s174
      %s176 = smul.u32 8, %s14
      %v178 = vld [vmem:[%s169] sm:$0xff]
      %v179 = vld [vmem:[%s169 + $0x8] sm:$0xff]
      %v180 = vld [vmem:[%s169 + $0x10] sm:$0xff]
      %v181 = vld [vmem:[%s169 + $0x18] sm:$0xff]
      %v182 = vld [vmem:[%s169 + $0x20] sm:$0xff]
      %v183 = vld [vmem:[%s169 + $0x28] sm:$0xff]
      %v184 = vld [vmem:[%s169 + $0x30] sm:$0xff]
      %v185 = vld [vmem:[%s169 + $0x38] sm:$0xff]
      %v186 = vld [vmem:[%s169 + $0x40] sm:$0xff]
      %v187 = vld [vmem:[%s169 + $0x48] sm:$0xff]
      %v188 = vld [vmem:[%s169 + $0x50] sm:$0xff]
      %v189 = vld [vmem:[%s169 + $0x58] sm:$0xff]
      %v190 = vld [vmem:[%s169 + $0x60] sm:$0xff]
      %v191 = vld [vmem:[%s169 + $0x68] sm:$0xff]
      %v192 = vld [vmem:[%s169 + $0x70] sm:$0xff]
      %v193 = vld [vmem:[%s169 + $0x78] sm:$0xff]
      %v194 = vld [vmem:[%s169 + $0x80] sm:$0xff]
      %v195 = vld [vmem:[%s169 + $0x88] sm:$0xff]
      %v196 = vld [vmem:[%s169 + $0x90] sm:$0xff]
      %v197 = vld [vmem:[%s169 + $0x98] sm:$0xff]
      %v198 = vld [vmem:[%s169 + $0xa0] sm:$0xff]
      %v199 = vld [vmem:[%s169 + $0xa8] sm:$0xff]
      %v200 = vld [vmem:[%s169 + $0xb0] sm:$0xff]
      %v201 = vld [vmem:[%s169 + $0xb8] sm:$0xff]
      %v202 = vld [vmem:[%s169 + $0xc0] sm:$0xff]
      %v203 = vld [vmem:[%s169 + $0xc8] sm:$0xff]
      %v204 = vld [vmem:[%s169 + $0xd0] sm:$0xff]
      %v205 = vld [vmem:[%s169 + $0xd8] sm:$0xff]
      %v206 = vld [vmem:[%s169 + $0xe0] sm:$0xff]
      %v207 = vld [vmem:[%s169 + $0xe8] sm:$0xff]
      %v208 = vld [vmem:[%s169 + $0xf0] sm:$0xff]
      %v209 = vld [vmem:[%s169 + $0xf8] sm:$0xff]
      %v210 = vld [vmem:[%s1] sm:$0xf]
      %v211 = vld [vmem:[%s1 + $0x4] sm:$0xf]
      %v212 = vld [vmem:[%s1 + $0x8] sm:$0xf]
      %v213 = vld [vmem:[%s1 + $0xc] sm:$0xf]
      %v214 = vld [vmem:[%s1 + $0x10] sm:$0xf]
      %v215 = vld [vmem:[%s1 + $0x14] sm:$0xf]
      %v216 = vld [vmem:[%s1 + $0x18] sm:$0xf]
      %v217 = vld [vmem:[%s1 + $0x1c] sm:$0xf]
      %v218 = vld [vmem:[%s1 + $0x20] sm:$0xf]
      %v219 = vld [vmem:[%s1 + $0x24] sm:$0xf]
      %v220 = vld [vmem:[%s1 + $0x28] sm:$0xf]
      %v221 = vld [vmem:[%s1 + $0x2c] sm:$0xf]
      %v222 = vld [vmem:[%s1 + $0x30] sm:$0xf]
      %v223 = vld [vmem:[%s1 + $0x34] sm:$0xf]
      %v224 = vld [vmem:[%s1 + $0x38] sm:$0xf]
      %v225 = vld [vmem:[%s1 + $0x3c] sm:$0xf]
      %v226 = vld [vmem:[%s1 + $0x40] sm:$0xf]
      %v227 = vld [vmem:[%s1 + $0x44] sm:$0xf]
      %v260 = vunpack.c.l.b16 %v178
      %v261 = vunpack.c.h.b16 %v178
      %v262 = vunpack.c.l.b16 %v179
      %v263 = vunpack.c.h.b16 %v179
      %v264 = vunpack.c.l.b16 %v180
      %v265 = vunpack.c.h.b16 %v180
      %v266 = vunpack.c.l.b16 %v181
      %v267 = vunpack.c.h.b16 %v181
      %v268 = vunpack.c.l.b16 %v182
      %v269 = vunpack.c.h.b16 %v182
      %v270 = vunpack.c.l.b16 %v183
      %v271 = vunpack.c.h.b16 %v183
      %v272 = vunpack.c.l.b16 %v184
      %v273 = vunpack.c.h.b16 %v184
      %v274 = vunpack.c.l.b16 %v185
      %v275 = vunpack.c.h.b16 %v185
      %v276 = vunpack.c.l.b16 %v186
      %v277 = vunpack.c.h.b16 %v186
      %v278 = vunpack.c.l.b16 %v187
      %v279 = vunpack.c.h.b16 %v187
      %v280 = vunpack.c.l.b16 %v188
      %v281 = vunpack.c.h.b16 %v188
      %v282 = vunpack.c.l.b16 %v189
      %v283 = vunpack.c.h.b16 %v189
      %v284 = vunpack.c.l.b16 %v190
      %v285 = vunpack.c.h.b16 %v190
      %v286 = vunpack.c.l.b16 %v191
      %v287 = vunpack.c.h.b16 %v191
      %v288 = vunpack.c.l.b16 %v192
      %v289 = vunpack.c.h.b16 %v192
      %v290 = vunpack.c.l.b16 %v193
      %v291 = vunpack.c.h.b16 %v193
      %v292 = vunpack.c.l.b16 %v194
      %v293 = vunpack.c.h.b16 %v194
      %v294 = vunpack.c.l.b16 %v195
      %v295 = vunpack.c.h.b16 %v195
      %v296 = vunpack.c.l.b16 %v196
      %v297 = vunpack.c.h.b16 %v196
      %v298 = vunpack.c.l.b16 %v197
      %v299 = vunpack.c.h.b16 %v197
      %v300 = vunpack.c.l.b16 %v198
      %v301 = vunpack.c.h.b16 %v198
      %v302 = vunpack.c.l.b16 %v199
      %v303 = vunpack.c.h.b16 %v199
      %v304 = vunpack.c.l.b16 %v200
      %v305 = vunpack.c.h.b16 %v200
      %v306 = vunpack.c.l.b16 %v201
      %v307 = vunpack.c.h.b16 %v201
      %v308 = vunpack.c.l.b16 %v202
      %v309 = vunpack.c.h.b16 %v202
      %v310 = vunpack.c.l.b16 %v203
      %v311 = vunpack.c.h.b16 %v203
      %v312 = vunpack.c.l.b16 %v204
      %v313 = vunpack.c.h.b16 %v204
      %v314 = vunpack.c.l.b16 %v205
      %v315 = vunpack.c.h.b16 %v205
      %v316 = vunpack.c.l.b16 %v206
      %v317 = vunpack.c.h.b16 %v206
      %v318 = vunpack.c.l.b16 %v207
      %v319 = vunpack.c.h.b16 %v207
      %v320 = vunpack.c.l.b16 %v208
      %v321 = vunpack.c.h.b16 %v208
      %v322 = vunpack.c.l.b16 %v209
      %v323 = vunpack.c.h.b16 %v209
      %v324 = vpack.c.b16 %v262, %v260
      %v325 = vpack.c.b16 %v263, %v261
      %v326 = vpack.c.b16 %v266, %v264
      %v327 = vpack.c.b16 %v267, %v265
      %v328 = vpack.c.b16 %v270, %v268
      %v329 = vpack.c.b16 %v271, %v269
      %v330 = vpack.c.b16 %v274, %v272
      %v331 = vpack.c.b16 %v275, %v273
      %v332 = vpack.c.b16 %v278, %v276
      %v333 = vpack.c.b16 %v279, %v277
      %v334 = vpack.c.b16 %v282, %v280
      %v335 = vpack.c.b16 %v283, %v281
      %v336 = vpack.c.b16 %v286, %v284
      %v337 = vpack.c.b16 %v287, %v285
      %v338 = vpack.c.b16 %v290, %v288
      %v339 = vpack.c.b16 %v291, %v289
      %v340 = vpack.c.b16 %v294, %v292
      %v341 = vpack.c.b16 %v295, %v293
      %v342 = vpack.c.b16 %v298, %v296
      %v343 = vpack.c.b16 %v299, %v297
      %v344 = vpack.c.b16 %v302, %v300
      %v345 = vpack.c.b16 %v303, %v301
      %v346 = vpack.c.b16 %v306, %v304
      %v347 = vpack.c.b16 %v307, %v305
      %v348 = vpack.c.b16 %v310, %v308
      %v349 = vpack.c.b16 %v311, %v309
      %v350 = vpack.c.b16 %v314, %v312
      %v351 = vpack.c.b16 %v315, %v313
      %v352 = vpack.c.b16 %v318, %v316
      %v353 = vpack.c.b16 %v319, %v317
      %v354 = vpack.c.b16 %v322, %v320
      %v355 = vpack.c.b16 %v323, %v321
      %v390 = vunpack.c.l.b16 %v210
      %v391 = vunpack.c.l.b16 %v211
      %v392 = vunpack.c.l.b16 %v212
      %v393 = vunpack.c.l.b16 %v213
      %v394 = vunpack.c.l.b16 %v214
      %v395 = vunpack.c.l.b16 %v215
      %v396 = vunpack.c.l.b16 %v216
      %v397 = vunpack.c.l.b16 %v217
      %v398 = vunpack.c.l.b16 %v218
      %v399 = vunpack.c.l.b16 %v219
      %v400 = vunpack.c.l.b16 %v220
      %v401 = vunpack.c.l.b16 %v221
      %v402 = vunpack.c.l.b16 %v222
      %v403 = vunpack.c.l.b16 %v223
      %v404 = vunpack.c.l.b16 %v224
      %v405 = vunpack.c.l.b16 %v225
      %v406 = vunpack.c.l.b16 %v226
      %v407 = vunpack.c.l.b16 %v227
      %v408 = vpack.c.b16 %v391, %v390
      %v409 = vpack.c.b16 %v393, %v392
      %v410 = vpack.c.b16 %v395, %v394
      %v411 = vpack.c.b16 %v397, %v396
      %v412 = vpack.c.b16 %v399, %v398
      %v413 = vpack.c.b16 %v401, %v400
      %v414 = vpack.c.b16 %v403, %v402
      %v415 = vpack.c.b16 %v405, %v404
      %v416 = vpack.c.b16 %v407, %v406
      %vm426 = vcmask 130048
      %v428 = vsel %vm426, %v325, 0
      %v431 = vsel %vm426, %v327, 0
      %v434 = vsel %vm426, %v329, 0
      %v437 = vsel %vm426, %v331, 0
      %v440 = vsel %vm426, %v333, 0
      %v443 = vsel %vm426, %v335, 0
      %v446 = vsel %vm426, %v337, 0
      %v449 = vsel %vm426, %v339, 0
      %v452 = vsel %vm426, %v341, 0
      %v455 = vsel %vm426, %v343, 0
      %v458 = vsel %vm426, %v345, 0
      %v461 = vsel %vm426, %v347, 0
      %v464 = vsel %vm426, %v349, 0
      %v467 = vsel %vm426, %v351, 0
      %v470 = vsel %vm426, %v353, 0
      %v473 = vsel %vm426, %v355, 0
      %475 = vmatprep.subr.bf16.mxu0 0
      %476 = vmatpush1.bf16.msra.mxu0 %v415
      %477 = vmatprep.subr.bf16.mxu0 0
      %478 = vmatpush1.bf16.msra.mxu0 %v414
      %479 = vmatprep.subr.bf16.mxu0 0
      %480 = vmatpush1.bf16.msra.mxu0 %v413
      %481 = vmatprep.subr.bf16.mxu0 0
      %482 = vmatpush1.bf16.msra.mxu0 %v412
      %483 = vmatprep.subr.bf16.mxu0 0
      %484 = vmatpush1.bf16.msra.mxu0 %v411
      %485 = vmatprep.subr.bf16.mxu0 0
      %486 = vmatpush1.bf16.msra.mxu0 %v410
      %487 = vmatprep.subr.bf16.mxu0 0
      %488 = vmatpush1.bf16.msra.mxu0 %v409
      %489 = vmatprep.subr.bf16.mxu0 0
      %490 = vmatpush1.bf16.msra.mxu0 %v408
      %491 = vmatprep.subr.bf16.mxu0 0
      %492 = vmatpush2.bf16.msra.mxu0 0
      %493 = vmatprep.subr.bf16.mxu0 0
      %494 = vmatpush2.bf16.msra.mxu0 0
      %495 = vmatprep.subr.bf16.mxu0 0
      %496 = vmatpush2.bf16.msra.mxu0 0
      %497 = vmatprep.subr.bf16.mxu0 0
      %498 = vmatpush2.bf16.msra.mxu0 0
      %499 = vmatprep.subr.bf16.mxu0 0
      %500 = vmatpush2.bf16.msra.mxu0 0
      %501 = vmatprep.subr.bf16.mxu0 0
      %502 = vmatpush2.bf16.msra.mxu0 0
      %503 = vmatprep.subr.bf16.mxu0 0
      %504 = vmatpush2.bf16.msra.mxu0 0
      %505 = vmatprep.subr.bf16.mxu0 0
      %506 = vmatpush2.bf16.msra.mxu0 %v416
      %507 = vmatprep.mubr.bf16.mxu0 %v428
      %508 = vmatmul.mubr.bf16.gmra.mxu0 %v324
      %v509 = vpop.f32.mrf.mxu0
      %v510 = vadd.f32 0.0, %v509
      %v511 = vpop.f32.mrf.mxu0
      %v512 = vpop.f32.mrf.mxu0
      %v513 = vadd.f32 0.0, %v512
      %v514 = vpop.f32.mrf.mxu0
      %515 = vmatprep.mubr.bf16.mxu0 %v431
      %516 = vmatmul.mubr.bf16.gmra.mxu0 %v326
      %v517 = vpop.f32.mrf.mxu0
      %v518 = vadd.f32 0.0, %v517
      %v519 = vpop.f32.mrf.mxu0
      %v520 = vpop.f32.mrf.mxu0
      %v521 = vadd.f32 0.0, %v520
      %v522 = vpop.f32.mrf.mxu0
      %523 = vmatprep.mubr.bf16.mxu0 %v434
      %524 = vmatmul.mubr.bf16.gmra.mxu0 %v328
      %v525 = vpop.f32.mrf.mxu0
      %v526 = vadd.f32 0.0, %v525
      %v527 = vpop.f32.mrf.mxu0
      %v528 = vpop.f32.mrf.mxu0
      %v529 = vadd.f32 0.0, %v528
      %v530 = vpop.f32.mrf.mxu0
      %531 = vmatprep.mubr.bf16.mxu0 %v437
      %532 = vmatmul.mubr.bf16.gmra.mxu0 %v330
      %v533 = vpop.f32.mrf.mxu0
      %v534 = vadd.f32 0.0, %v533
      %v535 = vpop.f32.mrf.mxu0
      %v536 = vpop.f32.mrf.mxu0
      %v537 = vadd.f32 0.0, %v536
      %v538 = vpop.f32.mrf.mxu0
      %539 = vmatprep.mubr.bf16.mxu0 %v440
      %540 = vmatmul.mubr.bf16.gmra.mxu0 %v332
      %v541 = vpop.f32.mrf.mxu0
      %v542 = vadd.f32 0.0, %v541
      %v543 = vpop.f32.mrf.mxu0
      %v544 = vpop.f32.mrf.mxu0
      %v545 = vadd.f32 0.0, %v544
      %v546 = vpop.f32.mrf.mxu0
      %547 = vmatprep.mubr.bf16.mxu0 %v443
      %548 = vmatmul.mubr.bf16.gmra.mxu0 %v334
      %v549 = vpop.f32.mrf.mxu0
      %v550 = vadd.f32 0.0, %v549
      %v551 = vpop.f32.mrf.mxu0
      %v552 = vpop.f32.mrf.mxu0
      %v553 = vadd.f32 0.0, %v552
      %v554 = vpop.f32.mrf.mxu0
      %555 = vmatprep.mubr.bf16.mxu0 %v446
      %556 = vmatmul.mubr.bf16.gmra.mxu0 %v336
      %v557 = vpop.f32.mrf.mxu0
      %v558 = vadd.f32 0.0, %v557
      %v559 = vpop.f32.mrf.mxu0
      %v560 = vpop.f32.mrf.mxu0
      %v561 = vadd.f32 0.0, %v560
      %v562 = vpop.f32.mrf.mxu0
      %563 = vmatprep.mubr.bf16.mxu0 %v449
      %564 = vmatmul.mubr.bf16.gmra.mxu0 %v338
      %v565 = vpop.f32.mrf.mxu0
      %v566 = vadd.f32 0.0, %v565
      %v567 = vpop.f32.mrf.mxu0
      %v568 = vpop.f32.mrf.mxu0
      %v569 = vadd.f32 0.0, %v568
      %v570 = vpop.f32.mrf.mxu0
      %571 = vmatprep.mubr.bf16.mxu0 %v452
      %572 = vmatmul.mubr.bf16.gmra.mxu0 %v340
      %v573 = vpop.f32.mrf.mxu0
      %v574 = vadd.f32 0.0, %v573
      %v575 = vpop.f32.mrf.mxu0
      %v576 = vpop.f32.mrf.mxu0
      %v577 = vadd.f32 0.0, %v576
      %v578 = vpop.f32.mrf.mxu0
      %579 = vmatprep.mubr.bf16.mxu0 %v455
      %580 = vmatmul.mubr.bf16.gmra.mxu0 %v342
      %v581 = vpop.f32.mrf.mxu0
      %v582 = vadd.f32 0.0, %v581
      %v583 = vpop.f32.mrf.mxu0
      %v584 = vpop.f32.mrf.mxu0
      %v585 = vadd.f32 0.0, %v584
      %v586 = vpop.f32.mrf.mxu0
      %587 = vmatprep.mubr.bf16.mxu0 %v458
      %588 = vmatmul.mubr.bf16.gmra.mxu0 %v344
      %v589 = vpop.f32.mrf.mxu0
      %v590 = vadd.f32 0.0, %v589
      %v591 = vpop.f32.mrf.mxu0
      %v592 = vpop.f32.mrf.mxu0
      %v593 = vadd.f32 0.0, %v592
      %v594 = vpop.f32.mrf.mxu0
      %595 = vmatprep.mubr.bf16.mxu0 %v461
      %596 = vmatmul.mubr.bf16.gmra.mxu0 %v346
      %v597 = vpop.f32.mrf.mxu0
      %v598 = vadd.f32 0.0, %v597
      %v599 = vpop.f32.mrf.mxu0
      %v600 = vpop.f32.mrf.mxu0
      %v601 = vadd.f32 0.0, %v600
      %v602 = vpop.f32.mrf.mxu0
      %603 = vmatprep.mubr.bf16.mxu0 %v464
      %604 = vmatmul.mubr.bf16.gmra.mxu0 %v348
      %v605 = vpop.f32.mrf.mxu0
      %v606 = vadd.f32 0.0, %v605
      %v607 = vpop.f32.mrf.mxu0
      %v608 = vpop.f32.mrf.mxu0
      %v609 = vadd.f32 0.0, %v608
      %v610 = vpop.f32.mrf.mxu0
      %611 = vmatprep.mubr.bf16.mxu0 %v467
      %612 = vmatmul.mubr.bf16.gmra.mxu0 %v350
      %v613 = vpop.f32.mrf.mxu0
      %v614 = vadd.f32 0.0, %v613
      %v615 = vpop.f32.mrf.mxu0
      %v616 = vpop.f32.mrf.mxu0
      %v617 = vadd.f32 0.0, %v616
      %v618 = vpop.f32.mrf.mxu0
      %619 = vmatprep.mubr.bf16.mxu0 %v470
      %620 = vmatmul.mubr.bf16.gmra.mxu0 %v352
      %v621 = vpop.f32.mrf.mxu0
      %v622 = vadd.f32 0.0, %v621
      %v623 = vpop.f32.mrf.mxu0
      %v624 = vpop.f32.mrf.mxu0
      %v625 = vadd.f32 0.0, %v624
      %v626 = vpop.f32.mrf.mxu0
      %627 = vmatprep.mubr.bf16.mxu0 %v473
      %628 = vmatmul.mubr.bf16.gmra.mxu0 %v354
      %v629 = vpop.f32.mrf.mxu0
      %v630 = vadd.f32 0.0, %v629
      %v631 = vpop.f32.mrf.mxu0
      %v632 = vpop.f32.mrf.mxu0
      %v633 = vadd.f32 0.0, %v632
      %v634 = vpop.f32.mrf.mxu0
      %635 = vdwg.mxu0
      %v636 = vmax.f32 %v510, %v542
      %v637 = vmax.f32 %v513, %v545
      %v638 = vmax.f32 %v518, %v550
      %v639 = vmax.f32 %v521, %v553
      %v640 = vmax.f32 %v526, %v558
      %v641 = vmax.f32 %v529, %v561
      %v642 = vmax.f32 %v534, %v566
      %v643 = vmax.f32 %v537, %v569
      %v644 = vmax.f32 %v574, %v606
      %v645 = vmax.f32 %v577, %v609
      %v646 = vmax.f32 %v582, %v614
      %v647 = vmax.f32 %v585, %v617
      %v648 = vmax.f32 %v590, %v622
      %v649 = vmax.f32 %v593, %v625
      %v650 = vmax.f32 %v598, %v630
      %v651 = vmax.f32 %v601, %v633
      %v652 = vmax.f32 %v636, %v644
      %v653 = vmax.f32 %v637, %v645
      %v654 = vmax.f32 %v638, %v646
      %v655 = vmax.f32 %v639, %v647
      %v656 = vmax.f32 %v640, %v648
      %v657 = vmax.f32 %v641, %v649
      %v658 = vmax.f32 %v642, %v650
      %v659 = vmax.f32 %v643, %v651
      %v660 = vld [vmem:[%s2] sm:$0x1]
      %v662 = vlaneseq
      %v663 = vshrl.u32 %v662, 7
      %v664 = vsub.s32 0, %v663
      %v665 = vrot.slane %v660, %v664
      %v667 = vadd.f32 %v652, %v665
      %v668 = vadd.f32 %v653, %v665
      %v669 = vadd.f32 %v654, %v665
      %v670 = vadd.f32 %v655, %v665
      %v671 = vadd.f32 %v656, %v665
      %v672 = vadd.f32 %v657, %v665
      %v673 = vadd.f32 %v658, %v665
      %v674 = vadd.f32 %v659, %v665
      %v675 = vmax.f32 %v667, 0.0
      %v676 = vmax.f32 %v668, 0.0
      %v677 = vmax.f32 %v669, 0.0
      %v678 = vmax.f32 %v670, 0.0
      %v679 = vmax.f32 %v671, 0.0
      %v680 = vmax.f32 %v672, 0.0
      %v681 = vmax.f32 %v673, 0.0
      %v682 = vmax.f32 %v674, 0.0
      %v683 = vpack.c.bf16 %v676, %v675
      %v684 = vpack.c.bf16 %v678, %v677
      %v685 = vpack.c.bf16 %v680, %v679
      %v686 = vpack.c.bf16 %v682, %v681
      %v691 = vunpack.c.l.b16 %v683
      %v692 = vunpack.c.h.b16 %v683
      %v693 = vunpack.c.l.b16 %v684
      %v694 = vunpack.c.h.b16 %v684
      %v695 = vunpack.c.l.b16 %v685
      %v696 = vunpack.c.h.b16 %v685
      %v697 = vunpack.c.l.b16 %v686
      %v698 = vunpack.c.h.b16 %v686
      %v699 = vpack.c.b16 %v691, %v691
      %v700 = vpack.c.b16 %v692, %v692
      %v701 = vpack.c.b16 %v693, %v693
      %v702 = vpack.c.b16 %v694, %v694
      %v703 = vpack.c.b16 %v695, %v695
      %v704 = vpack.c.b16 %v696, %v696
      %v705 = vpack.c.b16 %v697, %v697
      %v706 = vpack.c.b16 %v698, %v698
      %715 = vst [vmem:[%s175] sm:$0xf] %v699
      %716 = vst [vmem:[%s175 + $0x4] sm:$0xf] %v700
      %717 = vst [vmem:[%s175 + $0x8] sm:$0xf] %v701
      %718 = vst [vmem:[%s175 + $0xc] sm:$0xf] %v702
      %719 = vst [vmem:[%s175 + $0x10] sm:$0xf] %v703
      %720 = vst [vmem:[%s175 + $0x14] sm:$0xf] %v704
      %721 = vst [vmem:[%s175 + $0x18] sm:$0xf] %v705
      %722 = vst [vmem:[%s175 + $0x1c] sm:$0xf] %v706
      %s723 = smul.u32 8, %s14
      %p724 = scmp.lt.s32.totalorder %s723, 15
      %s725 = scalar_select %p724, %s723, 15
      %s726 = smul.addr %s725, 4
      %s727 = scalar_lea.vmem %s3, %s726
      // Predicated region
      $region33: #{net_forward.5} parent=31 // pred_check
        %p728 = pneg %p100
      $region34: #{net_forward.5} parent=31 // pred_check_branch
        %730 = sbr.rel (%p728) target = $region36
      $region35: #{net_forward.5} parent=31 // pred_region
        %s731 = smul.u32 8, %s14
      $region36: #{net_forward.5} parent=31 // pred_fallthru
        _
    $region32: #{net_forward.5} parent=5 // pred_fallthru
      _
    %p732 = scmp.le.s32.totalorder 2, %s9
    // Predicated region
    $region37: #{net_forward.5} parent=5 // pred_check
      %p733 = pneg %p732
    $region38: #{net_forward.5} parent=5 // pred_check_branch
      %735 = sbr.rel (%p733) target = $region40
    $region39: #{net_forward.5} parent=5 // pred_region
      %s736 = ssub.s32 %s9, 2
      // Predicated region
      $region41: #{net_forward.5} parent=39 // pred_check
        %p737 = pneg %p106
      $region42: #{net_forward.5} parent=39 // pred_check_branch
        %739 = sbr.rel (%p737) target = $region44
      $region43: #{net_forward.5} parent=39 // pred_region
        %s740 = smul.u32 8, %s15
        %p741 = scmp.lt.s32.totalorder %s740, 15
        %s742 = scalar_select %p741, %s740, 15
        %s743 = smul.addr %s742, 4
        %s744 = scalar_lea.vmem %s3, %s743
      $region44: #{net_forward.5} parent=39 // pred_fallthru
        _
    $region40: #{net_forward.5} parent=5 // pred_fallthru
      _
  $region6: #{net_forward.5} parent=0 // loop_footer
    %s13 = sadd.s32 1, %s9
  $region7: #{net_forward.5} parent=0 // loop_footer_branch
    %8 = sbr.rel target = $region3
  $region8: #{net_forward.5} parent=0 // loop_exit
    _

// kernel: net_forward.6
$region0: #{net_forward.6}
  #allocation0 [shape = 'u32[]', space=smem, size = 0x4, offset = 0x4, fixed_abs, tag = 'smem constant byte address 0x4 - core index']
  #allocation1 [shape = 'u32[144,128]{1,0:T(1,128)}', space=vmem, size = 0x12000, scoped, tag = 'internal scratch']
  %s0 = inlined_call_operand.vmem [shape: bf16[128,288], index: 0, kind: input, shape index: {}]
  %s1 = inlined_call_operand.vmem [shape: bf16[288,128], index: 1, kind: input, shape index: {}]
  %s2 = inlined_call_operand.vmem [shape: f32[1,128], index: 2, kind: input, shape index: {}]
  %s3 = inlined_call_operand.vmem [shape: bf16[32,128], index: 3, kind: output, shape index: {}]
  %s4 = sld [smem:[#allocation0]]
  $region45: #{net_forward.6} parent=0
    _
  %s6 = ssub.s32 1, %s4
  %s7 = scalar_select 0, %s6, %s4
  loop: start=0, step=1, limit=4
  $region2: #{net_forward.6} parent=0 // loop_pre_header
    _
  $region3: #{net_forward.6} parent=0 // loop_header
    %s9 = sphi 0, %s13
    %p10 = scmp.ge.s32.totalorder %s9, 4
    %s19 = sphi 0, %s21
    %s22 = sphi 0, %s19
    %s23 = sphi 0, %s22
    %s39 = sphi 0, %s23
    %s43 = sphi 0, %s43
    %s45 = sphi 0, %s43
    %s46 = sphi 0, %s45
    %s60 = sphi 0, %s46
    %s64 = sphi 0, %s64
    %s66 = sphi 0, %s64
    %s67 = sphi 0, %s66
    %s81 = sphi 0, %s67
    %s87 = sphi 0, %s89
    %s90 = sphi 0, %s87
    %s91 = sphi 0, %s90
    %s107 = sphi 0, %s91
  $region4: #{net_forward.6} parent=0 // loop_header_branch
    %12 = sbr.rel (%p10) target = $region8
  $region5: #{net_forward.6} parent=0 // loop_body
    %s14 = ssub.s32 %s9, 1
    %s15 = ssub.s32 %s9, 2
    %s16 = sadd.s32 %s9, 1
    %s17 = ssub.s32 %s9, %s16
    %p18 = scmp.eq.s32.totalorder %s17, 0
    %s20 = sadd.s32 %s19, 1
    %s21 = scalar_select %p18, %s19, %s20
    %p24 = pneg %p18
    %p25 = scmp.eq.s32.totalorder %s9, 1
    %p26 = por %p24, %p25
    %p27 = scmp.ne.s32.totalorder %s19, %s22
    %p28 = scmp.eq.s32.totalorder %s9, 0
    %p29 = por %p27, %p28
    %p30 = scmp.ne.s32.totalorder %s19, %s22
    %p31 = scmp.eq.s32.totalorder %s14, 1
    %p32 = por %p30, %p31
    %p33 = scmp.ne.s32.totalorder %s22, %s23
    %p34 = scmp.eq.s32.totalorder %s14, 0
    %p35 = por %p33, %p34
    %p36 = scmp.ne.s32.totalorder %s22, %s23
    %p37 = scmp.eq.s32.totalorder %s15, 1
    %p38 = por %p36, %p37
    %p40 = scmp.ne.s32.totalorder %s23, %s39
    %p41 = scmp.eq.s32.totalorder %s15, 0
    %p42 = por %p40, %p41
    %s44 = sadd.s32 %s43, 1
    %p47 = scmp.eq.s32.totalorder %s9, 1
    %p48 = scmp.ne.s32.totalorder %s43, %s45
    %p49 = scmp.eq.s32.totalorder %s9, 0
    %p50 = por %p48, %p49
    %p51 = scmp.ne.s32.totalorder %s43, %s45
    %p52 = scmp.eq.s32.totalorder %s14, 1
    %p53 = por %p51, %p52
    %p54 = scmp.ne.s32.totalorder %s45, %s46
    %p55 = scmp.eq.s32.totalorder %s14, 0
    %p56 = por %p54, %p55
    %p57 = scmp.ne.s32.totalorder %s45, %s46
    %p58 = scmp.eq.s32.totalorder %s15, 1
    %p59 = por %p57, %p58
    %p61 = scmp.ne.s32.totalorder %s46, %s60
    %p62 = scmp.eq.s32.totalorder %s15, 0
    %p63 = por %p61, %p62
    %s65 = sadd.s32 %s64, 1
    %p68 = scmp.eq.s32.totalorder %s9, 1
    %p69 = scmp.ne.s32.totalorder %s64, %s66
    %p70 = scmp.eq.s32.totalorder %s9, 0
    %p71 = por %p69, %p70
    %p72 = scmp.ne.s32.totalorder %s64, %s66
    %p73 = scmp.eq.s32.totalorder %s14, 1
    %p74 = por %p72, %p73
    %p75 = scmp.ne.s32.totalorder %s66, %s67
    %p76 = scmp.eq.s32.totalorder %s14, 0
    %p77 = por %p75, %p76
    %p78 = scmp.ne.s32.totalorder %s66, %s67
    %p79 = scmp.eq.s32.totalorder %s15, 1
    %p80 = por %p78, %p79
    %p82 = scmp.ne.s32.totalorder %s67, %s81
    %p83 = scmp.eq.s32.totalorder %s15, 0
    %p84 = por %p82, %p83
    %s85 = ssub.s32 %s9, %s16
    %p86 = scmp.eq.s32.totalorder %s85, 0
    %s88 = sadd.s32 %s87, 1
    %s89 = scalar_select %p86, %s87, %s88
    %p92 = pneg %p86
    %p93 = scmp.eq.s32.totalorder %s9, 1
    %p94 = por %p92, %p93
    %p95 = scmp.ne.s32.totalorder %s87, %s90
    %p96 = scmp.eq.s32.totalorder %s9, 0
    %p97 = por %p95, %p96
    %p98 = scmp.ne.s32.totalorder %s87, %s90
    %p99 = scmp.eq.s32.totalorder %s14, 1
    %p100 = por %p98, %p99
    %p101 = scmp.ne.s32.totalorder %s90, %s91
    %p102 = scmp.eq.s32.totalorder %s14, 0
    %p103 = por %p101, %p102
    %p104 = scmp.ne.s32.totalorder %s90, %s91
    %p105 = scmp.eq.s32.totalorder %s15, 1
    %p106 = por %p104, %p105
    %p108 = scmp.ne.s32.totalorder %s91, %s107
    %p109 = scmp.eq.s32.totalorder %s15, 0
    %p110 = por %p108, %p109
    %p111 = scmp.le.s32.totalorder 1, %s9
    %p112 = scmp.lt.s32.totalorder %s9, 3
    %p113 = pnand %p111, %p112
    %p114 = pneg %p113
    // Predicated region
    $region9: #{net_forward.6} parent=5 // pred_check
      _
    $region10: #{net_forward.6} parent=5 // pred_check_branch
      %116 = sbr.rel (%p113) target = $region12
    $region11: #{net_forward.6} parent=5 // pred_region
      %s117 = ssub.s32 %s9, 1
      // Predicated region
      $region13: #{net_forward.6} parent=11 // pred_check
        %p118 = pneg %p56
      $region14: #{net_forward.6} parent=11 // pred_check_branch
        %120 = sbr.rel (%p118) target = $region16
      $region15: #{net_forward.6} parent=11 // pred_region
        _
      $region16: #{net_forward.6} parent=11 // pred_fallthru
        _
      // Predicated region
      $region17: #{net_forward.6} parent=11 // pred_check
        %p121 = pneg %p77
      $region18: #{net_forward.6} parent=11 // pred_check_branch
        %123 = sbr.rel (%p121) target = $region20
      $region19: #{net_forward.6} parent=11 // pred_region
        _
      $region20: #{net_forward.6} parent=11 // pred_fallthru
        _
    $region12: #{net_forward.6} parent=5 // pred_fallthru
      _
    %p124 = scmp.lt.s32.totalorder %s9, 2
    // Predicated region
    $region21: #{net_forward.6} parent=5 // pred_check
      %p125 = pneg %p124
    $region22: #{net_forward.6} parent=5 // pred_check_branch
      %127 = sbr.rel (%p125) target = $region24
    $region23: #{net_forward.6} parent=5 // pred_region
      // Predicated region
      $region25: #{net_forward.6} parent=23 // pred_check
        %p128 = pneg %p29
      $region26: #{net_forward.6} parent=23 // pred_check_branch
        %130 = sbr.rel (%p128) target = $region28
      $region27: #{net_forward.6} parent=23 // pred_region
        %s131 = smul.u32 8, %s9
        %p132 = scmp.lt.s32.totalorder %s131, 15
        %s133 = scalar_select %p132, %s131, 15
        %s134 = smul.addr %s133, 3
        %s135 = smul.addr %s134, 4
        %s136 = scalar_lea.vmem %s0, %s135
        %s137 = smul.u32 8, %s9
      $region28: #{net_forward.6} parent=23 // pred_fallthru
        _
    $region24: #{net_forward.6} parent=5 // pred_fallthru
      _
    %p138 = scmp.le.s32.totalorder 1, %s9
    %p139 = scmp.lt.s32.totalorder %s9, 3
    %p140 = pnand %p138, %p139
    %p141 = pneg %p140
    // Predicated region
    $region29: #{net_forward.6} parent=5 // pred_check
      _
    $region30: #{net_forward.6} parent=5 // pred_check_branch
      %143 = sbr.rel (%p140) target = $region32
    $region31: #{net_forward.6} parent=5 // pred_region
      %s144 = ssub.s32 %s9, 1
      %s145 = smul.u32 8, %s14
      %p146 = scmp.lt.s32.totalorder %s145, 15
      %s147 = scalar_select %p146, %s145, 15
      %s148 = smul.addr %s147, 3
      %s149 = smul.addr %s148, 4
      %s150 = scalar_lea.vmem %s0, %s149
      %p151 = pneg %p35
      %p152 = pneg %p32
      %p153 = pneg %p56
      %p154 = pneg %p53
      %p155 = pneg %p77
      %p156 = pneg %p74
      %p157 = pneg %p103
      %p158 = pneg %p100
      %s159 = smul.u32 2, %s14
      %p160 = scmp.lt.s32.totalorder %s159, 3
      %s161 = scalar_select %p160, %s159, 3
      %s162 = smul.addr %s161, 4
      %s163 = scalar_lea.vmem %s3, %s162
      %s164 = smul.u32 8, %s14
      %p165 = scmp.lt.s32.totalorder %s164, 15
      %s166 = scalar_select %p165, %s164, 15
      %s167 = smul.addr %s166, 3
      %s168 = smul.addr %s167, 4
      %s169 = scalar_lea.vmem %s0, %s168
      %s170 = smul.u32 8, %s14
      %s171 = smul.u32 2, %s14
      %p172 = scmp.lt.s32.totalorder %s171, 3
      %s173 = scalar_select %p172, %s171, 3
      %s174 = smul.addr %s173, 4
      %s175 = scalar_lea.vmem %s3, %s174
      %s176 = smul.u32 2, %s14
      %v178 = vld [vmem:[%s169] sm:$0xff]
      %v179 = vld [vmem:[%s169 + $0x8] sm:$0xf]
      %v180 = vld [vmem:[%s169 + $0xc] sm:$0xff]
      %v181 = vld [vmem:[%s169 + $0x14] sm:$0xf]
      %v182 = vld [vmem:[%s169 + $0x18] sm:$0xff]
      %v183 = vld [vmem:[%s169 + $0x20] sm:$0xf]
      %v184 = vld [vmem:[%s169 + $0x24] sm:$0xff]
      %v185 = vld [vmem:[%s169 + $0x2c] sm:$0xf]
      %v186 = vld [vmem:[%s169 + $0x30] sm:$0xff]
      %v187 = vld [vmem:[%s169 + $0x38] sm:$0xf]
      %v188 = vld [vmem:[%s169 + $0x3c] sm:$0xff]
      %v189 = vld [vmem:[%s169 + $0x44] sm:$0xf]
      %v190 = vld [vmem:[%s169 + $0x48] sm:$0xff]
      %v191 = vld [vmem:[%s169 + $0x50] sm:$0xf]
      %v192 = vld [vmem:[%s169 + $0x54] sm:$0xff]
      %v193 = vld [vmem:[%s169 + $0x5c] sm:$0xf]
      %v194 = vld [vmem:[%s1] sm:$0xf]
      %v195 = vld [vmem:[%s1 + $0x4] sm:$0xf]
      %v196 = vld [vmem:[%s1 + $0x8] sm:$0xf]
      %v197 = vld [vmem:[%s1 + $0xc] sm:$0xf]
      %v198 = vld [vmem:[%s1 + $0x10] sm:$0xf]
      %v199 = vld [vmem:[%s1 + $0x14] sm:$0xf]
      %v200 = vld [vmem:[%s1 + $0x18] sm:$0xf]
      %v201 = vld [vmem:[%s1 + $0x1c] sm:$0xf]
      %v202 = vld [vmem:[%s1 + $0x20] sm:$0xf]
      %v203 = vld [vmem:[%s1 + $0x24] sm:$0xf]
      %v204 = vld [vmem:[%s1 + $0x28] sm:$0xf]
      %v205 = vld [vmem:[%s1 + $0x2c] sm:$0xf]
      %v206 = vld [vmem:[%s1 + $0x30] sm:$0xf]
      %v207 = vld [vmem:[%s1 + $0x34] sm:$0xf]
      %v208 = vld [vmem:[%s1 + $0x38] sm:$0xf]
      %v209 = vld [vmem:[%s1 + $0x3c] sm:$0xf]
      %v210 = vld [vmem:[%s1 + $0x40] sm:$0xf]
      %v211 = vld [vmem:[%s1 + $0x44] sm:$0xf]
      %v212 = vld [vmem:[%s1 + $0x48] sm:$0xf]
      %v213 = vld [vmem:[%s1 + $0x4c] sm:$0xf]
      %v214 = vld [vmem:[%s1 + $0x50] sm:$0xf]
      %v215 = vld [vmem:[%s1 + $0x54] sm:$0xf]
      %v216 = vld [vmem:[%s1 + $0x58] sm:$0xf]
      %v217 = vld [vmem:[%s1 + $0x5c] sm:$0xf]
      %v218 = vld [vmem:[%s1 + $0x60] sm:$0xf]
      %v219 = vld [vmem:[%s1 + $0x64] sm:$0xf]
      %v220 = vld [vmem:[%s1 + $0x68] sm:$0xf]
      %v221 = vld [vmem:[%s1 + $0x6c] sm:$0xf]
      %v222 = vld [vmem:[%s1 + $0x70] sm:$0xf]
      %v223 = vld [vmem:[%s1 + $0x74] sm:$0xf]
      %v224 = vld [vmem:[%s1 + $0x78] sm:$0xf]
      %v225 = vld [vmem:[%s1 + $0x7c] sm:$0xf]
      %v226 = vld [vmem:[%s1 + $0x80] sm:$0xf]
      %v227 = vld [vmem:[%s1 + $0x84] sm:$0xf]
      %v228 = vld [vmem:[%s1 + $0x88] sm:$0xf]
      %v229 = vld [vmem:[%s1 + $0x8c] sm:$0xf]
      %v246 = vunpack.c.l.b16 %v178
      %v247 = vunpack.c.h.b16 %v178
      %v248 = vunpack.c.l.b16 %v179
      %v249 = vunpack.c.l.b16 %v180
      %v250 = vunpack.c.h.b16 %v180
      %v251 = vunpack.c.l.b16 %v181
      %v252 = vunpack.c.l.b16 %v182
      %v253 = vunpack.c.h.b16 %v182
      %v254 = vunpack.c.l.b16 %v183
      %v255 = vunpack.c.l.b16 %v184
      %v256 = vunpack.c.h.b16 %v184
      %v257 = vunpack.c.l.b16 %v185
      %v258 = vunpack.c.l.b16 %v186
      %v259 = vunpack.c.h.b16 %v186
      %v260 = vunpack.c.l.b16 %v187
      %v261 = vunpack.c.l.b16 %v188
      %v262 = vunpack.c.h.b16 %v188
      %v263 = vunpack.c.l.b16 %v189
      %v264 = vunpack.c.l.b16 %v190
      %v265 = vunpack.c.h.b16 %v190
      %v266 = vunpack.c.l.b16 %v191
      %v267 = vunpack.c.l.b16 %v192
      %v268 = vunpack.c.h.b16 %v192
      %v269 = vunpack.c.l.b16 %v193
      %v270 = vpack.c.b16 %v249, %v246
      %v271 = vpack.c.b16 %v250, %v247
      %v272 = vpack.c.b16 %v251, %v248
      %v273 = vpack.c.b16 %v255, %v252
      %v274 = vpack.c.b16 %v256, %v253
      %v275 = vpack.c.b16 %v257, %v254
      %v276 = vpack.c.b16 %v261, %v258
      %v277 = vpack.c.b16 %v262, %v259
      %v278 = vpack.c.b16 %v263, %v260
      %v279 = vpack.c.b16 %v267, %v264
      %v280 = vpack.c.b16 %v268, %v265
      %v281 = vpack.c.b16 %v269, %v266
      %v326 = vunpack.c.l.b16 %v194
      %v327 = vunpack.c.l.b16 %v195
      %v328 = vunpack.c.l.b16 %v196
      %v329 = vunpack.c.l.b16 %v197
      %v330 = vunpack.c.l.b16 %v198
      %v331 = vunpack.c.l.b16 %v199
      %v332 = vunpack.c.l.b16 %v200
      %v333 = vunpack.c.l.b16 %v201
      %v334 = vunpack.c.l.b16 %v202
      %v335 = vunpack.c.l.b16 %v203
      %v336 = vunpack.c.l.b16 %v204
      %v337 = vunpack.c.l.b16 %v205
      %v338 = vunpack.c.l.b16 %v206
      %v339 = vunpack.c.l.b16 %v207
      %v340 = vunpack.c.l.b16 %v208
      %v341 = vunpack.c.l.b16 %v209
      %v342 = vunpack.c.l.b16 %v210
      %v343 = vunpack.c.l.b16 %v211
      %v344 = vunpack.c.l.b16 %v212
      %v345 = vunpack.c.l.b16 %v213
      %v346 = vunpack.c.l.b16 %v214
      %v347 = vunpack.c.l.b16 %v215
      %v348 = vunpack.c.l.b16 %v216
      %v349 = vunpack.c.l.b16 %v217
      %v350 = vunpack.c.l.b16 %v218
      %v351 = vunpack.c.l.b16 %v219
      %v352 = vunpack.c.l.b16 %v220
      %v353 = vunpack.c.l.b16 %v221
      %v354 = vunpack.c.l.b16 %v222
      %v355 = vunpack.c.l.b16 %v223
      %v356 = vunpack.c.l.b16 %v224
      %v357 = vunpack.c.l.b16 %v225
      %v358 = vunpack.c.l.b16 %v226
      %v359 = vunpack.c.l.b16 %v227
      %v360 = vunpack.c.l.b16 %v228
      %v361 = vunpack.c.l.b16 %v229
      %v362 = vpack.c.b16 %v327, %v326
      %v363 = vpack.c.b16 %v329, %v328
      %v364 = vpack.c.b16 %v331, %v330
      %v365 = vpack.c.b16 %v333, %v332
      %v366 = vpack.c.b16 %v335, %v334
      %v367 = vpack.c.b16 %v337, %v336
      %v368 = vpack.c.b16 %v339, %v338
      %v369 = vpack.c.b16 %v341, %v340
      %v370 = vpack.c.b16 %v343, %v342
      %v371 = vpack.c.b16 %v345, %v344
      %v372 = vpack.c.b16 %v347, %v346
      %v373 = vpack.c.b16 %v349, %v348
      %v374 = vpack.c.b16 %v351, %v350
      %v375 = vpack.c.b16 %v353, %v352
      %v376 = vpack.c.b16 %v355, %v354
      %v377 = vpack.c.b16 %v357, %v356
      %v378 = vpack.c.b16 %v359, %v358
      %v379 = vpack.c.b16 %v361, %v360
      %vm398 = vcmask 261120
      %v400 = vsel %vm398, %v272, 0
      %v403 = vsel %vm398, %v275, 0
      %v406 = vsel %vm398, %v278, 0
      %v409 = vsel %vm398, %v281, 0
      %411 = vmatprep.subr.bf16.mxu0 0
      %412 = vmatpush1.bf16.msra.mxu0 %v369
      %413 = vmatprep.subr.bf16.mxu0 0
      %414 = vmatpush1.bf16.msra.mxu0 %v368
      %415 = vmatprep.subr.bf16.mxu0 0
      %416 = vmatpush1.bf16.msra.mxu0 %v367
      %417 = vmatprep.subr.bf16.mxu0 0
      %418 = vmatpush1.bf16.msra.mxu0 %v366
      %419 = vmatprep.subr.bf16.mxu0 0
      %420 = vmatpush1.bf16.msra.mxu0 %v365
      %421 = vmatprep.subr.bf16.mxu0 0
      %422 = vmatpush1.bf16.msra.mxu0 %v364
      %423 = vmatprep.subr.bf16.mxu0 0
      %424 = vmatpush1.bf16.msra.mxu0 %v363
      %425 = vmatprep.subr.bf16.mxu0 0
      %426 = vmatpush1.bf16.msra.mxu0 %v362
      %427 = vmatprep.subr.bf16.mxu0 0
      %428 = vmatpush2.bf16.msra.mxu0 %v377
      %429 = vmatprep.subr.bf16.mxu0 0
      %430 = vmatpush2.bf16.msra.mxu0 %v376
      %431 = vmatprep.subr.bf16.mxu0 0
      %432 = vmatpush2.bf16.msra.mxu0 %v375
      %433 = vmatprep.subr.bf16.mxu0 0
      %434 = vmatpush2.bf16.msra.mxu0 %v374
      %435 = vmatprep.subr.bf16.mxu0 0
      %436 = vmatpush2.bf16.msra.mxu0 %v373
      %437 = vmatprep.subr.bf16.mxu0 0
      %438 = vmatpush2.bf16.msra.mxu0 %v372
      %439 = vmatprep.subr.bf16.mxu0 0
      %440 = vmatpush2.bf16.msra.mxu0 %v371
      %441 = vmatprep.subr.bf16.mxu0 0
      %442 = vmatpush2.bf16.msra.mxu0 %v370
      %443 = vmatprep.mubr.bf16.mxu0 %v271
      %444 = vmatmul.mubr.bf16.gmra.mxu0 %v270
      %v445 = vpop.f32.mrf.mxu0
      %v446 = vadd.f32 0.0, %v445
      %v447 = vpop.f32.mrf.mxu0
      %v448 = vpop.f32.mrf.mxu0
      %v449 = vadd.f32 0.0, %v448
      %v450 = vpop.f32.mrf.mxu0
      %451 = vmatprep.mubr.bf16.mxu0 %v274
      %452 = vmatmul.mubr.bf16.gmra.mxu0 %v273
      %v453 = vpop.f32.mrf.mxu0
      %v454 = vadd.f32 0.0, %v453
      %v455 = vpop.f32.mrf.mxu0
      %v456 = vpop.f32.mrf.mxu0
      %v457 = vadd.f32 0.0, %v456
      %v458 = vpop.f32.mrf.mxu0
      %459 = vmatprep.mubr.bf16.mxu0 %v277
      %460 = vmatmul.mubr.bf16.gmra.mxu0 %v276
      %v461 = vpop.f32.mrf.mxu0
      %v462 = vadd.f32 0.0, %v461
      %v463 = vpop.f32.mrf.mxu0
      %v464 = vpop.f32.mrf.mxu0
      %v465 = vadd.f32 0.0, %v464
      %v466 = vpop.f32.mrf.mxu0
      %467 = vmatprep.mubr.bf16.mxu0 %v280
      %468 = vmatmul.mubr.bf16.gmra.mxu0 %v279
      %v469 = vpop.f32.mrf.mxu0
      %v470 = vadd.f32 0.0, %v469
      %v471 = vpop.f32.mrf.mxu0
      %v472 = vpop.f32.mrf.mxu0
      %v473 = vadd.f32 0.0, %v472
      %v474 = vpop.f32.mrf.mxu0
      %475 = vdwg.mxu0
      %476 = vmatprep.subr.bf16.mxu0 0
      %477 = vmatpush1.bf16.msra.mxu0 0
      %478 = vmatprep.subr.bf16.mxu0 0
      %479 = vmatpush1.bf16.msra.mxu0 0
      %480 = vmatprep.subr.bf16.mxu0 0
      %481 = vmatpush1.bf16.msra.mxu0 0
      %482 = vmatprep.subr.bf16.mxu0 0
      %483 = vmatpush1.bf16.msra.mxu0 0
      %484 = vmatprep.subr.bf16.mxu0 0
      %485 = vmatpush1.bf16.msra.mxu0 0
      %486 = vmatprep.subr.bf16.mxu0 0
      %487 = vmatpush1.bf16.msra.mxu0 0
      %488 = vmatprep.subr.bf16.mxu0 0
      %489 = vmatpush1.bf16.msra.mxu0 %v379
      %490 = vmatprep.subr.bf16.mxu0 0
      %491 = vmatpush1.bf16.msra.mxu0 %v378
      %492 = vmatprep.subr.bf16.mxu0 0
      %493 = vmatpush2.bf16.msra.mxu0 0
      %494 = vmatprep.subr.bf16.mxu0 0
      %495 = vmatpush2.bf16.msra.mxu0 0
      %496 = vmatprep.subr.bf16.mxu0 0
      %497 = vmatpush2.bf16.msra.mxu0 0
      %498 = vmatprep.subr.bf16.mxu0 0
      %499 = vmatpush2.bf16.msra.mxu0 0
      %500 = vmatprep.subr.bf16.mxu0 0
      %501 = vmatpush2.bf16.msra.mxu0 0
      %502 = vmatprep.subr.bf16.mxu0 0
      %503 = vmatpush2.bf16.msra.mxu0 0
      %504 = vmatprep.subr.bf16.mxu0 0
      %505 = vmatpush2.bf16.msra.mxu0 0
      %506 = vmatprep.subr.bf16.mxu0 0
      %507 = vmatpush2.bf16.msra.mxu0 0
      %508 = vmatprep.mubr.bf16.mxu0 0
      %509 = vmatmul.mubr.bf16.gmra.mxu0 %v400
      %v510 = vpop.f32.mrf.mxu0
      %v511 = vadd.f32 %v446, %v510
      %v512 = vpop.f32.mrf.mxu0
      %v513 = vpop.f32.mrf.mxu0
      %v514 = vadd.f32 %v449, %v513
      %v515 = vpop.f32.mrf.mxu0
      %516 = vmatprep.mubr.bf16.mxu0 0
      %517 = vmatmul.mubr.bf16.gmra.mxu0 %v403
      %v518 = vpop.f32.mrf.mxu0
      %v519 = vadd.f32 %v454, %v518
      %v520 = vpop.f32.mrf.mxu0
      %v521 = vpop.f32.mrf.mxu0
      %v522 = vadd.f32 %v457, %v521
      %v523 = vpop.f32.mrf.mxu0
      %524 = vmatprep.mubr.bf16.mxu0 0
      %525 = vmatmul.mubr.bf16.gmra.mxu0 %v406
      %v526 = vpop.f32.mrf.mxu0
      %v527 = vadd.f32 %v462, %v526
      %v528 = vpop.f32.mrf.mxu0
      %v529 = vpop.f32.mrf.mxu0
      %v530 = vadd.f32 %v465, %v529
      %v531 = vpop.f32.mrf.mxu0
      %532 = vmatprep.mubr.bf16.mxu0 0
      %533 = vmatmul.mubr.bf16.gmra.mxu0 %v409
      %v534 = vpop.f32.mrf.mxu0
      %v535 = vadd.f32 %v470, %v534
      %v536 = vpop.f32.mrf.mxu0
      %v537 = vpop.f32.mrf.mxu0
      %v538 = vadd.f32 %v473, %v537
      %v539 = vpop.f32.mrf.mxu0
      %540 = vdwg.mxu0
      %v541 = vmax.f32 %v511, %v519
      %v542 = vmax.f32 %v514, %v522
      %v543 = vmax.f32 %v527, %v535
      %v544 = vmax.f32 %v530, %v538
      %v545 = vmax.f32 %v541, %v543
      %v546 = vmax.f32 %v542, %v544
      %v547 = vld [vmem:[%s2] sm:$0x1]
      %v549 = vlaneseq
      %v550 = vshrl.u32 %v549, 7
      %v551 = vsub.s32 0, %v550
      %v552 = vrot.slane %v547, %v551
      %v554 = vadd.f32 %v545, %v552
      %v555 = vadd.f32 %v546, %v552
      %v556 = vmax.f32 %v554, 0.0
      %v557 = vmax.f32 %v555, 0.0
      %v558 = vpack.c.bf16 %v557, %v556
      %v560 = vunpack.c.l.b16 %v558
      %v561 = vunpack.c.h.b16 %v558
      %v562 = vpack.c.b16 %v560, %v560
      %v563 = vpack.c.b16 %v561, %v561
      %566 = vst [vmem:[%s175] sm:$0xf] %v562
      %567 = vst [vmem:[%s175 + $0x4] sm:$0xf] %v563
      %s568 = smul.u32 2, %s14
      %p569 = scmp.lt.s32.totalorder %s568, 3
      %s570 = scalar_select %p569, %s568, 3
      %s571 = smul.addr %s570, 4
      %s572 = scalar_lea.vmem %s3, %s571
      // Predicated region
      $region33: #{net_forward.6} parent=31 // pred_check
        %p573 = pneg %p100
      $region34: #{net_forward.6} parent=31 // pred_check_branch
        %575 = sbr.rel (%p573) target = $region36
      $region35: #{net_forward.6} parent=31 // pred_region
        %s576 = smul.u32 2, %s14
      $region36: #{net_forward.6} parent=31 // pred_fallthru
        _
    $region32: #{net_forward.6} parent=5 // pred_fallthru
      _
    %p577 = scmp.le.s32.totalorder 2, %s9
    // Predicated region
    $region37: #{net_forward.6} parent=5 // pred_check
      %p578 = pneg %p577
    $region38: #{net_forward.6} parent=5 // pred_check_branch
      %580 = sbr.rel (%p578) target = $region40
    $region39: #{net_forward.6} parent=5 // pred_region
      %s581 = ssub.s32 %s9, 2
      // Predicated region
      $region41: #{net_forward.6} parent=39 // pred_check
        %p582 = pneg %p106
      $region42: #{net_forward.6} parent=39 // pred_check_branch
        %584 = sbr.rel (%p582) target = $region44
      $region43: #{net_forward.6} parent=39 // pred_region
        %s585 = smul.u32 2, %s15
        %p586 = scmp.lt.s32.totalorder %s585, 3
        %s587 = scalar_select %p586, %s585, 3
        %s588 = smul.addr %s587, 4
        %s589 = scalar_lea.vmem %s3, %s588
      $region44: #{net_forward.6} parent=39 // pred_fallthru
        _
    $region40: #{net_forward.6} parent=5 // pred_fallthru
      _
  $region6: #{net_forward.6} parent=0 // loop_footer
    %s13 = sadd.s32 1, %s9
  $region7: #{net_forward.6} parent=0 // loop_footer_branch
    %8 = sbr.rel target = $region3
  $region8: #{net_forward.6} parent=0 // loop_exit
    _

// kernel: net_forward.7
$region0: #{net_forward.7}
  #allocation0 [shape = 'u32[]', space=smem, size = 0x4, offset = 0x4, fixed_abs, tag = 'smem constant byte address 0x4 - core index']
  #allocation1 [shape = 'u32[144,128]{1,0:T(1,128)}', space=vmem, size = 0x12000, scoped, tag = 'internal scratch']
  %s0 = inlined_call_operand.vmem [shape: bf16[2,1024], index: 0, kind: input, shape index: {}]
  %s1 = inlined_call_operand.vmem [shape: bf16[1024,512], index: 1, kind: input, shape index: {}]
  %s2 = inlined_call_operand.vmem [shape: f32[1,512], index: 2, kind: input, shape index: {}]
  %s3 = inlined_call_operand.vmem [shape: bf16[512,128], index: 3, kind: input, shape index: {}]
  %s4 = inlined_call_operand.vmem [shape: f32[1,128], index: 4, kind: input, shape index: {}]
  %s5 = inlined_call_operand.hbm [shape: f32[2,128], index: 5, kind: output, shape index: {}]
  %s6 = sld [smem:[#allocation0]]
  $region30: #{net_forward.7} parent=0
    _
  %s8 = ssub.s32 1, %s6
  %s9 = scalar_select 0, %s8, %s6
  $region1: #{net_forward.7} parent=0
    #allocation2 [shape = 'u8[1024]{0}', space=vmem, size = 0x400, scoped, tag = 'output window, operand 0, single buffered']
    #allocation3 [shape = 's32[1]{0}', space=sflag, size = 0x4, scoped, tag = 'scoped memory for net_forward.7']
    %10 = vsyncpa [#allocation3], 0
    // Predicated region
    $region2: #{net_forward.7} parent=1 // pred_check
      _
    $region3: #{net_forward.7} parent=1 // pred_check_branch
      %12 = sbr.rel (0) target = $region5
    $region4: #{net_forward.7} parent=1 // pred_region
      _
    $region5: #{net_forward.7} parent=1 // pred_fallthru
      _
    // Predicated region
    $region6: #{net_forward.7} parent=1 // pred_check
      _
    $region7: #{net_forward.7} parent=1 // pred_check_branch
      %14 = sbr.rel (0) target = $region9
    $region8: #{net_forward.7} parent=1 // pred_region
      _
    $region9: #{net_forward.7} parent=1 // pred_fallthru
      _
    // Predicated region
    $region10: #{net_forward.7} parent=1 // pred_check
      _
    $region11: #{net_forward.7} parent=1 // pred_check_branch
      %16 = sbr.rel (0) target = $region13
    $region12: #{net_forward.7} parent=1 // pred_region
      _
    $region13: #{net_forward.7} parent=1 // pred_fallthru
      _
    // Predicated region
    $region14: #{net_forward.7} parent=1 // pred_check
      _
    $region15: #{net_forward.7} parent=1 // pred_check_branch
      %18 = sbr.rel (0) target = $region17
    $region16: #{net_forward.7} parent=1 // pred_region
      _
    $region17: #{net_forward.7} parent=1 // pred_fallthru
      _
    // Predicated region
    $region18: #{net_forward.7} parent=1 // pred_check
      _
    $region19: #{net_forward.7} parent=1 // pred_check_branch
      %20 = sbr.rel (0) target = $region21
    $region20: #{net_forward.7} parent=1 // pred_region
      _
    $region21: #{net_forward.7} parent=1 // pred_fallthru
      _
    %v22 = vld [vmem:[%s0] sm:$0xff]
    %v23 = vld [vmem:[%s1] sm:$0xff]
    %v24 = vld [vmem:[%s1 + $0x8] sm:$0xff]
    %v25 = vld [vmem:[%s1 + $0x10] sm:$0xff]
    %v26 = vld [vmem:[%s1 + $0x18] sm:$0xff]
    %v27 = vld [vmem:[%s1 + $0x20] sm:$0xff]
    %v28 = vld [vmem:[%s1 + $0x28] sm:$0xff]
    %v29 = vld [vmem:[%s1 + $0x30] sm:$0xff]
    %v30 = vld [vmem:[%s1 + $0x38] sm:$0xff]
    %v31 = vld [vmem:[%s1 + $0x40] sm:$0xff]
    %v32 = vld [vmem:[%s1 + $0x48] sm:$0xff]
    %v33 = vld [vmem:[%s1 + $0x50] sm:$0xff]
    %v34 = vld [vmem:[%s1 + $0x58] sm:$0xff]
    %v35 = vld [vmem:[%s1 + $0x60] sm:$0xff]
    %v36 = vld [vmem:[%s1 + $0x68] sm:$0xff]
    %v37 = vld [vmem:[%s1 + $0x70] sm:$0xff]
    %v38 = vld [vmem:[%s1 + $0x78] sm:$0xff]
    %v39 = vld [vmem:[%s1 + $0x80] sm:$0xff]
    %v40 = vld [vmem:[%s1 + $0x88] sm:$0xff]
    %v41 = vld [vmem:[%s1 + $0x90] sm:$0xff]
    %v42 = vld [vmem:[%s1 + $0x98] sm:$0xff]
    %v43 = vld [vmem:[%s1 + $0xa0] sm:$0xff]
    %v44 = vld [vmem:[%s1 + $0xa8] sm:$0xff]
    %v45 = vld [vmem:[%s1 + $0xb0] sm:$0xff]
    %v46 = vld [vmem:[%s1 + $0xb8] sm:$0xff]
    %v47 = vld [vmem:[%s1 + $0xc0] sm:$0xff]
    %v48 = vld [vmem:[%s1 + $0xc8] sm:$0xff]
    %v49 = vld [vmem:[%s1 + $0xd0] sm:$0xff]
    %v50 = vld [vmem:[%s1 + $0xd8] sm:$0xff]
    %v51 = vld [vmem:[%s1 + $0xe0] sm:$0xff]
    %v52 = vld [vmem:[%s1 + $0xe8] sm:$0xff]
    %v53 = vld [vmem:[%s1 + $0xf0] sm:$0xff]
    %v54 = vld [vmem:[%s1 + $0xf8] sm:$0xff]
    %v55 = vld [vmem:[%s1 + $0x100] sm:$0xff]
    %v56 = vld [vmem:[%s1 + $0x108] sm:$0xff]
    %v57 = vld [vmem:[%s1 + $0x110] sm:$0xff]
    %v58 = vld [vmem:[%s1 + $0x118] sm:$0xff]
    %v59 = vld [vmem:[%s1 + $0x120] sm:$0xff]
    %v60 = vld [vmem:[%s1 + $0x128] sm:$0xff]
    %v61 = vld [vmem:[%s1 + $0x130] sm:$0xff]
    %v62 = vld [vmem:[%s1 + $0x138] sm:$0xff]
    %v63 = vld [vmem:[%s1 + $0x140] sm:$0xff]
    %v64 = vld [vmem:[%s1 + $0x148] sm:$0xff]
    %v65 = vld [vmem:[%s1 + $0x150] sm:$0xff]
    %v66 = vld [vmem:[%s1 + $0x158] sm:$0xff]
    %v67 = vld [vmem:[%s1 + $0x160] sm:$0xff]
    %v68 = vld [vmem:[%s1 + $0x168] sm:$0xff]
    %v69 = vld [vmem:[%s1 + $0x170] sm:$0xff]
    %v70 = vld [vmem:[%s1 + $0x178] sm:$0xff]
    %v71 = vld [vmem:[%s1 + $0x180] sm:$0xff]
    %v72 = vld [vmem:[%s1 + $0x188] sm:$0xff]
    %v73 = vld [vmem:[%s1 + $0x190] sm:$0xff]
    %v74 = vld [vmem:[%s1 + $0x198] sm:$0xff]
    %v75 = vld [vmem:[%s1 + $0x1a0] sm:$0xff]
    %v76 = vld [vmem:[%s1 + $0x1a8] sm:$0xff]
    %v77 = vld [vmem:[%s1 + $0x1b0] sm:$0xff]
    %v78 = vld [vmem:[%s1 + $0x1b8] sm:$0xff]
    %v79 = vld [vmem:[%s1 + $0x1c0] sm:$0xff]
    %v80 = vld [vmem:[%s1 + $0x1c8] sm:$0xff]
    %v81 = vld [vmem:[%s1 + $0x1d0] sm:$0xff]
    %v82 = vld [vmem:[%s1 + $0x1d8] sm:$0xff]
    %v83 = vld [vmem:[%s1 + $0x1e0] sm:$0xff]
    %v84 = vld [vmem:[%s1 + $0x1e8] sm:$0xff]
    %v85 = vld [vmem:[%s1 + $0x1f0] sm:$0xff]
    %v86 = vld [vmem:[%s1 + $0x1f8] sm:$0xff]
    %v87 = vld [vmem:[%s1 + $0x200] sm:$0xff]
    %v88 = vld [vmem:[%s1 + $0x208] sm:$0xff]
    %v89 = vld [vmem:[%s1 + $0x210] sm:$0xff]
    %v90 = vld [vmem:[%s1 + $0x218] sm:$0xff]
    %v91 = vld [vmem:[%s1 + $0x220] sm:$0xff]
    %v92 = vld [vmem:[%s1 + $0x228] sm:$0xff]
    %v93 = vld [vmem:[%s1 + $0x230] sm:$0xff]
    %v94 = vld [vmem:[%s1 + $0x238] sm:$0xff]
    %v95 = vld [vmem:[%s1 + $0x240] sm:$0xff]
    %v96 = vld [vmem:[%s1 + $0x248] sm:$0xff]
    %v97 = vld [vmem:[%s1 + $0x250] sm:$0xff]
    %v98 = vld [vmem:[%s1 + $0x258] sm:$0xff]
    %v99 = vld [vmem:[%s1 + $0x260] sm:$0xff]
    %v100 = vld [vmem:[%s1 + $0x268] sm:$0xff]
    %v101 = vld [vmem:[%s1 + $0x270] sm:$0xff]
    %v102 = vld [vmem:[%s1 + $0x278] sm:$0xff]
    %v103 = vld [vmem:[%s1 + $0x280] sm:$0xff]
    %v104 = vld [vmem:[%s1 + $0x288] sm:$0xff]
    %v105 = vld [vmem:[%s1 + $0x290] sm:$0xff]
    %v106 = vld [vmem:[%s1 + $0x298] sm:$0xff]
    %v107 = vld [vmem:[%s1 + $0x2a0] sm:$0xff]
    %v108 = vld [vmem:[%s1 + $0x2a8] sm:$0xff]
    %v109 = vld [vmem:[%s1 + $0x2b0] sm:$0xff]
    %v110 = vld [vmem:[%s1 + $0x2b8] sm:$0xff]
    %v111 = vld [vmem:[%s1 + $0x2c0] sm:$0xff]
    %v112 = vld [vmem:[%s1 + $0x2c8] sm:$0xff]
    %v113 = vld [vmem:[%s1 + $0x2d0] sm:$0xff]
    %v114 = vld [vmem:[%s1 + $0x2d8] sm:$0xff]
    %v115 = vld [vmem:[%s1 + $0x2e0] sm:$0xff]
    %v116 = vld [vmem:[%s1 + $0x2e8] sm:$0xff]
    %v117 = vld [vmem:[%s1 + $0x2f0] sm:$0xff]
    %v118 = vld [vmem:[%s1 + $0x2f8] sm:$0xff]
    %v119 = vld [vmem:[%s1 + $0x300] sm:$0xff]
    %v120 = vld [vmem:[%s1 + $0x308] sm:$0xff]
    %v121 = vld [vmem:[%s1 + $0x310] sm:$0xff]
    %v122 = vld [vmem:[%s1 + $0x318] sm:$0xff]
    %v123 = vld [vmem:[%s1 + $0x320] sm:$0xff]
    %v124 = vld [vmem:[%s1 + $0x328] sm:$0xff]
    %v125 = vld [vmem:[%s1 + $0x330] sm:$0xff]
    %v126 = vld [vmem:[%s1 + $0x338] sm:$0xff]
    %v127 = vld [vmem:[%s1 + $0x340] sm:$0xff]
    %v128 = vld [vmem:[%s1 + $0x348] sm:$0xff]
    %v129 = vld [vmem:[%s1 + $0x350] sm:$0xff]
    %v130 = vld [vmem:[%s1 + $0x358] sm:$0xff]
    %v131 = vld [vmem:[%s1 + $0x360] sm:$0xff]
    %v132 = vld [vmem:[%s1 + $0x368] sm:$0xff]
    %v133 = vld [vmem:[%s1 + $0x370] sm:$0xff]
    %v134 = vld [vmem:[%s1 + $0x378] sm:$0xff]
    %v135 = vld [vmem:[%s1 + $0x380] sm:$0xff]
    %v136 = vld [vmem:[%s1 + $0x388] sm:$0xff]
    %v137 = vld [vmem:[%s1 + $0x390] sm:$0xff]
    %v138 = vld [vmem:[%s1 + $0x398] sm:$0xff]
    %v139 = vld [vmem:[%s1 + $0x3a0] sm:$0xff]
    %v140 = vld [vmem:[%s1 + $0x3a8] sm:$0xff]
    %v141 = vld [vmem:[%s1 + $0x3b0] sm:$0xff]
    %v142 = vld [vmem:[%s1 + $0x3b8] sm:$0xff]
    %v143 = vld [vmem:[%s1 + $0x3c0] sm:$0xff]
    %v144 = vld [vmem:[%s1 + $0x3c8] sm:$0xff]
    %v145 = vld [vmem:[%s1 + $0x3d0] sm:$0xff]
    %v146 = vld [vmem:[%s1 + $0x3d8] sm:$0xff]
    %v147 = vld [vmem:[%s1 + $0x3e0] sm:$0xff]
    %v148 = vld [vmem:[%s1 + $0x3e8] sm:$0xff]
    %v149 = vld [vmem:[%s1 + $0x3f0] sm:$0xff]
    %v150 = vld [vmem:[%s1 + $0x3f8] sm:$0xff]
    %v151 = vld [vmem:[%s1 + $0x400] sm:$0xff]
    %v152 = vld [vmem:[%s1 + $0x408] sm:$0xff]
    %v153 = vld [vmem:[%s1 + $0x410] sm:$0xff]
    %v154 = vld [vmem:[%s1 + $0x418] sm:$0xff]
    %v155 = vld [vmem:[%s1 + $0x420] sm:$0xff]
    %v156 = vld [vmem:[%s1 + $0x428] sm:$0xff]
    %v157 = vld [vmem:[%s1 + $0x430] sm:$0xff]
    %v158 = vld [vmem:[%s1 + $0x438] sm:$0xff]
    %v159 = vld [vmem:[%s1 + $0x440] sm:$0xff]
    %v160 = vld [vmem:[%s1 + $0x448] sm:$0xff]
    %v161 = vld [vmem:[%s1 + $0x450] sm:$0xff]
    %v162 = vld [vmem:[%s1 + $0x458] sm:$0xff]
    %v163 = vld [vmem:[%s1 + $0x460] sm:$0xff]
    %v164 = vld [vmem:[%s1 + $0x468] sm:$0xff]
    %v165 = vld [vmem:[%s1 + $0x470] sm:$0xff]
    %v166 = vld [vmem:[%s1 + $0x478] sm:$0xff]
    %v167 = vld [vmem:[%s1 + $0x480] sm:$0xff]
    %v168 = vld [vmem:[%s1 + $0x488] sm:$0xff]
    %v169 = vld [vmem:[%s1 + $0x490] sm:$0xff]
    %v170 = vld [vmem:[%s1 + $0x498] sm:$0xff]
    %v171 = vld [vmem:[%s1 + $0x4a0] sm:$0xff]
    %v172 = vld [vmem:[%s1 + $0x4a8] sm:$0xff]
    %v173 = vld [vmem:[%s1 + $0x4b0] sm:$0xff]
    %v174 = vld [vmem:[%s1 + $0x4b8] sm:$0xff]
    %v175 = vld [vmem:[%s1 + $0x4c0] sm:$0xff]
    %v176 = vld [vmem:[%s1 + $0x4c8] sm:$0xff]
    %v177 = vld [vmem:[%s1 + $0x4d0] sm:$0xff]
    %v178 = vld [vmem:[%s1 + $0x4d8] sm:$0xff]
    %v179 = vld [vmem:[%s1 + $0x4e0] sm:$0xff]
    %v180 = vld [vmem:[%s1 + $0x4e8] sm:$0xff]
    %v181 = vld [vmem:[%s1 + $0x4f0] sm:$0xff]
    %v182 = vld [vmem:[%s1 + $0x4f8] sm:$0xff]
    %v183 = vld [vmem:[%s1 + $0x500] sm:$0xff]
    %v184 = vld [vmem:[%s1 + $0x508] sm:$0xff]
    %v185 = vld [vmem:[%s1 + $0x510] sm:$0xff]
    %v186 = vld [vmem:[%s1 + $0x518] sm:$0xff]
    %v187 = vld [vmem:[%s1 + $0x520] sm:$0xff]
    %v188 = vld [vmem:[%s1 + $0x528] sm:$0xff]
    %v189 = vld [vmem:[%s1 + $0x530] sm:$0xff]
    %v190 = vld [vmem:[%s1 + $0x538] sm:$0xff]
    %v191 = vld [vmem:[%s1 + $0x540] sm:$0xff]
    %v192 = vld [vmem:[%s1 + $0x548] sm:$0xff]
    %v193 = vld [vmem:[%s1 + $0x550] sm:$0xff]
    %v194 = vld [vmem:[%s1 + $0x558] sm:$0xff]
    %v195 = vld [vmem:[%s1 + $0x560] sm:$0xff]
    %v196 = vld [vmem:[%s1 + $0x568] sm:$0xff]
    %v197 = vld [vmem:[%s1 + $0x570] sm:$0xff]
    %v198 = vld [vmem:[%s1 + $0x578] sm:$0xff]
    %v199 = vld [vmem:[%s1 + $0x580] sm:$0xff]
    %v200 = vld [vmem:[%s1 + $0x588] sm:$0xff]
    %v201 = vld [vmem:[%s1 + $0x590] sm:$0xff]
    %v202 = vld [vmem:[%s1 + $0x598] sm:$0xff]
    %v203 = vld [vmem:[%s1 + $0x5a0] sm:$0xff]
    %v204 = vld [vmem:[%s1 + $0x5a8] sm:$0xff]
    %v205 = vld [vmem:[%s1 + $0x5b0] sm:$0xff]
    %v206 = vld [vmem:[%s1 + $0x5b8] sm:$0xff]
    %v207 = vld [vmem:[%s1 + $0x5c0] sm:$0xff]
    %v208 = vld [vmem:[%s1 + $0x5c8] sm:$0xff]
    %v209 = vld [vmem:[%s1 + $0x5d0] sm:$0xff]
    %v210 = vld [vmem:[%s1 + $0x5d8] sm:$0xff]
    %v211 = vld [vmem:[%s1 + $0x5e0] sm:$0xff]
    %v212 = vld [vmem:[%s1 + $0x5e8] sm:$0xff]
    %v213 = vld [vmem:[%s1 + $0x5f0] sm:$0xff]
    %v214 = vld [vmem:[%s1 + $0x5f8] sm:$0xff]
    %v215 = vld [vmem:[%s1 + $0x600] sm:$0xff]
    %v216 = vld [vmem:[%s1 + $0x608] sm:$0xff]
    %v217 = vld [vmem:[%s1 + $0x610] sm:$0xff]
    %v218 = vld [vmem:[%s1 + $0x618] sm:$0xff]
    %v219 = vld [vmem:[%s1 + $0x620] sm:$0xff]
    %v220 = vld [vmem:[%s1 + $0x628] sm:$0xff]
    %v221 = vld [vmem:[%s1 + $0x630] sm:$0xff]
    %v222 = vld [vmem:[%s1 + $0x638] sm:$0xff]
    %v223 = vld [vmem:[%s1 + $0x640] sm:$0xff]
    %v224 = vld [vmem:[%s1 + $0x648] sm:$0xff]
    %v225 = vld [vmem:[%s1 + $0x650] sm:$0xff]
    %v226 = vld [vmem:[%s1 + $0x658] sm:$0xff]
    %v227 = vld [vmem:[%s1 + $0x660] sm:$0xff]
    %v228 = vld [vmem:[%s1 + $0x668] sm:$0xff]
    %v229 = vld [vmem:[%s1 + $0x670] sm:$0xff]
    %v230 = vld [vmem:[%s1 + $0x678] sm:$0xff]
    %v231 = vld [vmem:[%s1 + $0x680] sm:$0xff]
    %v232 = vld [vmem:[%s1 + $0x688] sm:$0xff]
    %v233 = vld [vmem:[%s1 + $0x690] sm:$0xff]
    %v234 = vld [vmem:[%s1 + $0x698] sm:$0xff]
    %v235 = vld [vmem:[%s1 + $0x6a0] sm:$0xff]
    %v236 = vld [vmem:[%s1 + $0x6a8] sm:$0xff]
    %v237 = vld [vmem:[%s1 + $0x6b0] sm:$0xff]
    %v238 = vld [vmem:[%s1 + $0x6b8] sm:$0xff]
    %v239 = vld [vmem:[%s1 + $0x6c0] sm:$0xff]
    %v240 = vld [vmem:[%s1 + $0x6c8] sm:$0xff]
    %v241 = vld [vmem:[%s1 + $0x6d0] sm:$0xff]
    %v242 = vld [vmem:[%s1 + $0x6d8] sm:$0xff]
    %v243 = vld [vmem:[%s1 + $0x6e0] sm:$0xff]
    %v244 = vld [vmem:[%s1 + $0x6e8] sm:$0xff]
    %v245 = vld [vmem:[%s1 + $0x6f0] sm:$0xff]
    %v246 = vld [vmem:[%s1 + $0x6f8] sm:$0xff]
    %v247 = vld [vmem:[%s1 + $0x700] sm:$0xff]
    %v248 = vld [vmem:[%s1 + $0x708] sm:$0xff]
    %v249 = vld [vmem:[%s1 + $0x710] sm:$0xff]
    %v250 = vld [vmem:[%s1 + $0x718] sm:$0xff]
    %v251 = vld [vmem:[%s1 + $0x720] sm:$0xff]
    %v252 = vld [vmem:[%s1 + $0x728] sm:$0xff]
    %v253 = vld [vmem:[%s1 + $0x730] sm:$0xff]
    %v254 = vld [vmem:[%s1 + $0x738] sm:$0xff]
    %v255 = vld [vmem:[%s1 + $0x740] sm:$0xff]
    %v256 = vld [vmem:[%s1 + $0x748] sm:$0xff]
    %v257 = vld [vmem:[%s1 + $0x750] sm:$0xff]
    %v258 = vld [vmem:[%s1 + $0x758] sm:$0xff]
    %v259 = vld [vmem:[%s1 + $0x760] sm:$0xff]
    %v260 = vld [vmem:[%s1 + $0x768] sm:$0xff]
    %v261 = vld [vmem:[%s1 + $0x770] sm:$0xff]
    %v262 = vld [vmem:[%s1 + $0x778] sm:$0xff]
    %v263 = vld [vmem:[%s1 + $0x780] sm:$0xff]
    %v264 = vld [vmem:[%s1 + $0x788] sm:$0xff]
    %v265 = vld [vmem:[%s1 + $0x790] sm:$0xff]
    %v266 = vld [vmem:[%s1 + $0x798] sm:$0xff]
    %v267 = vld [vmem:[%s1 + $0x7a0] sm:$0xff]
    %v268 = vld [vmem:[%s1 + $0x7a8] sm:$0xff]
    %v269 = vld [vmem:[%s1 + $0x7b0] sm:$0xff]
    %v270 = vld [vmem:[%s1 + $0x7b8] sm:$0xff]
    %v271 = vld [vmem:[%s1 + $0x7c0] sm:$0xff]
    %v272 = vld [vmem:[%s1 + $0x7c8] sm:$0xff]
    %v273 = vld [vmem:[%s1 + $0x7d0] sm:$0xff]
    %v274 = vld [vmem:[%s1 + $0x7d8] sm:$0xff]
    %v275 = vld [vmem:[%s1 + $0x7e0] sm:$0xff]
    %v276 = vld [vmem:[%s1 + $0x7e8] sm:$0xff]
    %v277 = vld [vmem:[%s1 + $0x7f0] sm:$0xff]
    %v278 = vld [vmem:[%s1 + $0x7f8] sm:$0xff]
    %v279 = vld [vmem:[%s2] sm:$0xf]
    %v281 = vlaneseq
    %v282 = vshrl.u32 %v281, 7
    %v283 = vsub.s32 0, %v282
    %v284 = vrot.slane %v279, %v283
    %v285 = vlaneseq
    %v286 = vshrl.u32 %v285, 7
    %v287 = vsub.s32 1, %v286
    %v288 = vrot.slane %v279, %v287
    %v289 = vlaneseq
    %v290 = vshrl.u32 %v289, 7
    %v291 = vsub.s32 2, %v290
    %v292 = vrot.slane %v279, %v291
    %v293 = vlaneseq
    %v294 = vshrl.u32 %v293, 7
    %v295 = vsub.s32 3, %v294
    %v296 = vrot.slane %v279, %v295
    %v302 = vcombine.high %v22, %v22
    %v304 = vunpack.c.l.s4 1966171168
    %v305 = vunpack.c.0.s8 %v304
    %v306 = vlaneseq
    %v307 = vshrl.u32 %v306, 7
    %v308 = vsub.s32 %v305, %v307
    %v309 = vrot.slane %v22, %v308
    %v311 = vunpack.c.l.s4 1966171168
    %v312 = vunpack.c.0.s8 %v311
    %v313 = vlaneseq
    %v314 = vshrl.u32 %v313, 7
    %v315 = vsub.s32 %v312, %v314
    %v316 = vrot.slane %v302, %v315
    %v317 = vcombine.high %v309, %v309
    %v318 = vcombine.high %v316, %v316
    %v320 = vunpack.c.l.s4 1966171168
    %v321 = vunpack.c.0.s8 %v320
    %v322 = vlaneseq
    %v323 = vshrl.u32 %v322, 7
    %v324 = vsub.s32 %v321, %v323
    %v325 = vrot.slane %v309, %v324
    %v327 = vunpack.c.l.s4 1966171168
    %v328 = vunpack.c.0.s8 %v327
    %v329 = vlaneseq
    %v330 = vshrl.u32 %v329, 7
    %v331 = vsub.s32 %v328, %v330
    %v332 = vrot.slane %v316, %v331
    %v334 = vunpack.c.l.s4 1966171168
    %v335 = vunpack.c.0.s8 %v334
    %v336 = vlaneseq
    %v337 = vshrl.u32 %v336, 7
    %v338 = vsub.s32 %v335, %v337
    %v339 = vrot.slane %v317, %v338
    %v341 = vunpack.c.l.s4 1966171168
    %v342 = vunpack.c.0.s8 %v341
    %v343 = vlaneseq
    %v344 = vshrl.u32 %v343, 7
    %v345 = vsub.s32 %v342, %v344
    %v346 = vrot.slane %v318, %v345
    %v347 = vcombine.high %v325, %v325
    %v348 = vcombine.high %v332, %v332
    %v349 = vcombine.high %v339, %v339
    %v350 = vcombine.high %v346, %v346
    %v615 = vunpack.c.l.b16 %v23
    %v616 = vunpack.c.h.b16 %v23
    %v617 = vunpack.c.l.b16 %v24
    %v618 = vunpack.c.h.b16 %v24
    %v619 = vunpack.c.l.b16 %v25
    %v620 = vunpack.c.h.b16 %v25
    %v621 = vunpack.c.l.b16 %v26
    %v622 = vunpack.c.h.b16 %v26
    %v623 = vunpack.c.l.b16 %v27
    %v624 = vunpack.c.h.b16 %v27
    %v625 = vunpack.c.l.b16 %v28
    %v626 = vunpack.c.h.b16 %v28
    %v627 = vunpack.c.l.b16 %v29
    %v628 = vunpack.c.h.b16 %v29
    %v629 = vunpack.c.l.b16 %v30
    %v630 = vunpack.c.h.b16 %v30
    %v631 = vunpack.c.l.b16 %v31
    %v632 = vunpack.c.h.b16 %v31
    %v633 = vunpack.c.l.b16 %v32
    %v634 = vunpack.c.h.b16 %v32
    %v635 = vunpack.c.l.b16 %v33
    %v636 = vunpack.c.h.b16 %v33
    %v637 = vunpack.c.l.b16 %v34
    %v638 = vunpack.c.h.b16 %v34
    %v639 = vunpack.c.l.b16 %v35
    %v640 = vunpack.c.h.b16 %v35
    %v641 = vunpack.c.l.b16 %v36
    %v642 = vunpack.c.h.b16 %v36
    %v643 = vunpack.c.l.b16 %v37
    %v644 = vunpack.c.h.b16 %v37
    %v645 = vunpack.c.l.b16 %v38
    %v646 = vunpack.c.h.b16 %v38
    %v647 = vunpack.c.l.b16 %v39
    %v648 = vunpack.c.h.b16 %v39
    %v649 = vunpack.c.l.b16 %v40
    %v650 = vunpack.c.h.b16 %v40
    %v651 = vunpack.c.l.b16 %v41
    %v652 = vunpack.c.h.b16 %v41
    %v653 = vunpack.c.l.b16 %v42
    %v654 = vunpack.c.h.b16 %v42
    %v655 = vunpack.c.l.b16 %v43
    %v656 = vunpack.c.h.b16 %v43
    %v657 = vunpack.c.l.b16 %v44
    %v658 = vunpack.c.h.b16 %v44
    %v659 = vunpack.c.l.b16 %v45
    %v660 = vunpack.c.h.b16 %v45
    %v661 = vunpack.c.l.b16 %v46
    %v662 = vunpack.c.h.b16 %v46
    %v663 = vunpack.c.l.b16 %v47
    %v664 = vunpack.c.h.b16 %v47
    %v665 = vunpack.c.l.b16 %v48
    %v666 = vunpack.c.h.b16 %v48
    %v667 = vunpack.c.l.b16 %v49
    %v668 = vunpack.c.h.b16 %v49
    %v669 = vunpack.c.l.b16 %v50
    %v670 = vunpack.c.h.b16 %v50
    %v671 = vunpack.c.l.b16 %v51
    %v672 = vunpack.c.h.b16 %v51
    %v673 = vunpack.c.l.b16 %v52
    %v674 = vunpack.c.h.b16 %v52
    %v675 = vunpack.c.l.b16 %v53
    %v676 = vunpack.c.h.b16 %v53
    %v677 = vunpack.c.l.b16 %v54
    %v678 = vunpack.c.h.b16 %v54
    %v679 = vunpack.c.l.b16 %v55
    %v680 = vunpack.c.h.b16 %v55
    %v681 = vunpack.c.l.b16 %v56
    %v682 = vunpack.c.h.b16 %v56
    %v683 = vunpack.c.l.b16 %v57
    %v684 = vunpack.c.h.b16 %v57
    %v685 = vunpack.c.l.b16 %v58
    %v686 = vunpack.c.h.b16 %v58
    %v687 = vunpack.c.l.b16 %v59
    %v688 = vunpack.c.h.b16 %v59
    %v689 = vunpack.c.l.b16 %v60
    %v690 = vunpack.c.h.b16 %v60
    %v691 = vunpack.c.l.b16 %v61
    %v692 = vunpack.c.h.b16 %v61
    %v693 = vunpack.c.l.b16 %v62
    %v694 = vunpack.c.h.b16 %v62
    %v695 = vunpack.c.l.b16 %v63
    %v696 = vunpack.c.h.b16 %v63
    %v697 = vunpack.c.l.b16 %v64
    %v698 = vunpack.c.h.b16 %v64
    %v699 = vunpack.c.l.b16 %v65
    %v700 = vunpack.c.h.b16 %v65
    %v701 = vunpack.c.l.b16 %v66
    %v702 = vunpack.c.h.b16 %v66
    %v703 = vunpack.c.l.b16 %v67
    %v704 = vunpack.c.h.b16 %v67
    %v705 = vunpack.c.l.b16 %v68
    %v706 = vunpack.c.h.b16 %v68
    %v707 = vunpack.c.l.b16 %v69
    %v708 = vunpack.c.h.b16 %v69
    %v709 = vunpack.c.l.b16 %v70
    %v710 = vunpack.c.h.b16 %v70
    %v711 = vunpack.c.l.b16 %v71
    %v712 = vunpack.c.h.b16 %v71
    %v713 = vunpack.c.l.b16 %v72
    %v714 = vunpack.c.h.b16 %v72
    %v715 = vunpack.c.l.b16 %v73
    %v716 = vunpack.c.h.b16 %v73
    %v717 = vunpack.c.l.b16 %v74
    %v718 = vunpack.c.h.b16 %v74
    %v719 = vunpack.c.l.b16 %v75
    %v720 = vunpack.c.h.b16 %v75
    %v721 = vunpack.c.l.b16 %v76
    %v722 = vunpack.c.h.b16 %v76
    %v723 = vunpack.c.l.b16 %v77
    %v724 = vunpack.c.h.b16 %v77
    %v725 = vunpack.c.l.b16 %v78
    %v726 = vunpack.c.h.b16 %v78
    %v727 = vunpack.c.l.b16 %v79
    %v728 = vunpack.c.h.b16 %v79
    %v729 = vunpack.c.l.b16 %v80
    %v730 = vunpack.c.h.b16 %v80
    %v731 = vunpack.c.l.b16 %v81
    %v732 = vunpack.c.h.b16 %v81
    %v733 = vunpack.c.l.b16 %v82
    %v734 = vunpack.c.h.b16 %v82
    %v735 = vunpack.c.l.b16 %v83
    %v736 = vunpack.c.h.b16 %v83
    %v737 = vunpack.c.l.b16 %v84
    %v738 = vunpack.c.h.b16 %v84
    %v739 = vunpack.c.l.b16 %v85
    %v740 = vunpack.c.h.b16 %v85
    %v741 = vunpack.c.l.b16 %v86
    %v742 = vunpack.c.h.b16 %v86
    %v743 = vunpack.c.l.b16 %v87
    %v744 = vunpack.c.h.b16 %v87
    %v745 = vunpack.c.l.b16 %v88
    %v746 = vunpack.c.h.b16 %v88
    %v747 = vunpack.c.l.b16 %v89
    %v748 = vunpack.c.h.b16 %v89
    %v749 = vunpack.c.l.b16 %v90
    %v750 = vunpack.c.h.b16 %v90
    %v751 = vunpack.c.l.b16 %v91
    %v752 = vunpack.c.h.b16 %v91
    %v753 = vunpack.c.l.b16 %v92
    %v754 = vunpack.c.h.b16 %v92
    %v755 = vunpack.c.l.b16 %v93
    %v756 = vunpack.c.h.b16 %v93
    %v757 = vunpack.c.l.b16 %v94
    %v758 = vunpack.c.h.b16 %v94
    %v759 = vunpack.c.l.b16 %v95
    %v760 = vunpack.c.h.b16 %v95
    %v761 = vunpack.c.l.b16 %v96
    %v762 = vunpack.c.h.b16 %v96
    %v763 = vunpack.c.l.b16 %v97
    %v764 = vunpack.c.h.b16 %v97
    %v765 = vunpack.c.l.b16 %v98
    %v766 = vunpack.c.h.b16 %v98
    %v767 = vunpack.c.l.b16 %v99
    %v768 = vunpack.c.h.b16 %v99
    %v769 = vunpack.c.l.b16 %v100
    %v770 = vunpack.c.h.b16 %v100
    %v771 = vunpack.c.l.b16 %v101
    %v772 = vunpack.c.h.b16 %v101
    %v773 = vunpack.c.l.b16 %v102
    %v774 = vunpack.c.h.b16 %v102
    %v775 = vunpack.c.l.b16 %v103
    %v776 = vunpack.c.h.b16 %v103
    %v777 = vunpack.c.l.b16 %v104
    %v778 = vunpack.c.h.b16 %v104
    %v779 = vunpack.c.l.b16 %v105
    %v780 = vunpack.c.h.b16 %v105
    %v781 = vunpack.c.l.b16 %v106
    %v782 = vunpack.c.h.b16 %v106
    %v783 = vunpack.c.l.b16 %v107
    %v784 = vunpack.c.h.b16 %v107
    %v785 = vunpack.c.l.b16 %v108
    %v786 = vunpack.c.h.b16 %v108
    %v787 = vunpack.c.l.b16 %v109
    %v788 = vunpack.c.h.b16 %v109
    %v789 = vunpack.c.l.b16 %v110
    %v790 = vunpack.c.h.b16 %v110
    %v791 = vunpack.c.l.b16 %v111
    %v792 = vunpack.c.h.b16 %v111
    %v793 = vunpack.c.l.b16 %v112
    %v794 = vunpack.c.h.b16 %v112
    %v795 = vunpack.c.l.b16 %v113
    %v796 = vunpack.c.h.b16 %v113
    %v797 = vunpack.c.l.b16 %v114
    %v798 = vunpack.c.h.b16 %v114
    %v799 = vunpack.c.l.b16 %v115
    %v800 = vunpack.c.h.b16 %v115
    %v801 = vunpack.c.l.b16 %v116
    %v802 = vunpack.c.h.b16 %v116
    %v803 = vunpack.c.l.b16 %v117
    %v804 = vunpack.c.h.b16 %v117
    %v805 = vunpack.c.l.b16 %v118
    %v806 = vunpack.c.h.b16 %v118
    %v807 = vunpack.c.l.b16 %v119
    %v808 = vunpack.c.h.b16 %v119
    %v809 = vunpack.c.l.b16 %v120
    %v810 = vunpack.c.h.b16 %v120
    %v811 = vunpack.c.l.b16 %v121
    %v812 = vunpack.c.h.b16 %v121
    %v813 = vunpack.c.l.b16 %v122
    %v814 = vunpack.c.h.b16 %v122
    %v815 = vunpack.c.l.b16 %v123
    %v816 = vunpack.c.h.b16 %v123
    %v817 = vunpack.c.l.b16 %v124
    %v818 = vunpack.c.h.b16 %v124
    %v819 = vunpack.c.l.b16 %v125
    %v820 = vunpack.c.h.b16 %v125
    %v821 = vunpack.c.l.b16 %v126
    %v822 = vunpack.c.h.b16 %v126
    %v823 = vunpack.c.l.b16 %v127
    %v824 = vunpack.c.h.b16 %v127
    %v825 = vunpack.c.l.b16 %v128
    %v826 = vunpack.c.h.b16 %v128
    %v827 = vunpack.c.l.b16 %v129
    %v828 = vunpack.c.h.b16 %v129
    %v829 = vunpack.c.l.b16 %v130
    %v830 = vunpack.c.h.b16 %v130
    %v831 = vunpack.c.l.b16 %v131
    %v832 = vunpack.c.h.b16 %v131
    %v833 = vunpack.c.l.b16 %v132
    %v834 = vunpack.c.h.b16 %v132
    %v835 = vunpack.c.l.b16 %v133
    %v836 = vunpack.c.h.b16 %v133
    %v837 = vunpack.c.l.b16 %v134
    %v838 = vunpack.c.h.b16 %v134
    %v839 = vunpack.c.l.b16 %v135
    %v840 = vunpack.c.h.b16 %v135
    %v841 = vunpack.c.l.b16 %v136
    %v842 = vunpack.c.h.b16 %v136
    %v843 = vunpack.c.l.b16 %v137
    %v844 = vunpack.c.h.b16 %v137
    %v845 = vunpack.c.l.b16 %v138
    %v846 = vunpack.c.h.b16 %v138
    %v847 = vunpack.c.l.b16 %v139
    %v848 = vunpack.c.h.b16 %v139
    %v849 = vunpack.c.l.b16 %v140
    %v850 = vunpack.c.h.b16 %v140
    %v851 = vunpack.c.l.b16 %v141
    %v852 = vunpack.c.h.b16 %v141
    %v853 = vunpack.c.l.b16 %v142
    %v854 = vunpack.c.h.b16 %v142
    %v855 = vunpack.c.l.b16 %v143
    %v856 = vunpack.c.h.b16 %v143
    %v857 = vunpack.c.l.b16 %v144
    %v858 = vunpack.c.h.b16 %v144
    %v859 = vunpack.c.l.b16 %v145
    %v860 = vunpack.c.h.b16 %v145
    %v861 = vunpack.c.l.b16 %v146
    %v862 = vunpack.c.h.b16 %v146
    %v863 = vunpack.c.l.b16 %v147
    %v864 = vunpack.c.h.b16 %v147
    %v865 = vunpack.c.l.b16 %v148
    %v866 = vunpack.c.h.b16 %v148
    %v867 = vunpack.c.l.b16 %v149
    %v868 = vunpack.c.h.b16 %v149
    %v869 = vunpack.c.l.b16 %v150
    %v870 = vunpack.c.h.b16 %v150
    %v871 = vunpack.c.l.b16 %v151
    %v872 = vunpack.c.h.b16 %v151
    %v873 = vunpack.c.l.b16 %v152
    %v874 = vunpack.c.h.b16 %v152
    %v875 = vunpack.c.l.b16 %v153
    %v876 = vunpack.c.h.b16 %v153
    %v877 = vunpack.c.l.b16 %v154
    %v878 = vunpack.c.h.b16 %v154
    %v879 = vunpack.c.l.b16 %v155
    %v880 = vunpack.c.h.b16 %v155
    %v881 = vunpack.c.l.b16 %v156
    %v882 = vunpack.c.h.b16 %v156
    %v883 = vunpack.c.l.b16 %v157
    %v884 = vunpack.c.h.b16 %v157
    %v885 = vunpack.c.l.b16 %v158
    %v886 = vunpack.c.h.b16 %v158
    %v887 = vunpack.c.l.b16 %v159
    %v888 = vunpack.c.h.b16 %v159
    %v889 = vunpack.c.l.b16 %v160
    %v890 = vunpack.c.h.b16 %v160
    %v891 = vunpack.c.l.b16 %v161
    %v892 = vunpack.c.h.b16 %v161
    %v893 = vunpack.c.l.b16 %v162
    %v894 = vunpack.c.h.b16 %v162
    %v895 = vunpack.c.l.b16 %v163
    %v896 = vunpack.c.h.b16 %v163
    %v897 = vunpack.c.l.b16 %v164
    %v898 = vunpack.c.h.b16 %v164
    %v899 = vunpack.c.l.b16 %v165
    %v900 = vunpack.c.h.b16 %v165
    %v901 = vunpack.c.l.b16 %v166
    %v902 = vunpack.c.h.b16 %v166
    %v903 = vunpack.c.l.b16 %v167
    %v904 = vunpack.c.h.b16 %v167
    %v905 = vunpack.c.l.b16 %v168
    %v906 = vunpack.c.h.b16 %v168
    %v907 = vunpack.c.l.b16 %v169
    %v908 = vunpack.c.h.b16 %v169
    %v909 = vunpack.c.l.b16 %v170
    %v910 = vunpack.c.h.b16 %v170
    %v911 = vunpack.c.l.b16 %v171
    %v912 = vunpack.c.h.b16 %v171
    %v913 = vunpack.c.l.b16 %v172
    %v914 = vunpack.c.h.b16 %v172
    %v915 = vunpack.c.l.b16 %v173
    %v916 = vunpack.c.h.b16 %v173
    %v917 = vunpack.c.l.b16 %v174
    %v918 = vunpack.c.h.b16 %v174
    %v919 = vunpack.c.l.b16 %v175
    %v920 = vunpack.c.h.b16 %v175
    %v921 = vunpack.c.l.b16 %v176
    %v922 = vunpack.c.h.b16 %v176
    %v923 = vunpack.c.l.b16 %v177
    %v924 = vunpack.c.h.b16 %v177
    %v925 = vunpack.c.l.b16 %v178
    %v926 = vunpack.c.h.b16 %v178
    %v927 = vunpack.c.l.b16 %v179
    %v928 = vunpack.c.h.b16 %v179
    %v929 = vunpack.c.l.b16 %v180
    %v930 = vunpack.c.h.b16 %v180
    %v931 = vunpack.c.l.b16 %v181
    %v932 = vunpack.c.h.b16 %v181
    %v933 = vunpack.c.l.b16 %v182
    %v934 = vunpack.c.h.b16 %v182
    %v935 = vunpack.c.l.b16 %v183
    %v936 = vunpack.c.h.b16 %v183
    %v937 = vunpack.c.l.b16 %v184
    %v938 = vunpack.c.h.b16 %v184
    %v939 = vunpack.c.l.b16 %v185
    %v940 = vunpack.c.h.b16 %v185
    %v941 = vunpack.c.l.b16 %v186
    %v942 = vunpack.c.h.b16 %v186
    %v943 = vunpack.c.l.b16 %v187
    %v944 = vunpack.c.h.b16 %v187
    %v945 = vunpack.c.l.b16 %v188
    %v946 = vunpack.c.h.b16 %v188
    %v947 = vunpack.c.l.b16 %v189
    %v948 = vunpack.c.h.b16 %v189
    %v949 = vunpack.c.l.b16 %v190
    %v950 = vunpack.c.h.b16 %v190
    %v951 = vunpack.c.l.b16 %v191
    %v952 = vunpack.c.h.b16 %v191
    %v953 = vunpack.c.l.b16 %v192
    %v954 = vunpack.c.h.b16 %v192
    %v955 = vunpack.c.l.b16 %v193
    %v956 = vunpack.c.h.b16 %v193
    %v957 = vunpack.c.l.b16 %v194
    %v958 = vunpack.c.h.b16 %v194
    %v959 = vunpack.c.l.b16 %v195
    %v960 = vunpack.c.h.b16 %v195
    %v961 = vunpack.c.l.b16 %v196
    %v962 = vunpack.c.h.b16 %v196
    %v963 = vunpack.c.l.b16 %v197
    %v964 = vunpack.c.h.b16 %v197
    %v965 = vunpack.c.l.b16 %v198
    %v966 = vunpack.c.h.b16 %v198
    %v967 = vunpack.c.l.b16 %v199
    %v968 = vunpack.c.h.b16 %v199
    %v969 = vunpack.c.l.b16 %v200
    %v970 = vunpack.c.h.b16 %v200
    %v971 = vunpack.c.l.b16 %v201
    %v972 = vunpack.c.h.b16 %v201
    %v973 = vunpack.c.l.b16 %v202
    %v974 = vunpack.c.h.b16 %v202
    %v975 = vunpack.c.l.b16 %v203
    %v976 = vunpack.c.h.b16 %v203
    %v977 = vunpack.c.l.b16 %v204
    %v978 = vunpack.c.h.b16 %v204
    %v979 = vunpack.c.l.b16 %v205
    %v980 = vunpack.c.h.b16 %v205
    %v981 = vunpack.c.l.b16 %v206
    %v982 = vunpack.c.h.b16 %v206
    %v983 = vunpack.c.l.b16 %v207
    %v984 = vunpack.c.h.b16 %v207
    %v985 = vunpack.c.l.b16 %v208
    %v986 = vunpack.c.h.b16 %v208
    %v987 = vunpack.c.l.b16 %v209
    %v988 = vunpack.c.h.b16 %v209
    %v989 = vunpack.c.l.b16 %v210
    %v990 = vunpack.c.h.b16 %v210
    %v991 = vunpack.c.l.b16 %v211
    %v992 = vunpack.c.h.b16 %v211
    %v993 = vunpack.c.l.b16 %v212
    %v994 = vunpack.c.h.b16 %v212
    %v995 = vunpack.c.l.b16 %v213
    %v996 = vunpack.c.h.b16 %v213
    %v997 = vunpack.c.l.b16 %v214
    %v998 = vunpack.c.h.b16 %v214
    %v999 = vunpack.c.l.b16 %v215
    %v1000 = vunpack.c.h.b16 %v215
    %v1001 = vunpack.c.l.b16 %v216
    %v1002 = vunpack.c.h.b16 %v216
    %v1003 = vunpack.c.l.b16 %v217
    %v1004 = vunpack.c.h.b16 %v217
    %v1005 = vunpack.c.l.b16 %v218
    %v1006 = vunpack.c.h.b16 %v218
    %v1007 = vunpack.c.l.b16 %v219
    %v1008 = vunpack.c.h.b16 %v219
    %v1009 = vunpack.c.l.b16 %v220
    %v1010 = vunpack.c.h.b16 %v220
    %v1011 = vunpack.c.l.b16 %v221
    %v1012 = vunpack.c.h.b16 %v221
    %v1013 = vunpack.c.l.b16 %v222
    %v1014 = vunpack.c.h.b16 %v222
    %v1015 = vunpack.c.l.b16 %v223
    %v1016 = vunpack.c.h.b16 %v223
    %v1017 = vunpack.c.l.b16 %v224
    %v1018 = vunpack.c.h.b16 %v224
    %v1019 = vunpack.c.l.b16 %v225
    %v1020 = vunpack.c.h.b16 %v225
    %v1021 = vunpack.c.l.b16 %v226
    %v1022 = vunpack.c.h.b16 %v226
    %v1023 = vunpack.c.l.b16 %v227
    %v1024 = vunpack.c.h.b16 %v227
    %v1025 = vunpack.c.l.b16 %v228
    %v1026 = vunpack.c.h.b16 %v228
    %v1027 = vunpack.c.l.b16 %v229
    %v1028 = vunpack.c.h.b16 %v229
    %v1029 = vunpack.c.l.b16 %v230
    %v1030 = vunpack.c.h.b16 %v230
    %v1031 = vunpack.c.l.b16 %v231
    %v1032 = vunpack.c.h.b16 %v231
    %v1033 = vunpack.c.l.b16 %v232
    %v1034 = vunpack.c.h.b16 %v232
    %v1035 = vunpack.c.l.b16 %v233
    %v1036 = vunpack.c.h.b16 %v233
    %v1037 = vunpack.c.l.b16 %v234
    %v1038 = vunpack.c.h.b16 %v234
    %v1039 = vunpack.c.l.b16 %v235
    %v1040 = vunpack.c.h.b16 %v235
    %v1041 = vunpack.c.l.b16 %v236
    %v1042 = vunpack.c.h.b16 %v236
    %v1043 = vunpack.c.l.b16 %v237
    %v1044 = vunpack.c.h.b16 %v237
    %v1045 = vunpack.c.l.b16 %v238
    %v1046 = vunpack.c.h.b16 %v238
    %v1047 = vunpack.c.l.b16 %v239
    %v1048 = vunpack.c.h.b16 %v239
    %v1049 = vunpack.c.l.b16 %v240
    %v1050 = vunpack.c.h.b16 %v240
    %v1051 = vunpack.c.l.b16 %v241
    %v1052 = vunpack.c.h.b16 %v241
    %v1053 = vunpack.c.l.b16 %v242
    %v1054 = vunpack.c.h.b16 %v242
    %v1055 = vunpack.c.l.b16 %v243
    %v1056 = vunpack.c.h.b16 %v243
    %v1057 = vunpack.c.l.b16 %v244
    %v1058 = vunpack.c.h.b16 %v244
    %v1059 = vunpack.c.l.b16 %v245
    %v1060 = vunpack.c.h.b16 %v245
    %v1061 = vunpack.c.l.b16 %v246
    %v1062 = vunpack.c.h.b16 %v246
    %v1063 = vunpack.c.l.b16 %v247
    %v1064 = vunpack.c.h.b16 %v247
    %v1065 = vunpack.c.l.b16 %v248
    %v1066 = vunpack.c.h.b16 %v248
    %v1067 = vunpack.c.l.b16 %v249
    %v1068 = vunpack.c.h.b16 %v249
    %v1069 = vunpack.c.l.b16 %v250
    %v1070 = vunpack.c.h.b16 %v250
    %v1071 = vunpack.c.l.b16 %v251
    %v1072 = vunpack.c.h.b16 %v251
    %v1073 = vunpack.c.l.b16 %v252
    %v1074 = vunpack.c.h.b16 %v252
    %v1075 = vunpack.c.l.b16 %v253
    %v1076 = vunpack.c.h.b16 %v253
    %v1077 = vunpack.c.l.b16 %v254
    %v1078 = vunpack.c.h.b16 %v254
    %v1079 = vunpack.c.l.b16 %v255
    %v1080 = vunpack.c.h.b16 %v255
    %v1081 = vunpack.c.l.b16 %v256
    %v1082 = vunpack.c.h.b16 %v256
    %v1083 = vunpack.c.l.b16 %v257
    %v1084 = vunpack.c.h.b16 %v257
    %v1085 = vunpack.c.l.b16 %v258
    %v1086 = vunpack.c.h.b16 %v258
    %v1087 = vunpack.c.l.b16 %v259
    %v1088 = vunpack.c.h.b16 %v259
    %v1089 = vunpack.c.l.b16 %v260
    %v1090 = vunpack.c.h.b16 %v260
    %v1091 = vunpack.c.l.b16 %v261
    %v1092 = vunpack.c.h.b16 %v261
    %v1093 = vunpack.c.l.b16 %v262
    %v1094 = vunpack.c.h.b16 %v262
    %v1095 = vunpack.c.l.b16 %v263
    %v1096 = vunpack.c.h.b16 %v263
    %v1097 = vunpack.c.l.b16 %v264
    %v1098 = vunpack.c.h.b16 %v264
    %v1099 = vunpack.c.l.b16 %v265
    %v1100 = vunpack.c.h.b16 %v265
    %v1101 = vunpack.c.l.b16 %v266
    %v1102 = vunpack.c.h.b16 %v266
    %v1103 = vunpack.c.l.b16 %v267
    %v1104 = vunpack.c.h.b16 %v267
    %v1105 = vunpack.c.l.b16 %v268
    %v1106 = vunpack.c.h.b16 %v268
    %v1107 = vunpack.c.l.b16 %v269
    %v1108 = vunpack.c.h.b16 %v269
    %v1109 = vunpack.c.l.b16 %v270
    %v1110 = vunpack.c.h.b16 %v270
    %v1111 = vunpack.c.l.b16 %v271
    %v1112 = vunpack.c.h.b16 %v271
    %v1113 = vunpack.c.l.b16 %v272
    %v1114 = vunpack.c.h.b16 %v272
    %v1115 = vunpack.c.l.b16 %v273
    %v1116 = vunpack.c.h.b16 %v273
    %v1117 = vunpack.c.l.b16 %v274
    %v1118 = vunpack.c.h.b16 %v274
    %v1119 = vunpack.c.l.b16 %v275
    %v1120 = vunpack.c.h.b16 %v275
    %v1121 = vunpack.c.l.b16 %v276
    %v1122 = vunpack.c.h.b16 %v276
    %v1123 = vunpack.c.l.b16 %v277
    %v1124 = vunpack.c.h.b16 %v277
    %v1125 = vunpack.c.l.b16 %v278
    %v1126 = vunpack.c.h.b16 %v278
    %v1127 = vpack.c.b16 %v619, %v615
    %v1128 = vpack.c.b16 %v620, %v616
    %v1129 = vpack.c.b16 %v621, %v617
    %v1130 = vpack.c.b16 %v622, %v618
    %v1131 = vpack.c.b16 %v627, %v623
    %v1132 = vpack.c.b16 %v628, %v624
    %v1133 = vpack.c.b16 %v629, %v625
    %v1134 = vpack.c.b16 %v630, %v626
    %v1135 = vpack.c.b16 %v635, %v631
    %v1136 = vpack.c.b16 %v636, %v632
    %v1137 = vpack.c.b16 %v637, %v633
    %v1138 = vpack.c.b16 %v638, %v634
    %v1139 = vpack.c.b16 %v643, %v639
    %v1140 = vpack.c.b16 %v644, %v640
    %v1141 = vpack.c.b16 %v645, %v641
    %v1142 = vpack.c.b16 %v646, %v642
    %v1143 = vpack.c.b16 %v651, %v647
    %v1144 = vpack.c.b16 %v652, %v648
    %v1145 = vpack.c.b16 %v653, %v649
    %v1146 = vpack.c.b16 %v654, %v650
    %v1147 = vpack.c.b16 %v659, %v655
    %v1148 = vpack.c.b16 %v660, %v656
    %v1149 = vpack.c.b16 %v661, %v657
    %v1150 = vpack.c.b16 %v662, %v658
    %v1151 = vpack.c.b16 %v667, %v663
    %v1152 = vpack.c.b16 %v668, %v664
    %v1153 = vpack.c.b16 %v669, %v665
    %v1154 = vpack.c.b16 %v670, %v666
    %v1155 = vpack.c.b16 %v675, %v671
    %v1156 = vpack.c.b16 %v676, %v672
    %v1157 = vpack.c.b16 %v677, %v673
    %v1158 = vpack.c.b16 %v678, %v674
    %v1159 = vpack.c.b16 %v683, %v679
    %v1160 = vpack.c.b16 %v684, %v680
    %v1161 = vpack.c.b16 %v685, %v681
    %v1162 = vpack.c.b16 %v686, %v682
    %v1163 = vpack.c.b16 %v691, %v687
    %v1164 = vpack.c.b16 %v692, %v688
    %v1165 = vpack.c.b16 %v693, %v689
    %v1166 = vpack.c.b16 %v694, %v690
    %v1167 = vpack.c.b16 %v699, %v695
    %v1168 = vpack.c.b16 %v700, %v696
    %v1169 = vpack.c.b16 %v701, %v697
    %v1170 = vpack.c.b16 %v702, %v698
    %v1171 = vpack.c.b16 %v707, %v703
    %v1172 = vpack.c.b16 %v708, %v704
    %v1173 = vpack.c.b16 %v709, %v705
    %v1174 = vpack.c.b16 %v710, %v706
    %v1175 = vpack.c.b16 %v715, %v711
    %v1176 = vpack.c.b16 %v716, %v712
    %v1177 = vpack.c.b16 %v717, %v713
    %v1178 = vpack.c.b16 %v718, %v714
    %v1179 = vpack.c.b16 %v723, %v719
    %v1180 = vpack.c.b16 %v724, %v720
    %v1181 = vpack.c.b16 %v725, %v721
    %v1182 = vpack.c.b16 %v726, %v722
    %v1183 = vpack.c.b16 %v731, %v727
    %v1184 = vpack.c.b16 %v732, %v728
    %v1185 = vpack.c.b16 %v733, %v729
    %v1186 = vpack.c.b16 %v734, %v730
    %v1187 = vpack.c.b16 %v739, %v735
    %v1188 = vpack.c.b16 %v740, %v736
    %v1189 = vpack.c.b16 %v741, %v737
    %v1190 = vpack.c.b16 %v742, %v738
    %v1191 = vpack.c.b16 %v747, %v743
    %v1192 = vpack.c.b16 %v748, %v744
    %v1193 = vpack.c.b16 %v749, %v745
    %v1194 = vpack.c.b16 %v750, %v746
    %v1195 = vpack.c.b16 %v755, %v751
    %v1196 = vpack.c.b16 %v756, %v752
    %v1197 = vpack.c.b16 %v757, %v753
    %v1198 = vpack.c.b16 %v758, %v754
    %v1199 = vpack.c.b16 %v763, %v759
    %v1200 = vpack.c.b16 %v764, %v760
    %v1201 = vpack.c.b16 %v765, %v761
    %v1202 = vpack.c.b16 %v766, %v762
    %v1203 = vpack.c.b16 %v771, %v767
    %v1204 = vpack.c.b16 %v772, %v768
    %v1205 = vpack.c.b16 %v773, %v769
    %v1206 = vpack.c.b16 %v774, %v770
    %v1207 = vpack.c.b16 %v779, %v775
    %v1208 = vpack.c.b16 %v780, %v776
    %v1209 = vpack.c.b16 %v781, %v777
    %v1210 = vpack.c.b16 %v782, %v778
    %v1211 = vpack.c.b16 %v787, %v783
    %v1212 = vpack.c.b16 %v788, %v784
    %v1213 = vpack.c.b16 %v789, %v785
    %v1214 = vpack.c.b16 %v790, %v786
    %v1215 = vpack.c.b16 %v795, %v791
    %v1216 = vpack.c.b16 %v796, %v792
    %v1217 = vpack.c.b16 %v797, %v793
    %v1218 = vpack.c.b16 %v798, %v794
    %v1219 = vpack.c.b16 %v803, %v799
    %v1220 = vpack.c.b16 %v804, %v800
    %v1221 = vpack.c.b16 %v805, %v801
    %v1222 = vpack.c.b16 %v806, %v802
    %v1223 = vpack.c.b16 %v811, %v807
    %v1224 = vpack.c.b16 %v812, %v808
    %v1225 = vpack.c.b16 %v813, %v809
    %v1226 = vpack.c.b16 %v814, %v810
    %v1227 = vpack.c.b16 %v819, %v815
    %v1228 = vpack.c.b16 %v820, %v816
    %v1229 = vpack.c.b16 %v821, %v817
    %v1230 = vpack.c.b16 %v822, %v818
    %v1231 = vpack.c.b16 %v827, %v823
    %v1232 = vpack.c.b16 %v828, %v824
    %v1233 = vpack.c.b16 %v829, %v825
    %v1234 = vpack.c.b16 %v830, %v826
    %v1235 = vpack.c.b16 %v835, %v831
    %v1236 = vpack.c.b16 %v836, %v832
    %v1237 = vpack.c.b16 %v837, %v833
    %v1238 = vpack.c.b16 %v838, %v834
    %v1239 = vpack.c.b16 %v843, %v839
    %v1240 = vpack.c.b16 %v844, %v840
    %v1241 = vpack.c.b16 %v845, %v841
    %v1242 = vpack.c.b16 %v846, %v842
    %v1243 = vpack.c.b16 %v851, %v847
    %v1244 = vpack.c.b16 %v852, %v848
    %v1245 = vpack.c.b16 %v853, %v849
    %v1246 = vpack.c.b16 %v854, %v850
    %v1247 = vpack.c.b16 %v859, %v855
    %v1248 = vpack.c.b16 %v860, %v856
    %v1249 = vpack.c.b16 %v861, %v857
    %v1250 = vpack.c.b16 %v862, %v858
    %v1251 = vpack.c.b16 %v867, %v863
    %v1252 = vpack.c.b16 %v868, %v864
    %v1253 = vpack.c.b16 %v869, %v865
    %v1254 = vpack.c.b16 %v870, %v866
    %v1255 = vpack.c.b16 %v875, %v871
    %v1256 = vpack.c.b16 %v876, %v872
    %v1257 = vpack.c.b16 %v877, %v873
    %v1258 = vpack.c.b16 %v878, %v874
    %v1259 = vpack.c.b16 %v883, %v879
    %v1260 = vpack.c.b16 %v884, %v880
    %v1261 = vpack.c.b16 %v885, %v881
    %v1262 = vpack.c.b16 %v886, %v882
    %v1263 = vpack.c.b16 %v891, %v887
    %v1264 = vpack.c.b16 %v892, %v888
    %v1265 = vpack.c.b16 %v893, %v889
    %v1266 = vpack.c.b16 %v894, %v890
    %v1267 = vpack.c.b16 %v899, %v895
    %v1268 = vpack.c.b16 %v900, %v896
    %v1269 = vpack.c.b16 %v901, %v897
    %v1270 = vpack.c.b16 %v902, %v898
    %v1271 = vpack.c.b16 %v907, %v903
    %v1272 = vpack.c.b16 %v908, %v904
    %v1273 = vpack.c.b16 %v909, %v905
    %v1274 = vpack.c.b16 %v910, %v906
    %v1275 = vpack.c.b16 %v915, %v911
    %v1276 = vpack.c.b16 %v916, %v912
    %v1277 = vpack.c.b16 %v917, %v913
    %v1278 = vpack.c.b16 %v918, %v914
    %v1279 = vpack.c.b16 %v923, %v919
    %v1280 = vpack.c.b16 %v924, %v920
    %v1281 = vpack.c.b16 %v925, %v921
    %v1282 = vpack.c.b16 %v926, %v922
    %v1283 = vpack.c.b16 %v931, %v927
    %v1284 = vpack.c.b16 %v932, %v928
    %v1285 = vpack.c.b16 %v933, %v929
    %v1286 = vpack.c.b16 %v934, %v930
    %v1287 = vpack.c.b16 %v939, %v935
    %v1288 = vpack.c.b16 %v940, %v936
    %v1289 = vpack.c.b16 %v941, %v937
    %v1290 = vpack.c.b16 %v942, %v938
    %v1291 = vpack.c.b16 %v947, %v943
    %v1292 = vpack.c.b16 %v948, %v944
    %v1293 = vpack.c.b16 %v949, %v945
    %v1294 = vpack.c.b16 %v950, %v946
    %v1295 = vpack.c.b16 %v955, %v951
    %v1296 = vpack.c.b16 %v956, %v952
    %v1297 = vpack.c.b16 %v957, %v953
    %v1298 = vpack.c.b16 %v958, %v954
    %v1299 = vpack.c.b16 %v963, %v959
    %v1300 = vpack.c.b16 %v964, %v960
    %v1301 = vpack.c.b16 %v965, %v961
    %v1302 = vpack.c.b16 %v966, %v962
    %v1303 = vpack.c.b16 %v971, %v967
    %v1304 = vpack.c.b16 %v972, %v968
    %v1305 = vpack.c.b16 %v973, %v969
    %v1306 = vpack.c.b16 %v974, %v970
    %v1307 = vpack.c.b16 %v979, %v975
    %v1308 = vpack.c.b16 %v980, %v976
    %v1309 = vpack.c.b16 %v981, %v977
    %v1310 = vpack.c.b16 %v982, %v978
    %v1311 = vpack.c.b16 %v987, %v983
    %v1312 = vpack.c.b16 %v988, %v984
    %v1313 = vpack.c.b16 %v989, %v985
    %v1314 = vpack.c.b16 %v990, %v986
    %v1315 = vpack.c.b16 %v995, %v991
    %v1316 = vpack.c.b16 %v996, %v992
    %v1317 = vpack.c.b16 %v997, %v993
    %v1318 = vpack.c.b16 %v998, %v994
    %v1319 = vpack.c.b16 %v1003, %v999
    %v1320 = vpack.c.b16 %v1004, %v1000
    %v1321 = vpack.c.b16 %v1005, %v1001
    %v1322 = vpack.c.b16 %v1006, %v1002
    %v1323 = vpack.c.b16 %v1011, %v1007
    %v1324 = vpack.c.b16 %v1012, %v1008
    %v1325 = vpack.c.b16 %v1013, %v1009
    %v1326 = vpack.c.b16 %v1014, %v1010
    %v1327 = vpack.c.b16 %v1019, %v1015
    %v1328 = vpack.c.b16 %v1020, %v1016
    %v1329 = vpack.c.b16 %v1021, %v1017
    %v1330 = vpack.c.b16 %v1022, %v1018
    %v1331 = vpack.c.b16 %v1027, %v1023
    %v1332 = vpack.c.b16 %v1028, %v1024
    %v1333 = vpack.c.b16 %v1029, %v1025
    %v1334 = vpack.c.b16 %v1030, %v1026
    %v1335 = vpack.c.b16 %v1035, %v1031
    %v1336 = vpack.c.b16 %v1036, %v1032
    %v1337 = vpack.c.b16 %v1037, %v1033
    %v1338 = vpack.c.b16 %v1038, %v1034
    %v1339 = vpack.c.b16 %v1043, %v1039
    %v1340 = vpack.c.b16 %v1044, %v1040
    %v1341 = vpack.c.b16 %v1045, %v1041
    %v1342 = vpack.c.b16 %v1046, %v1042
    %v1343 = vpack.c.b16 %v1051, %v1047
    %v1344 = vpack.c.b16 %v1052, %v1048
    %v1345 = vpack.c.b16 %v1053, %v1049
    %v1346 = vpack.c.b16 %v1054, %v1050
    %v1347 = vpack.c.b16 %v1059, %v1055
    %v1348 = vpack.c.b16 %v1060, %v1056
    %v1349 = vpack.c.b16 %v1061, %v1057
    %v1350 = vpack.c.b16 %v1062, %v1058
    %v1351 = vpack.c.b16 %v1067, %v1063
    %v1352 = vpack.c.b16 %v1068, %v1064
    %v1353 = vpack.c.b16 %v1069, %v1065
    %v1354 = vpack.c.b16 %v1070, %v1066
    %v1355 = vpack.c.b16 %v1075, %v1071
    %v1356 = vpack.c.b16 %v1076, %v1072
    %v1357 = vpack.c.b16 %v1077, %v1073
    %v1358 = vpack.c.b16 %v1078, %v1074
    %v1359 = vpack.c.b16 %v1083, %v1079
    %v1360 = vpack.c.b16 %v1084, %v1080
    %v1361 = vpack.c.b16 %v1085, %v1081
    %v1362 = vpack.c.b16 %v1086, %v1082
    %v1363 = vpack.c.b16 %v1091, %v1087
    %v1364 = vpack.c.b16 %v1092, %v1088
    %v1365 = vpack.c.b16 %v1093, %v1089
    %v1366 = vpack.c.b16 %v1094, %v1090
    %v1367 = vpack.c.b16 %v1099, %v1095
    %v1368 = vpack.c.b16 %v1100, %v1096
    %v1369 = vpack.c.b16 %v1101, %v1097
    %v1370 = vpack.c.b16 %v1102, %v1098
    %v1371 = vpack.c.b16 %v1107, %v1103
    %v1372 = vpack.c.b16 %v1108, %v1104
    %v1373 = vpack.c.b16 %v1109, %v1105
    %v1374 = vpack.c.b16 %v1110, %v1106
    %v1375 = vpack.c.b16 %v1115, %v1111
    %v1376 = vpack.c.b16 %v1116, %v1112
    %v1377 = vpack.c.b16 %v1117, %v1113
    %v1378 = vpack.c.b16 %v1118, %v1114
    %v1379 = vpack.c.b16 %v1123, %v1119
    %v1380 = vpack.c.b16 %v1124, %v1120
    %v1381 = vpack.c.b16 %v1125, %v1121
    %v1382 = vpack.c.b16 %v1126, %v1122
    %1639 = vmatprep.subr.bf16.mxu0 %v1156
    %1640 = vmatpush1.bf16.msra.mxu0 %v1155
    %1641 = vmatprep.subr.bf16.mxu0 %v1152
    %1642 = vmatpush1.bf16.msra.mxu0 %v1151
    %1643 = vmatprep.subr.bf16.mxu0 %v1148
    %1644 = vmatpush1.bf16.msra.mxu0 %v1147
    %1645 = vmatprep.subr.bf16.mxu0 %v1144
    %1646 = vmatpush1.bf16.msra.mxu0 %v1143
    %1647 = vmatprep.subr.bf16.mxu0 %v1140
    %1648 = vmatpush1.bf16.msra.mxu0 %v1139
    %1649 = vmatprep.subr.bf16.mxu0 %v1136
    %1650 = vmatpush1.bf16.msra.mxu0 %v1135
    %1651 = vmatprep.subr.bf16.mxu0 %v1132
    %1652 = vmatpush1.bf16.msra.mxu0 %v1131
    %1653 = vmatprep.subr.bf16.mxu0 %v1128
    %1654 = vmatpush1.bf16.msra.mxu0 %v1127
    %1655 = vmatprep.subr.bf16.mxu0 %v1188
    %1656 = vmatpush2.bf16.msra.mxu0 %v1187
    %1657 = vmatprep.subr.bf16.mxu0 %v1184
    %1658 = vmatpush2.bf16.msra.mxu0 %v1183
    %1659 = vmatprep.subr.bf16.mxu0 %v1180
    %1660 = vmatpush2.bf16.msra.mxu0 %v1179
    %1661 = vmatprep.subr.bf16.mxu0 %v1176
    %1662 = vmatpush2.bf16.msra.mxu0 %v1175
    %1663 = vmatprep.subr.bf16.mxu0 %v1172
    %1664 = vmatpush2.bf16.msra.mxu0 %v1171
    %1665 = vmatprep.subr.bf16.mxu0 %v1168
    %1666 = vmatpush2.bf16.msra.mxu0 %v1167
    %1667 = vmatprep.subr.bf16.mxu0 %v1164
    %1668 = vmatpush2.bf16.msra.mxu0 %v1163
    %1669 = vmatprep.subr.bf16.mxu0 %v1160
    %1670 = vmatpush2.bf16.msra.mxu0 %v1159
    %1671 = vmatprep.mubr.bf16.mxu0 %v339
    %1672 = vmatmul.mubr.bf16.gmra.mxu0 %v325
    %v1673 = vpop.f32.mrf.mxu0
    %v1674 = vadd.f32 %v284, %v1673
    %v1675 = vpop.f32.mrf.mxu0
    %v1676 = vadd.f32 %v288, %v1675
    %v1677 = vpop.f32.mrf.mxu0
    %v1678 = vpop.f32.mrf.mxu0
    %1679 = vdwg.mxu0
    %1680 = vmatprep.subr.bf16.mxu0 %v1220
    %1681 = vmatpush1.bf16.msra.mxu0 %v1219
    %1682 = vmatprep.subr.bf16.mxu0 %v1216
    %1683 = vmatpush1.bf16.msra.mxu0 %v1215
    %1684 = vmatprep.subr.bf16.mxu0 %v1212
    %1685 = vmatpush1.bf16.msra.mxu0 %v1211
    %1686 = vmatprep.subr.bf16.mxu0 %v1208
    %1687 = vmatpush1.bf16.msra.mxu0 %v1207
    %1688 = vmatprep.subr.bf16.mxu0 %v1204
    %1689 = vmatpush1.bf16.msra.mxu0 %v1203
    %1690 = vmatprep.subr.bf16.mxu0 %v1200
    %1691 = vmatpush1.bf16.msra.mxu0 %v1199
    %1692 = vmatprep.subr.bf16.mxu0 %v1196
    %1693 = vmatpush1.bf16.msra.mxu0 %v1195
    %1694 = vmatprep.subr.bf16.mxu0 %v1192
    %1695 = vmatpush1.bf16.msra.mxu0 %v1191
    %1696 = vmatprep.subr.bf16.mxu0 %v1252
    %1697 = vmatpush2.bf16.msra.mxu0 %v1251
    %1698 = vmatprep.subr.bf16.mxu0 %v1248
    %1699 = vmatpush2.bf16.msra.mxu0 %v1247
    %1700 = vmatprep.subr.bf16.mxu0 %v1244
    %1701 = vmatpush2.bf16.msra.mxu0 %v1243
    %1702 = vmatprep.subr.bf16.mxu0 %v1240
    %1703 = vmatpush2.bf16.msra.mxu0 %v1239
    %1704 = vmatprep.subr.bf16.mxu0 %v1236
    %1705 = vmatpush2.bf16.msra.mxu0 %v1235
    %1706 = vmatprep.subr.bf16.mxu0 %v1232
    %1707 = vmatpush2.bf16.msra.mxu0 %v1231
    %1708 = vmatprep.subr.bf16.mxu0 %v1228
    %1709 = vmatpush2.bf16.msra.mxu0 %v1227
    %1710 = vmatprep.subr.bf16.mxu0 %v1224
    %1711 = vmatpush2.bf16.msra.mxu0 %v1223
    %1712 = vmatprep.mubr.bf16.mxu0 %v349
    %1713 = vmatmul.mubr.bf16.gmra.mxu0 %v347
    %v1714 = vpop.f32.mrf.mxu0
    %v1715 = vadd.f32 %v1674, %v1714
    %v1716 = vpop.f32.mrf.mxu0
    %v1717 = vadd.f32 %v1676, %v1716
    %v1718 = vpop.f32.mrf.mxu0
    %v1719 = vpop.f32.mrf.mxu0
    %1720 = vdwg.mxu0
    %1721 = vmatprep.subr.bf16.mxu0 %v1284
    %1722 = vmatpush1.bf16.msra.mxu0 %v1283
    %1723 = vmatprep.subr.bf16.mxu0 %v1280
    %1724 = vmatpush1.bf16.msra.mxu0 %v1279
    %1725 = vmatprep.subr.bf16.mxu0 %v1276
    %1726 = vmatpush1.bf16.msra.mxu0 %v1275
    %1727 = vmatprep.subr.bf16.mxu0 %v1272
    %1728 = vmatpush1.bf16.msra.mxu0 %v1271
    %1729 = vmatprep.subr.bf16.mxu0 %v1268
    %1730 = vmatpush1.bf16.msra.mxu0 %v1267
    %1731 = vmatprep.subr.bf16.mxu0 %v1264
    %1732 = vmatpush1.bf16.msra.mxu0 %v1263
    %1733 = vmatprep.subr.bf16.mxu0 %v1260
    %1734 = vmatpush1.bf16.msra.mxu0 %v1259
    %1735 = vmatprep.subr.bf16.mxu0 %v1256
    %1736 = vmatpush1.bf16.msra.mxu0 %v1255
    %1737 = vmatprep.subr.bf16.mxu0 %v1316
    %1738 = vmatpush2.bf16.msra.mxu0 %v1315
    %1739 = vmatprep.subr.bf16.mxu0 %v1312
    %1740 = vmatpush2.bf16.msra.mxu0 %v1311
    %1741 = vmatprep.subr.bf16.mxu0 %v1308
    %1742 = vmatpush2.bf16.msra.mxu0 %v1307
    %1743 = vmatprep.subr.bf16.mxu0 %v1304
    %1744 = vmatpush2.bf16.msra.mxu0 %v1303
    %1745 = vmatprep.subr.bf16.mxu0 %v1300
    %1746 = vmatpush2.bf16.msra.mxu0 %v1299
    %1747 = vmatprep.subr.bf16.mxu0 %v1296
    %1748 = vmatpush2.bf16.msra.mxu0 %v1295
    %1749 = vmatprep.subr.bf16.mxu0 %v1292
    %1750 = vmatpush2.bf16.msra.mxu0 %v1291
    %1751 = vmatprep.subr.bf16.mxu0 %v1288
    %1752 = vmatpush2.bf16.msra.mxu0 %v1287
    %1753 = vmatprep.mubr.bf16.mxu0 %v346
    %1754 = vmatmul.mubr.bf16.gmra.mxu0 %v332
    %v1755 = vpop.f32.mrf.mxu0
    %v1756 = vadd.f32 %v1715, %v1755
    %v1757 = vpop.f32.mrf.mxu0
    %v1758 = vadd.f32 %v1717, %v1757
    %v1759 = vpop.f32.mrf.mxu0
    %v1760 = vpop.f32.mrf.mxu0
    %1761 = vdwg.mxu0
    %1762 = vmatprep.subr.bf16.mxu0 %v1348
    %1763 = vmatpush1.bf16.msra.mxu0 %v1347
    %1764 = vmatprep.subr.bf16.mxu0 %v1344
    %1765 = vmatpush1.bf16.msra.mxu0 %v1343
    %1766 = vmatprep.subr.bf16.mxu0 %v1340
    %1767 = vmatpush1.bf16.msra.mxu0 %v1339
    %1768 = vmatprep.subr.bf16.mxu0 %v1336
    %1769 = vmatpush1.bf16.msra.mxu0 %v1335
    %1770 = vmatprep.subr.bf16.mxu0 %v1332
    %1771 = vmatpush1.bf16.msra.mxu0 %v1331
    %1772 = vmatprep.subr.bf16.mxu0 %v1328
    %1773 = vmatpush1.bf16.msra.mxu0 %v1327
    %1774 = vmatprep.subr.bf16.mxu0 %v1324
    %1775 = vmatpush1.bf16.msra.mxu0 %v1323
    %1776 = vmatprep.subr.bf16.mxu0 %v1320
    %1777 = vmatpush1.bf16.msra.mxu0 %v1319
    %1778 = vmatprep.subr.bf16.mxu0 %v1380
    %1779 = vmatpush2.bf16.msra.mxu0 %v1379
    %1780 = vmatprep.subr.bf16.mxu0 %v1376
    %1781 = vmatpush2.bf16.msra.mxu0 %v1375
    %1782 = vmatprep.subr.bf16.mxu0 %v1372
    %1783 = vmatpush2.bf16.msra.mxu0 %v1371
    %1784 = vmatprep.subr.bf16.mxu0 %v1368
    %1785 = vmatpush2.bf16.msra.mxu0 %v1367
    %1786 = vmatprep.subr.bf16.mxu0 %v1364
    %1787 = vmatpush2.bf16.msra.mxu0 %v1363
    %1788 = vmatprep.subr.bf16.mxu0 %v1360
    %1789 = vmatpush2.bf16.msra.mxu0 %v1359
    %1790 = vmatprep.subr.bf16.mxu0 %v1356
    %1791 = vmatpush2.bf16.msra.mxu0 %v1355
    %1792 = vmatprep.subr.bf16.mxu0 %v1352
    %1793 = vmatpush2.bf16.msra.mxu0 %v1351
    %1794 = vmatprep.mubr.bf16.mxu0 %v350
    %1795 = vmatmul.mubr.bf16.gmra.mxu0 %v348
    %v1796 = vpop.f32.mrf.mxu0
    %v1797 = vadd.f32 %v1756, %v1796
    %v1798 = vpop.f32.mrf.mxu0
    %v1799 = vadd.f32 %v1758, %v1798
    %v1800 = vpop.f32.mrf.mxu0
    %v1801 = vpop.f32.mrf.mxu0
    %1802 = vdwg.mxu0
    %1803 = vmatprep.subr.bf16.mxu0 %v1158
    %1804 = vmatpush1.bf16.msra.mxu0 %v1157
    %1805 = vmatprep.subr.bf16.mxu0 %v1154
    %1806 = vmatpush1.bf16.msra.mxu0 %v1153
    %1807 = vmatprep.subr.bf16.mxu0 %v1150
    %1808 = vmatpush1.bf16.msra.mxu0 %v1149
    %1809 = vmatprep.subr.bf16.mxu0 %v1146
    %1810 = vmatpush1.bf16.msra.mxu0 %v1145
    %1811 = vmatprep.subr.bf16.mxu0 %v1142
    %1812 = vmatpush1.bf16.msra.mxu0 %v1141
    %1813 = vmatprep.subr.bf16.mxu0 %v1138
    %1814 = vmatpush1.bf16.msra.mxu0 %v1137
    %1815 = vmatprep.subr.bf16.mxu0 %v1134
    %1816 = vmatpush1.bf16.msra.mxu0 %v1133
    %1817 = vmatprep.subr.bf16.mxu0 %v1130
    %1818 = vmatpush1.bf16.msra.mxu0 %v1129
    %1819 = vmatprep.subr.bf16.mxu0 %v1190
    %1820 = vmatpush2.bf16.msra.mxu0 %v1189
    %1821 = vmatprep.subr.bf16.mxu0 %v1186
    %1822 = vmatpush2.bf16.msra.mxu0 %v1185
    %1823 = vmatprep.subr.bf16.mxu0 %v1182
    %1824 = vmatpush2.bf16.msra.mxu0 %v1181
    %1825 = vmatprep.subr.bf16.mxu0 %v1178
    %1826 = vmatpush2.bf16.msra.mxu0 %v1177
    %1827 = vmatprep.subr.bf16.mxu0 %v1174
    %1828 = vmatpush2.bf16.msra.mxu0 %v1173
    %1829 = vmatprep.subr.bf16.mxu0 %v1170
    %1830 = vmatpush2.bf16.msra.mxu0 %v1169
    %1831 = vmatprep.subr.bf16.mxu0 %v1166
    %1832 = vmatpush2.bf16.msra.mxu0 %v1165
    %1833 = vmatprep.subr.bf16.mxu0 %v1162
    %1834 = vmatpush2.bf16.msra.mxu0 %v1161
    %1835 = vmatprep.mubr.bf16.mxu0 %v339
    %1836 = vmatmul.mubr.bf16.gmra.mxu0 %v325
    %v1837 = vpop.f32.mrf.mxu0
    %v1838 = vadd.f32 %v292, %v1837
    %v1839 = vpop.f32.mrf.mxu0
    %v1840 = vadd.f32 %v296, %v1839
    %v1841 = vpop.f32.mrf.mxu0
    %v1842 = vpop.f32.mrf.mxu0
    %1843 = vdwg.mxu0
    %1844 = vmatprep.subr.bf16.mxu0 %v1222
    %1845 = vmatpush1.bf16.msra.mxu0 %v1221
    %1846 = vmatprep.subr.bf16.mxu0 %v1218
    %1847 = vmatpush1.bf16.msra.mxu0 %v1217
    %1848 = vmatprep.subr.bf16.mxu0 %v1214
    %1849 = vmatpush1.bf16.msra.mxu0 %v1213
    %1850 = vmatprep.subr.bf16.mxu0 %v1210
    %1851 = vmatpush1.bf16.msra.mxu0 %v1209
    %1852 = vmatprep.subr.bf16.mxu0 %v1206
    %1853 = vmatpush1.bf16.msra.mxu0 %v1205
    %1854 = vmatprep.subr.bf16.mxu0 %v1202
    %1855 = vmatpush1.bf16.msra.mxu0 %v1201
    %1856 = vmatprep.subr.bf16.mxu0 %v1198
    %1857 = vmatpush1.bf16.msra.mxu0 %v1197
    %1858 = vmatprep.subr.bf16.mxu0 %v1194
    %1859 = vmatpush1.bf16.msra.mxu0 %v1193
    %1860 = vmatprep.subr.bf16.mxu0 %v1254
    %1861 = vmatpush2.bf16.msra.mxu0 %v1253
    %1862 = vmatprep.subr.bf16.mxu0 %v1250
    %1863 = vmatpush2.bf16.msra.mxu0 %v1249
    %1864 = vmatprep.subr.bf16.mxu0 %v1246
    %1865 = vmatpush2.bf16.msra.mxu0 %v1245
    %1866 = vmatprep.subr.bf16.mxu0 %v1242
    %1867 = vmatpush2.bf16.msra.mxu0 %v1241
    %1868 = vmatprep.subr.bf16.mxu0 %v1238
    %1869 = vmatpush2.bf16.msra.mxu0 %v1237
    %1870 = vmatprep.subr.bf16.mxu0 %v1234
    %1871 = vmatpush2.bf16.msra.mxu0 %v1233
    %1872 = vmatprep.subr.bf16.mxu0 %v1230
    %1873 = vmatpush2.bf16.msra.mxu0 %v1229
    %1874 = vmatprep.subr.bf16.mxu0 %v1226
    %1875 = vmatpush2.bf16.msra.mxu0 %v1225
    %1876 = vmatprep.mubr.bf16.mxu0 %v349
    %1877 = vmatmul.mubr.bf16.gmra.mxu0 %v347
    %v1878 = vpop.f32.mrf.mxu0
    %v1879 = vadd.f32 %v1838, %v1878
    %v1880 = vpop.f32.mrf.mxu0
    %v1881 = vadd.f32 %v1840, %v1880
    %v1882 = vpop.f32.mrf.mxu0
    %v1883 = vpop.f32.mrf.mxu0
    %1884 = vdwg.mxu0
    %1885 = vmatprep.subr.bf16.mxu0 %v1286
    %1886 = vmatpush1.bf16.msra.mxu0 %v1285
    %1887 = vmatprep.subr.bf16.mxu0 %v1282
    %1888 = vmatpush1.bf16.msra.mxu0 %v1281
    %1889 = vmatprep.subr.bf16.mxu0 %v1278
    %1890 = vmatpush1.bf16.msra.mxu0 %v1277
    %1891 = vmatprep.subr.bf16.mxu0 %v1274
    %1892 = vmatpush1.bf16.msra.mxu0 %v1273
    %1893 = vmatprep.subr.bf16.mxu0 %v1270
    %1894 = vmatpush1.bf16.msra.mxu0 %v1269
    %1895 = vmatprep.subr.bf16.mxu0 %v1266
    %1896 = vmatpush1.bf16.msra.mxu0 %v1265
    %1897 = vmatprep.subr.bf16.mxu0 %v1262
    %1898 = vmatpush1.bf16.msra.mxu0 %v1261
    %1899 = vmatprep.subr.bf16.mxu0 %v1258
    %1900 = vmatpush1.bf16.msra.mxu0 %v1257
    %1901 = vmatprep.subr.bf16.mxu0 %v1318
    %1902 = vmatpush2.bf16.msra.mxu0 %v1317
    %1903 = vmatprep.subr.bf16.mxu0 %v1314
    %1904 = vmatpush2.bf16.msra.mxu0 %v1313
    %1905 = vmatprep.subr.bf16.mxu0 %v1310
    %1906 = vmatpush2.bf16.msra.mxu0 %v1309
    %1907 = vmatprep.subr.bf16.mxu0 %v1306
    %1908 = vmatpush2.bf16.msra.mxu0 %v1305
    %1909 = vmatprep.subr.bf16.mxu0 %v1302
    %1910 = vmatpush2.bf16.msra.mxu0 %v1301
    %1911 = vmatprep.subr.bf16.mxu0 %v1298
    %1912 = vmatpush2.bf16.msra.mxu0 %v1297
    %1913 = vmatprep.subr.bf16.mxu0 %v1294
    %1914 = vmatpush2.bf16.msra.mxu0 %v1293
    %1915 = vmatprep.subr.bf16.mxu0 %v1290
    %1916 = vmatpush2.bf16.msra.mxu0 %v1289
    %1917 = vmatprep.mubr.bf16.mxu0 %v346
    %1918 = vmatmul.mubr.bf16.gmra.mxu0 %v332
    %v1919 = vpop.f32.mrf.mxu0
    %v1920 = vadd.f32 %v1879, %v1919
    %v1921 = vpop.f32.mrf.mxu0
    %v1922 = vadd.f32 %v1881, %v1921
    %v1923 = vpop.f32.mrf.mxu0
    %v1924 = vpop.f32.mrf.mxu0
    %1925 = vdwg.mxu0
    %1926 = vmatprep.subr.bf16.mxu0 %v1350
    %1927 = vmatpush1.bf16.msra.mxu0 %v1349
    %1928 = vmatprep.subr.bf16.mxu0 %v1346
    %1929 = vmatpush1.bf16.msra.mxu0 %v1345
    %1930 = vmatprep.subr.bf16.mxu0 %v1342
    %1931 = vmatpush1.bf16.msra.mxu0 %v1341
    %1932 = vmatprep.subr.bf16.mxu0 %v1338
    %1933 = vmatpush1.bf16.msra.mxu0 %v1337
    %1934 = vmatprep.subr.bf16.mxu0 %v1334
    %1935 = vmatpush1.bf16.msra.mxu0 %v1333
    %1936 = vmatprep.subr.bf16.mxu0 %v1330
    %1937 = vmatpush1.bf16.msra.mxu0 %v1329
    %1938 = vmatprep.subr.bf16.mxu0 %v1326
    %1939 = vmatpush1.bf16.msra.mxu0 %v1325
    %1940 = vmatprep.subr.bf16.mxu0 %v1322
    %1941 = vmatpush1.bf16.msra.mxu0 %v1321
    %1942 = vmatprep.subr.bf16.mxu0 %v1382
    %1943 = vmatpush2.bf16.msra.mxu0 %v1381
    %1944 = vmatprep.subr.bf16.mxu0 %v1378
    %1945 = vmatpush2.bf16.msra.mxu0 %v1377
    %1946 = vmatprep.subr.bf16.mxu0 %v1374
    %1947 = vmatpush2.bf16.msra.mxu0 %v1373
    %1948 = vmatprep.subr.bf16.mxu0 %v1370
    %1949 = vmatpush2.bf16.msra.mxu0 %v1369
    %1950 = vmatprep.subr.bf16.mxu0 %v1366
    %1951 = vmatpush2.bf16.msra.mxu0 %v1365
    %1952 = vmatprep.subr.bf16.mxu0 %v1362
    %1953 = vmatpush2.bf16.msra.mxu0 %v1361
    %1954 = vmatprep.subr.bf16.mxu0 %v1358
    %1955 = vmatpush2.bf16.msra.mxu0 %v1357
    %1956 = vmatprep.subr.bf16.mxu0 %v1354
    %1957 = vmatpush2.bf16.msra.mxu0 %v1353
    %1958 = vmatprep.mubr.bf16.mxu0 %v350
    %1959 = vmatmul.mubr.bf16.gmra.mxu0 %v348
    %v1960 = vpop.f32.mrf.mxu0
    %v1961 = vadd.f32 %v1920, %v1960
    %v1962 = vpop.f32.mrf.mxu0
    %v1963 = vadd.f32 %v1922, %v1962
    %v1964 = vpop.f32.mrf.mxu0
    %v1965 = vpop.f32.mrf.mxu0
    %1966 = vdwg.mxu0
    %v1967 = vmax.f32 %v1797, 0.0
    %v1968 = vmax.f32 %v1799, 0.0
    %v1969 = vmax.f32 %v1961, 0.0
    %v1970 = vmax.f32 %v1963, 0.0
    %v1971 = vpack.c.bf16 %v1967, %v1967
    %v1972 = vpack.c.bf16 %v1968, %v1968
    %v1973 = vpack.c.bf16 %v1969, %v1969
    %v1974 = vpack.c.bf16 %v1970, %v1970
    %v1975 = vld [vmem:[%s3] sm:$0xf]
    %v1976 = vld [vmem:[%s3 + $0x4] sm:$0xf]
    %v1977 = vld [vmem:[%s3 + $0x8] sm:$0xf]
    %v1978 = vld [vmem:[%s3 + $0xc] sm:$0xf]
    %v1979 = vld [vmem:[%s3 + $0x10] sm:$0xf]
    %v1980 = vld [vmem:[%s3 + $0x14] sm:$0xf]
    %v1981 = vld [vmem:[%s3 + $0x18] sm:$0xf]
    %v1982 = vld [vmem:[%s3 + $0x1c] sm:$0xf]
    %v1983 = vld [vmem:[%s3 + $0x20] sm:$0xf]
    %v1984 = vld [vmem:[%s3 + $0x24] sm:$0xf]
    %v1985 = vld [vmem:[%s3 + $0x28] sm:$0xf]
    %v1986 = vld [vmem:[%s3 + $0x2c] sm:$0xf]
    %v1987 = vld [vmem:[%s3 + $0x30] sm:$0xf]
    %v1988 = vld [vmem:[%s3 + $0x34] sm:$0xf]
    %v1989 = vld [vmem:[%s3 + $0x38] sm:$0xf]
    %v1990 = vld [vmem:[%s3 + $0x3c] sm:$0xf]
    %v1991 = vld [vmem:[%s3 + $0x40] sm:$0xf]
    %v1992 = vld [vmem:[%s3 + $0x44] sm:$0xf]
    %v1993 = vld [vmem:[%s3 + $0x48] sm:$0xf]
    %v1994 = vld [vmem:[%s3 + $0x4c] sm:$0xf]
    %v1995 = vld [vmem:[%s3 + $0x50] sm:$0xf]
    %v1996 = vld [vmem:[%s3 + $0x54] sm:$0xf]
    %v1997 = vld [vmem:[%s3 + $0x58] sm:$0xf]
    %v1998 = vld [vmem:[%s3 + $0x5c] sm:$0xf]
    %v1999 = vld [vmem:[%s3 + $0x60] sm:$0xf]
    %v2000 = vld [vmem:[%s3 + $0x64] sm:$0xf]
    %v2001 = vld [vmem:[%s3 + $0x68] sm:$0xf]
    %v2002 = vld [vmem:[%s3 + $0x6c] sm:$0xf]
    %v2003 = vld [vmem:[%s3 + $0x70] sm:$0xf]
    %v2004 = vld [vmem:[%s3 + $0x74] sm:$0xf]
    %v2005 = vld [vmem:[%s3 + $0x78] sm:$0xf]
    %v2006 = vld [vmem:[%s3 + $0x7c] sm:$0xf]
    %v2007 = vld [vmem:[%s3 + $0x80] sm:$0xf]
    %v2008 = vld [vmem:[%s3 + $0x84] sm:$0xf]
    %v2009 = vld [vmem:[%s3 + $0x88] sm:$0xf]
    %v2010 = vld [vmem:[%s3 + $0x8c] sm:$0xf]
    %v2011 = vld [vmem:[%s3 + $0x90] sm:$0xf]
    %v2012 = vld [vmem:[%s3 + $0x94] sm:$0xf]
    %v2013 = vld [vmem:[%s3 + $0x98] sm:$0xf]
    %v2014 = vld [vmem:[%s3 + $0x9c] sm:$0xf]
    %v2015 = vld [vmem:[%s3 + $0xa0] sm:$0xf]
    %v2016 = vld [vmem:[%s3 + $0xa4] sm:$0xf]
    %v2017 = vld [vmem:[%s3 + $0xa8] sm:$0xf]
    %v2018 = vld [vmem:[%s3 + $0xac] sm:$0xf]
    %v2019 = vld [vmem:[%s3 + $0xb0] sm:$0xf]
    %v2020 = vld [vmem:[%s3 + $0xb4] sm:$0xf]
    %v2021 = vld [vmem:[%s3 + $0xb8] sm:$0xf]
    %v2022 = vld [vmem:[%s3 + $0xbc] sm:$0xf]
    %v2023 = vld [vmem:[%s3 + $0xc0] sm:$0xf]
    %v2024 = vld [vmem:[%s3 + $0xc4] sm:$0xf]
    %v2025 = vld [vmem:[%s3 + $0xc8] sm:$0xf]
    %v2026 = vld [vmem:[%s3 + $0xcc] sm:$0xf]
    %v2027 = vld [vmem:[%s3 + $0xd0] sm:$0xf]
    %v2028 = vld [vmem:[%s3 + $0xd4] sm:$0xf]
    %v2029 = vld [vmem:[%s3 + $0xd8] sm:$0xf]
    %v2030 = vld [vmem:[%s3 + $0xdc] sm:$0xf]
    %v2031 = vld [vmem:[%s3 + $0xe0] sm:$0xf]
    %v2032 = vld [vmem:[%s3 + $0xe4] sm:$0xf]
    %v2033 = vld [vmem:[%s3 + $0xe8] sm:$0xf]
    %v2034 = vld [vmem:[%s3 + $0xec] sm:$0xf]
    %v2035 = vld [vmem:[%s3 + $0xf0] sm:$0xf]
    %v2036 = vld [vmem:[%s3 + $0xf4] sm:$0xf]
    %v2037 = vld [vmem:[%s3 + $0xf8] sm:$0xf]
    %v2038 = vld [vmem:[%s3 + $0xfc] sm:$0xf]
    %v2039 = vld [vmem:[%s4] sm:$0x1]
    %v2041 = vlaneseq
    %v2042 = vshrl.u32 %v2041, 7
    %v2043 = vsub.s32 0, %v2042
    %v2044 = vrot.slane %v2039, %v2043
    %v2110 = vunpack.c.l.b16 %v1975
    %v2111 = vunpack.c.l.b16 %v1976
    %v2112 = vunpack.c.l.b16 %v1977
    %v2113 = vunpack.c.l.b16 %v1978
    %v2114 = vunpack.c.l.b16 %v1979
    %v2115 = vunpack.c.l.b16 %v1980
    %v2116 = vunpack.c.l.b16 %v1981
    %v2117 = vunpack.c.l.b16 %v1982
    %v2118 = vunpack.c.l.b16 %v1983
    %v2119 = vunpack.c.l.b16 %v1984
    %v2120 = vunpack.c.l.b16 %v1985
    %v2121 = vunpack.c.l.b16 %v1986
    %v2122 = vunpack.c.l.b16 %v1987
    %v2123 = vunpack.c.l.b16 %v1988
    %v2124 = vunpack.c.l.b16 %v1989
    %v2125 = vunpack.c.l.b16 %v1990
    %v2126 = vunpack.c.l.b16 %v1991
    %v2127 = vunpack.c.l.b16 %v1992
    %v2128 = vunpack.c.l.b16 %v1993
    %v2129 = vunpack.c.l.b16 %v1994
    %v2130 = vunpack.c.l.b16 %v1995
    %v2131 = vunpack.c.l.b16 %v1996
    %v2132 = vunpack.c.l.b16 %v1997
    %v2133 = vunpack.c.l.b16 %v1998
    %v2134 = vunpack.c.l.b16 %v1999
    %v2135 = vunpack.c.l.b16 %v2000
    %v2136 = vunpack.c.l.b16 %v2001
    %v2137 = vunpack.c.l.b16 %v2002
    %v2138 = vunpack.c.l.b16 %v2003
    %v2139 = vunpack.c.l.b16 %v2004
    %v2140 = vunpack.c.l.b16 %v2005
    %v2141 = vunpack.c.l.b16 %v2006
    %v2142 = vunpack.c.l.b16 %v2007
    %v2143 = vunpack.c.l.b16 %v2008
    %v2144 = vunpack.c.l.b16 %v2009
    %v2145 = vunpack.c.l.b16 %v2010
    %v2146 = vunpack.c.l.b16 %v2011
    %v2147 = vunpack.c.l.b16 %v2012
    %v2148 = vunpack.c.l.b16 %v2013
    %v2149 = vunpack.c.l.b16 %v2014
    %v2150 = vunpack.c.l.b16 %v2015
    %v2151 = vunpack.c.l.b16 %v2016
    %v2152 = vunpack.c.l.b16 %v2017
    %v2153 = vunpack.c.l.b16 %v2018
    %v2154 = vunpack.c.l.b16 %v2019
    %v2155 = vunpack.c.l.b16 %v2020
    %v2156 = vunpack.c.l.b16 %v2021
    %v2157 = vunpack.c.l.b16 %v2022
    %v2158 = vunpack.c.l.b16 %v2023
    %v2159 = vunpack.c.l.b16 %v2024
    %v2160 = vunpack.c.l.b16 %v2025
    %v2161 = vunpack.c.l.b16 %v2026
    %v2162 = vunpack.c.l.b16 %v2027
    %v2163 = vunpack.c.l.b16 %v2028
    %v2164 = vunpack.c.l.b16 %v2029
    %v2165 = vunpack.c.l.b16 %v2030
    %v2166 = vunpack.c.l.b16 %v2031
    %v2167 = vunpack.c.l.b16 %v2032
    %v2168 = vunpack.c.l.b16 %v2033
    %v2169 = vunpack.c.l.b16 %v2034
    %v2170 = vunpack.c.l.b16 %v2035
    %v2171 = vunpack.c.l.b16 %v2036
    %v2172 = vunpack.c.l.b16 %v2037
    %v2173 = vunpack.c.l.b16 %v2038
    %v2174 = vpack.c.b16 %v2111, %v2110
    %v2175 = vpack.c.b16 %v2113, %v2112
    %v2176 = vpack.c.b16 %v2115, %v2114
    %v2177 = vpack.c.b16 %v2117, %v2116
    %v2178 = vpack.c.b16 %v2119, %v2118
    %v2179 = vpack.c.b16 %v2121, %v2120
    %v2180 = vpack.c.b16 %v2123, %v2122
    %v2181 = vpack.c.b16 %v2125, %v2124
    %v2182 = vpack.c.b16 %v2127, %v2126
    %v2183 = vpack.c.b16 %v2129, %v2128
    %v2184 = vpack.c.b16 %v2131, %v2130
    %v2185 = vpack.c.b16 %v2133, %v2132
    %v2186 = vpack.c.b16 %v2135, %v2134
    %v2187 = vpack.c.b16 %v2137, %v2136
    %v2188 = vpack.c.b16 %v2139, %v2138
    %v2189 = vpack.c.b16 %v2141, %v2140
    %v2190 = vpack.c.b16 %v2143, %v2142
    %v2191 = vpack.c.b16 %v2145, %v2144
    %v2192 = vpack.c.b16 %v2147, %v2146
    %v2193 = vpack.c.b16 %v2149, %v2148
    %v2194 = vpack.c.b16 %v2151, %v2150
    %v2195 = vpack.c.b16 %v2153, %v2152
    %v2196 = vpack.c.b16 %v2155, %v2154
    %v2197 = vpack.c.b16 %v2157, %v2156
    %v2198 = vpack.c.b16 %v2159, %v2158
    %v2199 = vpack.c.b16 %v2161, %v2160
    %v2200 = vpack.c.b16 %v2163, %v2162
    %v2201 = vpack.c.b16 %v2165, %v2164
    %v2202 = vpack.c.b16 %v2167, %v2166
    %v2203 = vpack.c.b16 %v2169, %v2168
    %v2204 = vpack.c.b16 %v2171, %v2170
    %v2205 = vpack.c.b16 %v2173, %v2172
    %2238 = vmatprep.subr.bf16.mxu0 0
    %2239 = vmatpush1.bf16.msra.mxu0 %v2181
    %2240 = vmatprep.subr.bf16.mxu0 0
    %2241 = vmatpush1.bf16.msra.mxu0 %v2180
    %2242 = vmatprep.subr.bf16.mxu0 0
    %2243 = vmatpush1.bf16.msra.mxu0 %v2179
    %2244 = vmatprep.subr.bf16.mxu0 0
    %2245 = vmatpush1.bf16.msra.mxu0 %v2178
    %2246 = vmatprep.subr.bf16.mxu0 0
    %2247 = vmatpush1.bf16.msra.mxu0 %v2177
    %2248 = vmatprep.subr.bf16.mxu0 0
    %2249 = vmatpush1.bf16.msra.mxu0 %v2176
    %2250 = vmatprep.subr.bf16.mxu0 0
    %2251 = vmatpush1.bf16.msra.mxu0 %v2175
    %2252 = vmatprep.subr.bf16.mxu0 0
    %2253 = vmatpush1.bf16.msra.mxu0 %v2174
    %2254 = vmatprep.subr.bf16.mxu0 0
    %2255 = vmatpush2.bf16.msra.mxu0 %v2189
    %2256 = vmatprep.subr.bf16.mxu0 0
    %2257 = vmatpush2.bf16.msra.mxu0 %v2188
    %2258 = vmatprep.subr.bf16.mxu0 0
    %2259 = vmatpush2.bf16.msra.mxu0 %v2187
    %2260 = vmatprep.subr.bf16.mxu0 0
    %2261 = vmatpush2.bf16.msra.mxu0 %v2186
    %2262 = vmatprep.subr.bf16.mxu0 0
    %2263 = vmatpush2.bf16.msra.mxu0 %v2185
    %2264 = vmatprep.subr.bf16.mxu0 0
    %2265 = vmatpush2.bf16.msra.mxu0 %v2184
    %2266 = vmatprep.subr.bf16.mxu0 0
    %2267 = vmatpush2.bf16.msra.mxu0 %v2183
    %2268 = vmatprep.subr.bf16.mxu0 0
    %2269 = vmatpush2.bf16.msra.mxu0 %v2182
    %2270 = vmatprep.mubr.bf16.mxu0 %v1972
    %2271 = vmatmul.mubr.bf16.gmra.mxu0 %v1971
    %v2272 = vpop.f32.mrf.mxu0
    %v2273 = vadd.f32 %v2044, %v2272
    %v2274 = vpop.f32.mrf.mxu0
    %v2275 = vpop.f32.mrf.mxu0
    %v2276 = vpop.f32.mrf.mxu0
    %2277 = vdwg.mxu0
    %2278 = vmatprep.subr.bf16.mxu0 0
    %2279 = vmatpush1.bf16.msra.mxu0 %v2197
    %2280 = vmatprep.subr.bf16.mxu0 0
    %2281 = vmatpush1.bf16.msra.mxu0 %v2196
    %2282 = vmatprep.subr.bf16.mxu0 0
    %2283 = vmatpush1.bf16.msra.mxu0 %v2195
    %2284 = vmatprep.subr.bf16.mxu0 0
    %2285 = vmatpush1.bf16.msra.mxu0 %v2194
    %2286 = vmatprep.subr.bf16.mxu0 0
    %2287 = vmatpush1.bf16.msra.mxu0 %v2193
    %2288 = vmatprep.subr.bf16.mxu0 0
    %2289 = vmatpush1.bf16.msra.mxu0 %v2192
    %2290 = vmatprep.subr.bf16.mxu0 0
    %2291 = vmatpush1.bf16.msra.mxu0 %v2191
    %2292 = vmatprep.subr.bf16.mxu0 0
    %2293 = vmatpush1.bf16.msra.mxu0 %v2190
    %2294 = vmatprep.subr.bf16.mxu0 0
    %2295 = vmatpush2.bf16.msra.mxu0 %v2205
    %2296 = vmatprep.subr.bf16.mxu0 0
    %2297 = vmatpush2.bf16.msra.mxu0 %v2204
    %2298 = vmatprep.subr.bf16.mxu0 0
    %2299 = vmatpush2.bf16.msra.mxu0 %v2203
    %2300 = vmatprep.subr.bf16.mxu0 0
    %2301 = vmatpush2.bf16.msra.mxu0 %v2202
    %2302 = vmatprep.subr.bf16.mxu0 0
    %2303 = vmatpush2.bf16.msra.mxu0 %v2201
    %2304 = vmatprep.subr.bf16.mxu0 0
    %2305 = vmatpush2.bf16.msra.mxu0 %v2200
    %2306 = vmatprep.subr.bf16.mxu0 0
    %2307 = vmatpush2.bf16.msra.mxu0 %v2199
    %2308 = vmatprep.subr.bf16.mxu0 0
    %2309 = vmatpush2.bf16.msra.mxu0 %v2198
    %2310 = vmatprep.mubr.bf16.mxu0 %v1974
    %2311 = vmatmul.mubr.bf16.gmra.mxu0 %v1973
    %v2312 = vpop.f32.mrf.mxu0
    %v2313 = vadd.f32 %v2273, %v2312
    %v2314 = vpop.f32.mrf.mxu0
    %v2315 = vpop.f32.mrf.mxu0
    %v2316 = vpop.f32.mrf.mxu0
    %2317 = vdwg.mxu0
    %2318 = vst [vmem:[#allocation2] sm:$0x3] %v2313
    // Predicated region
    $region22: #{net_forward.7} parent=1 // pred_check
      _
    $region23: #{net_forward.7} parent=1 // pred_check_branch
      %2320 = sbr.rel (0) target = $region25
    $region24: #{net_forward.7} parent=1 // pred_region
      %s2322 = ssub.s32 32, 32
      %2323 = vsyncadd [#allocation3], %s2322
      %s2325 = sshll.u32 [#allocation2], 4
      %s2326 = int_to_ptr.vmem [resolvable:$true] %s2325
      %2328 = dma.vmem_to_hbm [thread:$0]  %s2326, 32, %s5, [#allocation3]
    $region25: #{net_forward.7} parent=1 // pred_fallthru
      _
    // Predicated region
    $region26: #{net_forward.7} parent=1 // pred_check
      _
    $region27: #{net_forward.7} parent=1 // pred_check_branch
      %2330 = sbr.rel (0) target = $region29
    $region28: #{net_forward.7} parent=1 // pred_region
      %2331 = dma.done [#allocation3], 32
    $region29: #{net_forward.7} parent=1 // pred_fallthru
      _
    %2332 = vsyncpa [#allocation3], 1

</llo_original>
